<compile_context>
chip_gen: v7x
topology: tpu7x:2x2x1
jax: 0.10.0
libtpu: 0.0.40
codegen_flags: <defaults>
</compile_context>

<pallas_src>
import functools

import jax
import jax.numpy as jnp
from jax.experimental import pallas as pl
from jax.experimental.pallas import tpu as pltpu

LANE = 128  # TPU lane width: channel dims are padded / blocked to 128.
TARGET_INDICES = (2, 5, 8, 11, 14, 17, 20, 23, 26, 29, 32, 35, 38)


def _ceil_to(v, m):
    return (v + m - 1) // m * m


@functools.lru_cache(maxsize=None)
def _vmem_limit_bytes():
    """Explicit scoped-VMEM limit: 3/4 of physical (generation-adaptive)."""
    try:
        cap = pltpu.get_tpu_info().vmem_capacity_bytes
    except Exception:  # conservative fallback if the query is unavailable
        cap = 128 * 1024 * 1024
    return (cap // 4) * 3


def _cout_block(cout_p):
    # 256-wide output tiles feed the 256x256 MXU on v6e/v7x; 128 elsewhere
    # (and for layers whose padded Cout is not a multiple of 256).
    return 256 if cout_p % 256 == 0 else 128


def _largest_divisor_leq(n, cap):
    best = 1
    for t in range(1, min(cap, n) + 1):
        if n % t == 0:
            best = t
    return best


def _pick_conv_row_tile(H, W, cin_p, cout_blk):
    """Row tile for pass 1: divisor of H, capped by a per-step VMEM budget."""
    # Per-row bytes: double-buffered x & y blocks + scratch slab + f32 acc.
    per_row = W * (2 * cin_p * 2 + 2 * cout_blk * 2 + cin_p * 2 + cout_blk * 4)
    budget_rows = max(1, (16 * 1024 * 1024) // max(per_row, 1))
    cap = max(1, min(64, max(1, H // 2), budget_rows))
    return _largest_divisor_leq(H, cap)


def _pick_bn_row_tile(H, W, cout_p):
    """Row tile for pass 2 (mem-bound): as large as the VMEM budget allows."""
    per_row = 2 * W * cout_p * 2  # bf16 in + bf16 out
    budget_rows = max(1, (4 * 1024 * 1024) // max(per_row, 1))
    cap = max(1, min(H, budget_rows))
    return _largest_divisor_leq(H, cap)


# ----------------------------------------------------------------------------
# Pass 1: Conv3x3(pad=1) row tile + per-(image,row-tile) BN partial statistics
# ----------------------------------------------------------------------------
def _conv_stats_kernel(xm_ref, xp_ref, xn_ref, w_ref, y_ref, s1_ref, s2_ref,
                       xs_ref, *, TR, W, Wp, n_rt):
    # xm_ref : (1, TR, W, Cin_p)  bf16 main row tile (unpadded activation)
    # xp_ref : (1, 1,  W, Cin_p)  bf16 row above the tile (clamped at rt == 0)
    # xn_ref : (1, 1,  W, Cin_p)  bf16 row below the tile (clamped at last rt)
    # w_ref  : (3, 3, Cin_p, CB)  bf16 HWIO weights, one Cout block
    # y_ref  : (1, TR, W, CB)     bf16 conv output tile (lane dense)
    # s1/s2  : (1, 1, 1, CB)      f32 partial sum / sum-of-squares
    # xs_ref : (TR+2, Wp, Cin_p)  bf16 VMEM scratch: haloed slab, Wp % 8 == 0
    rt = pl.program_id(1)
    co = pl.program_id(2)
    cin = xm_ref.shape[-1]
    cb = y_ref.shape[-1]

    # Assemble the haloed slab once per (n, rt); it stays resident across the
    # inner Cout axis (co is "arbitrary", so it is never split across cores).
    @pl.when(co == 0)
    def _assemble():
        xs_ref[:, 0:1, :] = jnp.zeros((TR + 2, 1, cin), xs_ref.dtype)
        xs_ref[:, W + 1:Wp, :] = jnp.zeros((TR + 2, Wp - W - 1, cin),
                                           xs_ref.dtype)
        xs_ref[1:TR + 1, 1:W + 1, :] = xm_ref[0]
        top = xp_ref[0, 0:1, :, :]
        xs_ref[0:1, 1:W + 1, :] = jnp.where(rt == 0, jnp.zeros_like(top), top)
        bot = xn_ref[0, 0:1, :, :]
        xs_ref[TR + 1:TR + 2, 1:W + 1, :] = jnp.where(
            rt == n_rt - 1, jnp.zeros_like(bot), bot)

    # 9 MXU matmuls.  The LHS for each dy is the full-width flattened slab
    # (contiguous view since Wp % 8 == 0); the dx shift is applied on the f32
    # output via a slice-add, so no per-tap input relayout copies.
    acc = jnp.zeros((TR, W, cb), jnp.float32)
    for dy in range(3):
        lhs = xs_ref[dy:dy + TR, :, :].reshape(TR * Wp, cin)
        for dx in range(3):
            of = jnp.dot(lhs, w_ref[dy, dx, :, :],
                         preferred_element_type=jnp.float32)
            of = of.reshape(TR, Wp, cb)
            acc = acc + of[:, dx:dx + W, :]

    # bf16 conv tile (halves HBM traffic of the largest intermediate).
    y_ref[0] = acc.astype(y_ref.dtype)

    # Per-(image, row-tile) partial statistics in f32 (before the bf16 cast).
    s1_ref[...] = jnp.sum(acc, axis=(0, 1), keepdims=True).reshape(1, 1, 1, cb)
    s2_ref[...] = jnp.sum(acc * acc, axis=(0, 1),
                          keepdims=True).reshape(1, 1, 1, cb)


# ----------------------------------------------------------------------------
# Pass 2: per-channel affine (BN with batch stats) + ReLU, wide lane-dense tiles
# ----------------------------------------------------------------------------
def _bn_relu_kernel(y_ref, sc_ref, sh_ref, o_ref):
    # y_ref : (1, TR2, W, Cout_p) bf16 conv tile
    # sc/sh : (1, Cout_p)         f32 folded BN scale / shift
    # o_ref : (1, TR2, W, Cout_p) bf16 normalized + ReLU output tile
    c = sc_ref.shape[-1]
    y = y_ref[...].astype(jnp.float32)
    sc = sc_ref[...].reshape(1, 1, 1, c)
    sh = sh_ref[...].reshape(1, 1, 1, c)
    o_ref[...] = jnp.maximum(y * sc + sh, 0.0).astype(o_ref.dtype)


# ----------------------------------------------------------------------------
# One fused feature triple: Conv3x3(pad=1) -> BN(train) -> ReLU
# ----------------------------------------------------------------------------
def conv_bn_relu(x_nhwc, w_p, g_p, b_p, *, eps=1e-5):
    """x_nhwc: (N,H,W,Cin_p) bf16; w_p: (3,3,Cin_p,Cout_p) bf16; g/b: (1,Cout_p) f32."""
    N, H, W, cin_p = x_nhwc.shape
    cout_p = w_p.shape[-1]
    CB = _cout_block(cout_p)
    n_co = cout_p // CB
    TR = _pick_conv_row_tile(H, W, cin_p, CB)
    n_rt = H // TR
    Wp = _ceil_to(W + 2, 8)
    vmem_limit = _vmem_limit_bytes()

    conv_out, s1, s2 = pl.pallas_call(
        functools.partial(_conv_stats_kernel, TR=TR, W=W, Wp=Wp, n_rt=n_rt),
        grid=(N, n_rt, n_co),
        in_specs=[
            # main row tile
            pl.BlockSpec((1, TR, W, cin_p), lambda n, rt, co: (n, rt, 0, 0)),
            # single halo row above (clamped; masked to zero at rt == 0)
            pl.BlockSpec((1, 1, W, cin_p),
                         lambda n, rt, co: (n, jnp.maximum(rt * TR - 1, 0), 0, 0)),
            # single halo row below (clamped; masked to zero at the last tile)
            pl.BlockSpec((1, 1, W, cin_p),
                         lambda n, rt, co: (n, jnp.minimum((rt + 1) * TR, H - 1), 0, 0)),
            # weights, one Cout block
            pl.BlockSpec((3, 3, cin_p, CB), lambda n, rt, co: (0, 0, 0, co)),
        ],
        out_specs=(
            pl.BlockSpec((1, TR, W, CB), lambda n, rt, co: (n, rt, 0, co)),
            pl.BlockSpec((1, 1, 1, CB), lambda n, rt, co: (n, rt, 0, co)),
            pl.BlockSpec((1, 1, 1, CB), lambda n, rt, co: (n, rt, 0, co)),
        ),
        out_shape=(
            jax.ShapeDtypeStruct((N, H, W, cout_p), jnp.bfloat16),
            jax.ShapeDtypeStruct((N, n_rt, 1, cout_p), jnp.float32),
            jax.ShapeDtypeStruct((N, n_rt, 1, cout_p), jnp.float32),
        ),
        scratch_shapes=[pltpu.VMEM((TR + 2, Wp, cin_p), jnp.bfloat16)],
        compiler_params=pltpu.CompilerParams(
            dimension_semantics=("parallel", "parallel", "arbitrary"),
            vmem_limit_bytes=vmem_limit),
    )(x_nhwc, x_nhwc, x_nhwc, w_p)

    # Fold batch statistics into per-channel scale/shift once per layer
    # (tiny f32 ops on (1, Cout_p)); conv bias is omitted: a per-channel
    # constant cancels exactly under training-mode BatchNorm.
    count = float(N * H * W)
    s1t = jnp.sum(s1, axis=(0, 1))                 # (1, Cout_p)
    s2t = jnp.sum(s2, axis=(0, 1))
    mean = s1t / count
    var = jnp.maximum(s2t / count - mean * mean, 0.0)
    scale = g_p * jax.lax.rsqrt(var + eps)
    shift = b_p - mean * scale

    TR2 = _pick_bn_row_tile(H, W, cout_p)
    out = pl.pallas_call(
        _bn_relu_kernel,
        grid=(N, H // TR2),
        in_specs=[
            pl.BlockSpec((1, TR2, W, cout_p), lambda n, r: (n, r, 0, 0)),
            pl.BlockSpec((1, cout_p), lambda n, r: (0, 0)),
            pl.BlockSpec((1, cout_p), lambda n, r: (0, 0)),
        ],
        out_specs=pl.BlockSpec((1, TR2, W, cout_p), lambda n, r: (n, r, 0, 0)),
        out_shape=jax.ShapeDtypeStruct((N, H, W, cout_p), jnp.bfloat16),
        compiler_params=pltpu.CompilerParams(
            dimension_semantics=("parallel", "parallel"),
            vmem_limit_bytes=vmem_limit),
    )(conv_out, scale, shift)

    return out


# ----------------------------------------------------------------------------
# One-time parameter preparation (hoisted out of the forward pass)
# ----------------------------------------------------------------------------
def prepare_params(params):
    """Pad channels to 128-lane multiples, cast conv weights to bf16, keep BN
    gamma/beta as f32 (1, Cout_p) rows.  Conv bias is dropped: it cancels
    exactly under training-mode BatchNorm.  Returns [(w_p, g_p, b_p, cout)]."""
    prepared = []
    for (w, cb, g, b) in params:
        del cb
        _, _, cin, cout = w.shape
        cin_p = _ceil_to(cin, LANE)
        cout_p = _ceil_to(cout, LANE)
        w_p = jnp.pad(w, ((0, 0), (0, 0), (0, cin_p - cin),
                          (0, cout_p - cout))).astype(jnp.bfloat16)
        g_p = jnp.pad(g, (0, cout_p - cout)).reshape(1, cout_p).astype(jnp.float32)
        b_p = jnp.pad(b, (0, cout_p - cout)).reshape(1, cout_p).astype(jnp.float32)
        prepared.append((w_p, g_p, b_p, cout))
    return prepared


# ----------------------------------------------------------------------------
# VGG.forward: run all feature layers, collect activations at i = 2, 5, 8, ...
# ----------------------------------------------------------------------------
def vgg_forward(x_nchw, prepared_params, target_layer=11, collect_nchw=True):
    """Mirrors VGG.forward: returns the list of collected activations.

    collect_nchw=True returns NCHW f32 (PyTorch semantics); collect_nchw=False
    returns NHWC bf16 and skips the per-layer transpose/cast HBM traffic."""
    x = jnp.transpose(x_nchw, (0, 2, 3, 1)).astype(jnp.bfloat16)  # NCHW->NHWC
    cin = x.shape[-1]
    cin_p = _ceil_to(cin, LANE)
    if cin_p != cin:
        x = jnp.pad(x, ((0, 0), (0, 0), (0, 0), (0, cin_p - cin)))

    results = []
    activation = None            # VGG.activation (captured at target_layer)
    layer_idx = 0
    for (w_p, g_p, b_p, cout) in prepared_params:
        x = conv_bn_relu(x, w_p, g_p, b_p)          # (N, H, W, cout_p) bf16
        relu_idx = layer_idx + 2  # Conv = idx, BN = idx+1, ReLU = idx+2
        if relu_idx == target_layer:
            activation = x        # gradient hook: no forward effect
        if relu_idx in TARGET_INDICES:
            act = x[..., :cout]
            if collect_nchw:
                act = jnp.transpose(act.astype(jnp.float32), (0, 3, 1, 2))
            results.append(act)
        layer_idx += 3
    del activation  # TODO(synk): register_hook / gradients have no forward effect
    return results


# ----------------------------------------------------------------------------
# Deterministic parameter init (synthetic weights; no checkpoint)
# ----------------------------------------------------------------------------
def init_params(key, channels):
    params = []
    cin = channels[0]
    for cout in channels[1:]:
        key, k1, k2, k3, k4 = jax.random.split(key, 5)
        w = jax.random.normal(k1, (3, 3, cin, cout), jnp.float32) / jnp.sqrt(
            9.0 * cin)
        cb = 0.1 * jax.random.normal(k2, (cout,), jnp.float32)
        g = 1.0 + 0.1 * jax.random.normal(k3, (cout,), jnp.float32)
        b = 0.1 * jax.random.normal(k4, (cout,), jnp.float32)
        params.append((w, cb, g, b))
        cin = cout
    return params


# ----------------------------------------------------------------------------
# Pure-JAX reference for correctness (keeps the conv bias; it cancels under BN)
# ----------------------------------------------------------------------------
def _ref_block(x, w, cb, g, b, eps=1e-5):
    y = jax.lax.conv_general_dilated(
        x, w, window_strides=(1, 1), padding=((1, 1), (1, 1)),
        dimension_numbers=("NHWC", "HWIO", "NHWC"))
    y = y + cb
    mean = jnp.mean(y, axis=(0, 1, 2), keepdims=True)
    var = jnp.mean(jnp.square(y - mean), axis=(0, 1, 2), keepdims=True)
    y = (y - mean) * jax.lax.rsqrt(var + eps) * g + b
    return jnp.maximum(y, 0.0)


def vgg_forward_ref(x_nchw, params, target_layer=11):
    x = jnp.transpose(x_nchw, (0, 2, 3, 1))
    results = []
    layer_idx = 0
    for (w, cb, g, b) in params:
        x = _ref_block(x, w, cb, g, b)
        relu_idx = layer_idx + 2
        if relu_idx in TARGET_INDICES:
            results.append(jnp.transpose(x, (0, 3, 1, 2)))
        layer_idx += 3
    return results


if __name__ == "__main__":
    key = jax.random.PRNGKey(0)
    kx, kp = jax.random.split(key)

    # Small shapes: batch=2, in-channels=4, spatial=16x16 (NCHW like PyTorch).
    x = jax.random.normal(kx, (2, 4, 16, 16), jnp.float32)
    # 5 Conv-BN-ReLU triples -> feature indices 0..14, collected at 2,5,8,11,14.
    params = init_params(kp, [4, 8, 8, 16, 16, 16])

    # Round x / conv weights to bf16-representable values once so the Pallas
    # (bf16 MXU) path and the f32 XLA reference see identical parameters; the
    # remaining difference is bf16 storage of the conv intermediate and of the
    # inter-layer activations.
    def q(a):
        return a.astype(jnp.bfloat16).astype(jnp.float32)

    x_q = q(x)
    params_q = [(q(w), cb, g, b) for (w, cb, g, b) in params]

    prepared = prepare_params(params_q)   # one-time: pad + bf16 cast, hoisted

    outs = vgg_forward(x_q, prepared, target_layer=11)
    outs = [jax.block_until_ready(o) for o in outs]

    refs = vgg_forward_ref(x_q, params_q, target_layer=11)
    assert len(outs) == len(refs) == 5
    for o, r in zip(outs, refs):
        assert o.shape == r.shape and o.dtype == r.dtype
        # bf16 conv intermediate + bf16 inter-layer activations vs f32 ref.
        if not jnp.allclose(o, r, atol=7e-2, rtol=7e-2):
            raise AssertionError("Pallas VGG output mismatch vs JAX reference")

    print("KERNEL_OK")
</pallas_src>

<mosaic_0001>
module attributes {stable_mosaic.version = 11 : i64} {
  func.func @_conv_stats_kernel(%arg0: i32, %arg1: i32, %arg2: i32, %arg3: memref<1x8x16x128xbf16, #tpu.memory_space<vmem>>, %arg4: memref<1x1x16x128xbf16, #tpu.memory_space<vmem>>, %arg5: memref<1x1x16x128xbf16, #tpu.memory_space<vmem>>, %arg6: memref<3x3x128x128xbf16, #tpu.memory_space<vmem>>, %arg7: memref<1x8x16x128xbf16, #tpu.memory_space<vmem>>, %arg8: memref<1x1x1x128xf32, #tpu.memory_space<vmem>>, %arg9: memref<1x1x1x128xf32, #tpu.memory_space<vmem>>, %arg10: memref<10x24x128xbf16, #tpu.memory_space<vmem>>) attributes {dimension_semantics = [#tpu.dimension_semantics<parallel>, #tpu.dimension_semantics<parallel>, #tpu.dimension_semantics<arbitrary>], iteration_bounds = array<i64: 2, 2, 1>, scalar_prefetch = 0 : i64, scratch_operands = 1 : i64, tpu.core_type = #tpu.core_type<tc>, window_params = [{transform_indices = @transform_0, window_bounds = array<i64: 1, 8, 16, 128>}, {transform_indices = @transform_1, window_bounds = array<i64: 1, 1, 16, 128>}, {transform_indices = @transform_2, window_bounds = array<i64: 1, 1, 16, 128>}, {transform_indices = @transform_3, window_bounds = array<i64: 3, 3, 128, 128>}, {transform_indices = @transform_4, window_bounds = array<i64: 1, 8, 16, 128>}, {transform_indices = @transform_5, window_bounds = array<i64: 1, 1, 1, 128>}, {transform_indices = @transform_6, window_bounds = array<i64: 1, 1, 1, 128>}]} {
    %c0_i32 = arith.constant 0 : i32
    %0 = arith.cmpi eq, %arg2, %c0_i32 : i32
    %1 = arith.extui %0 : i1 to i32
    %c0_i32_0 = arith.constant 0 : i32
    %2 = arith.cmpi ne, %1, %c0_i32_0 : i32
    scf.if %2 {
      %cst_66 = arith.constant 0.000000e+00 : bf16
      %77 = vector.broadcast %cst_66 : bf16 to vector<10x1x128xbf16>
      %c0_67 = arith.constant 0 : index
      %c0_68 = arith.constant 0 : index
      %c0_69 = arith.constant 0 : index
      %78 = vector.load %arg10[%c0_67, %c0_68, %c0_69] : memref<10x24x128xbf16, #tpu.memory_space<vmem>>, vector<10x1x128xbf16>
      tpu.vector_store %arg10[%c0_67, %c0_68, %c0_69], %77 {strides = array<i32>} : memref<10x24x128xbf16, #tpu.memory_space<vmem>>, vector<10x1x128xbf16>,
      %cst_70 = arith.constant 0.000000e+00 : bf16
      %79 = vector.broadcast %cst_70 : bf16 to vector<10x7x128xbf16>
      %c0_71 = arith.constant 0 : index
      %c17 = arith.constant 17 : index
      %c0_72 = arith.constant 0 : index
      %80 = vector.load %arg10[%c0_71, %c17, %c0_72] : memref<10x24x128xbf16, #tpu.memory_space<vmem>>, vector<10x7x128xbf16>
      tpu.vector_store %arg10[%c0_71, %c17, %c0_72], %79 {strides = array<i32>} : memref<10x24x128xbf16, #tpu.memory_space<vmem>>, vector<10x7x128xbf16>,
      %c0_73 = arith.constant 0 : index
      %c0_74 = arith.constant 0 : index
      %c0_75 = arith.constant 0 : index
      %c0_76 = arith.constant 0 : index
      %81 = vector.load %arg3[%c0_73, %c0_74, %c0_75, %c0_76] : memref<1x8x16x128xbf16, #tpu.memory_space<vmem>>, vector<1x8x16x128xbf16>
      %82 = vector.shape_cast %81 : vector<1x8x16x128xbf16> to vector<8x16x128xbf16>
      %c1_77 = arith.constant 1 : index
      %c1_78 = arith.constant 1 : index
      %c0_79 = arith.constant 0 : index
      %83 = vector.load %arg10[%c1_77, %c1_78, %c0_79] : memref<10x24x128xbf16, #tpu.memory_space<vmem>>, vector<8x16x128xbf16>
      tpu.vector_store %arg10[%c1_77, %c1_78, %c0_79], %82 {strides = array<i32>} : memref<10x24x128xbf16, #tpu.memory_space<vmem>>, vector<8x16x128xbf16>,
      %c0_80 = arith.constant 0 : index
      %c0_81 = arith.constant 0 : index
      %c0_82 = arith.constant 0 : index
      %c0_83 = arith.constant 0 : index
      %84 = vector.load %arg4[%c0_80, %c0_81, %c0_82, %c0_83] : memref<1x1x16x128xbf16, #tpu.memory_space<vmem>>, vector<1x1x16x128xbf16>
      %85 = vector.shape_cast %84 : vector<1x1x16x128xbf16> to vector<1x16x128xbf16>
      %c0_i32_84 = arith.constant 0 : i32
      %86 = arith.cmpi eq, %arg1, %c0_i32_84 : i32
      %cst_85 = arith.constant 0.000000e+00 : bf16
      %87 = vector.broadcast %cst_85 : bf16 to vector<1x16x128xbf16>
      %88 = arith.select %86, %87, %85 : vector<1x16x128xbf16>
      %c0_86 = arith.constant 0 : index
      %c1_87 = arith.constant 1 : index
      %c0_88 = arith.constant 0 : index
      %89 = vector.load %arg10[%c0_86, %c1_87, %c0_88] : memref<10x24x128xbf16, #tpu.memory_space<vmem>>, vector<1x16x128xbf16>
      tpu.vector_store %arg10[%c0_86, %c1_87, %c0_88], %88 {strides = array<i32>} : memref<10x24x128xbf16, #tpu.memory_space<vmem>>, vector<1x16x128xbf16>,
      %c0_89 = arith.constant 0 : index
      %c0_90 = arith.constant 0 : index
      %c0_91 = arith.constant 0 : index
      %c0_92 = arith.constant 0 : index
      %90 = vector.load %arg5[%c0_89, %c0_90, %c0_91, %c0_92] : memref<1x1x16x128xbf16, #tpu.memory_space<vmem>>, vector<1x1x16x128xbf16>
      %91 = vector.shape_cast %90 : vector<1x1x16x128xbf16> to vector<1x16x128xbf16>
      %c1_i32 = arith.constant 1 : i32
      %92 = arith.cmpi eq, %arg1, %c1_i32 : i32
      %cst_93 = arith.constant 0.000000e+00 : bf16
      %93 = vector.broadcast %cst_93 : bf16 to vector<1x16x128xbf16>
      %94 = arith.select %92, %93, %91 : vector<1x16x128xbf16>
      %c9 = arith.constant 9 : index
      %c1_94 = arith.constant 1 : index
      %c0_95 = arith.constant 0 : index
      %95 = vector.load %arg10[%c9, %c1_94, %c0_95] : memref<10x24x128xbf16, #tpu.memory_space<vmem>>, vector<1x16x128xbf16>
      tpu.vector_store %arg10[%c9, %c1_94, %c0_95], %94 {strides = array<i32>} : memref<10x24x128xbf16, #tpu.memory_space<vmem>>, vector<1x16x128xbf16>,
    } else {
    }
    %cst = arith.constant 0.000000e+00 : f32
    %3 = vector.broadcast %cst : f32 to vector<8x16x128xf32>
    %c0 = arith.constant 0 : index
    %c0_1 = arith.constant 0 : index
    %c0_2 = arith.constant 0 : index
    %4 = vector.load %arg10[%c0, %c0_1, %c0_2] : memref<10x24x128xbf16, #tpu.memory_space<vmem>>, vector<8x24x128xbf16>
    %5 = vector.shape_cast %4 : vector<8x24x128xbf16> to vector<192x128xbf16>
    %c0_3 = arith.constant 0 : index
    %c0_4 = arith.constant 0 : index
    %c0_5 = arith.constant 0 : index
    %c0_6 = arith.constant 0 : index
    %6 = vector.load %arg6[%c0_3, %c0_4, %c0_5, %c0_6] : memref<3x3x128x128xbf16, #tpu.memory_space<vmem>>, vector<1x1x128x128xbf16>
    %7 = vector.shape_cast %6 : vector<1x1x128x128xbf16> to vector<128x128xbf16>
    %cst_7 = arith.constant dense<0.000000e+00> : vector<192x128xf32>
    %8 = tpu.matmul %5, %7, %cst_7 {dimension_numbers = #tpu.dot_dimension_numbers<[1], [0], [0], [1], [0, 0, 1, 1], [], []>} : vector<192x128xbf16>, vector<128x128xbf16>, vector<192x128xf32> -> vector<192x128xf32>
    %9 = vector.shape_cast %8 : vector<192x128xf32> to vector<8x24x128xf32>
    %10 = vector.extract_strided_slice %9 {offsets = [0, 0, 0], sizes = [8, 16, 128], strides = [1, 1, 1]} : vector<8x24x128xf32> to vector<8x16x128xf32>
    %11 = arith.addf %3, %10 : vector<8x16x128xf32>
    %c0_8 = arith.constant 0 : index
    %c1 = arith.constant 1 : index
    %c0_9 = arith.constant 0 : index
    %c0_10 = arith.constant 0 : index
    %12 = vector.load %arg6[%c0_8, %c1, %c0_9, %c0_10] : memref<3x3x128x128xbf16, #tpu.memory_space<vmem>>, vector<1x1x128x128xbf16>
    %13 = vector.shape_cast %12 : vector<1x1x128x128xbf16> to vector<128x128xbf16>
    %cst_11 = arith.constant dense<0.000000e+00> : vector<192x128xf32>
    %14 = tpu.matmul %5, %13, %cst_11 {dimension_numbers = #tpu.dot_dimension_numbers<[1], [0], [0], [1], [0, 0, 1, 1], [], []>} : vector<192x128xbf16>, vector<128x128xbf16>, vector<192x128xf32> -> vector<192x128xf32>
    %15 = vector.shape_cast %14 : vector<192x128xf32> to vector<8x24x128xf32>
    %16 = vector.extract_strided_slice %15 {offsets = [0, 1, 0], sizes = [8, 16, 128], strides = [1, 1, 1]} : vector<8x24x128xf32> to vector<8x16x128xf32>
    %17 = arith.addf %11, %16 : vector<8x16x128xf32>
    %c0_12 = arith.constant 0 : index
    %c2 = arith.constant 2 : index
    %c0_13 = arith.constant 0 : index
    %c0_14 = arith.constant 0 : index
    %18 = vector.load %arg6[%c0_12, %c2, %c0_13, %c0_14] : memref<3x3x128x128xbf16, #tpu.memory_space<vmem>>, vector<1x1x128x128xbf16>
    %19 = vector.shape_cast %18 : vector<1x1x128x128xbf16> to vector<128x128xbf16>
    %cst_15 = arith.constant dense<0.000000e+00> : vector<192x128xf32>
    %20 = tpu.matmul %5, %19, %cst_15 {dimension_numbers = #tpu.dot_dimension_numbers<[1], [0], [0], [1], [0, 0, 1, 1], [], []>} : vector<192x128xbf16>, vector<128x128xbf16>, vector<192x128xf32> -> vector<192x128xf32>
    %21 = vector.shape_cast %20 : vector<192x128xf32> to vector<8x24x128xf32>
    %22 = vector.extract_strided_slice %21 {offsets = [0, 2, 0], sizes = [8, 16, 128], strides = [1, 1, 1]} : vector<8x24x128xf32> to vector<8x16x128xf32>
    %23 = arith.addf %17, %22 : vector<8x16x128xf32>
    %c1_16 = arith.constant 1 : index
    %c0_17 = arith.constant 0 : index
    %c0_18 = arith.constant 0 : index
    %24 = vector.load %arg10[%c1_16, %c0_17, %c0_18] : memref<10x24x128xbf16, #tpu.memory_space<vmem>>, vector<8x24x128xbf16>
    %25 = vector.shape_cast %24 : vector<8x24x128xbf16> to vector<192x128xbf16>
    %c1_19 = arith.constant 1 : index
    %c0_20 = arith.constant 0 : index
    %c0_21 = arith.constant 0 : index
    %c0_22 = arith.constant 0 : index
    %26 = vector.load %arg6[%c1_19, %c0_20, %c0_21, %c0_22] : memref<3x3x128x128xbf16, #tpu.memory_space<vmem>>, vector<1x1x128x128xbf16>
    %27 = vector.shape_cast %26 : vector<1x1x128x128xbf16> to vector<128x128xbf16>
    %cst_23 = arith.constant dense<0.000000e+00> : vector<192x128xf32>
    %28 = tpu.matmul %25, %27, %cst_23 {dimension_numbers = #tpu.dot_dimension_numbers<[1], [0], [0], [1], [0, 0, 1, 1], [], []>} : vector<192x128xbf16>, vector<128x128xbf16>, vector<192x128xf32> -> vector<192x128xf32>
    %29 = vector.shape_cast %28 : vector<192x128xf32> to vector<8x24x128xf32>
    %30 = vector.extract_strided_slice %29 {offsets = [0, 0, 0], sizes = [8, 16, 128], strides = [1, 1, 1]} : vector<8x24x128xf32> to vector<8x16x128xf32>
    %31 = arith.addf %23, %30 : vector<8x16x128xf32>
    %c1_24 = arith.constant 1 : index
    %c1_25 = arith.constant 1 : index
    %c0_26 = arith.constant 0 : index
    %c0_27 = arith.constant 0 : index
    %32 = vector.load %arg6[%c1_24, %c1_25, %c0_26, %c0_27] : memref<3x3x128x128xbf16, #tpu.memory_space<vmem>>, vector<1x1x128x128xbf16>
    %33 = vector.shape_cast %32 : vector<1x1x128x128xbf16> to vector<128x128xbf16>
    %cst_28 = arith.constant dense<0.000000e+00> : vector<192x128xf32>
    %34 = tpu.matmul %25, %33, %cst_28 {dimension_numbers = #tpu.dot_dimension_numbers<[1], [0], [0], [1], [0, 0, 1, 1], [], []>} : vector<192x128xbf16>, vector<128x128xbf16>, vector<192x128xf32> -> vector<192x128xf32>
    %35 = vector.shape_cast %34 : vector<192x128xf32> to vector<8x24x128xf32>
    %36 = vector.extract_strided_slice %35 {offsets = [0, 1, 0], sizes = [8, 16, 128], strides = [1, 1, 1]} : vector<8x24x128xf32> to vector<8x16x128xf32>
    %37 = arith.addf %31, %36 : vector<8x16x128xf32>
    %c1_29 = arith.constant 1 : index
    %c2_30 = arith.constant 2 : index
    %c0_31 = arith.constant 0 : index
    %c0_32 = arith.constant 0 : index
    %38 = vector.load %arg6[%c1_29, %c2_30, %c0_31, %c0_32] : memref<3x3x128x128xbf16, #tpu.memory_space<vmem>>, vector<1x1x128x128xbf16>
    %39 = vector.shape_cast %38 : vector<1x1x128x128xbf16> to vector<128x128xbf16>
    %cst_33 = arith.constant dense<0.000000e+00> : vector<192x128xf32>
    %40 = tpu.matmul %25, %39, %cst_33 {dimension_numbers = #tpu.dot_dimension_numbers<[1], [0], [0], [1], [0, 0, 1, 1], [], []>} : vector<192x128xbf16>, vector<128x128xbf16>, vector<192x128xf32> -> vector<192x128xf32>
    %41 = vector.shape_cast %40 : vector<192x128xf32> to vector<8x24x128xf32>
    %42 = vector.extract_strided_slice %41 {offsets = [0, 2, 0], sizes = [8, 16, 128], strides = [1, 1, 1]} : vector<8x24x128xf32> to vector<8x16x128xf32>
    %43 = arith.addf %37, %42 : vector<8x16x128xf32>
    %c2_34 = arith.constant 2 : index
    %c0_35 = arith.constant 0 : index
    %c0_36 = arith.constant 0 : index
    %44 = vector.load %arg10[%c2_34, %c0_35, %c0_36] : memref<10x24x128xbf16, #tpu.memory_space<vmem>>, vector<8x24x128xbf16>
    %45 = vector.shape_cast %44 : vector<8x24x128xbf16> to vector<192x128xbf16>
    %c2_37 = arith.constant 2 : index
    %c0_38 = arith.constant 0 : index
    %c0_39 = arith.constant 0 : index
    %c0_40 = arith.constant 0 : index
    %46 = vector.load %arg6[%c2_37, %c0_38, %c0_39, %c0_40] : memref<3x3x128x128xbf16, #tpu.memory_space<vmem>>, vector<1x1x128x128xbf16>
    %47 = vector.shape_cast %46 : vector<1x1x128x128xbf16> to vector<128x128xbf16>
    %cst_41 = arith.constant dense<0.000000e+00> : vector<192x128xf32>
    %48 = tpu.matmul %45, %47, %cst_41 {dimension_numbers = #tpu.dot_dimension_numbers<[1], [0], [0], [1], [0, 0, 1, 1], [], []>} : vector<192x128xbf16>, vector<128x128xbf16>, vector<192x128xf32> -> vector<192x128xf32>
    %49 = vector.shape_cast %48 : vector<192x128xf32> to vector<8x24x128xf32>
    %50 = vector.extract_strided_slice %49 {offsets = [0, 0, 0], sizes = [8, 16, 128], strides = [1, 1, 1]} : vector<8x24x128xf32> to vector<8x16x128xf32>
    %51 = arith.addf %43, %50 : vector<8x16x128xf32>
    %c2_42 = arith.constant 2 : index
    %c1_43 = arith.constant 1 : index
    %c0_44 = arith.constant 0 : index
    %c0_45 = arith.constant 0 : index
    %52 = vector.load %arg6[%c2_42, %c1_43, %c0_44, %c0_45] : memref<3x3x128x128xbf16, #tpu.memory_space<vmem>>, vector<1x1x128x128xbf16>
    %53 = vector.shape_cast %52 : vector<1x1x128x128xbf16> to vector<128x128xbf16>
    %cst_46 = arith.constant dense<0.000000e+00> : vector<192x128xf32>
    %54 = tpu.matmul %45, %53, %cst_46 {dimension_numbers = #tpu.dot_dimension_numbers<[1], [0], [0], [1], [0, 0, 1, 1], [], []>} : vector<192x128xbf16>, vector<128x128xbf16>, vector<192x128xf32> -> vector<192x128xf32>
    %55 = vector.shape_cast %54 : vector<192x128xf32> to vector<8x24x128xf32>
    %56 = vector.extract_strided_slice %55 {offsets = [0, 1, 0], sizes = [8, 16, 128], strides = [1, 1, 1]} : vector<8x24x128xf32> to vector<8x16x128xf32>
    %57 = arith.addf %51, %56 : vector<8x16x128xf32>
    %c2_47 = arith.constant 2 : index
    %c2_48 = arith.constant 2 : index
    %c0_49 = arith.constant 0 : index
    %c0_50 = arith.constant 0 : index
    %58 = vector.load %arg6[%c2_47, %c2_48, %c0_49, %c0_50] : memref<3x3x128x128xbf16, #tpu.memory_space<vmem>>, vector<1x1x128x128xbf16>
    %59 = vector.shape_cast %58 : vector<1x1x128x128xbf16> to vector<128x128xbf16>
    %cst_51 = arith.constant dense<0.000000e+00> : vector<192x128xf32>
    %60 = tpu.matmul %45, %59, %cst_51 {dimension_numbers = #tpu.dot_dimension_numbers<[1], [0], [0], [1], [0, 0, 1, 1], [], []>} : vector<192x128xbf16>, vector<128x128xbf16>, vector<192x128xf32> -> vector<192x128xf32>
    %61 = vector.shape_cast %60 : vector<192x128xf32> to vector<8x24x128xf32>
    %62 = vector.extract_strided_slice %61 {offsets = [0, 2, 0], sizes = [8, 16, 128], strides = [1, 1, 1]} : vector<8x24x128xf32> to vector<8x16x128xf32>
    %63 = arith.addf %57, %62 : vector<8x16x128xf32>
    %64 = arith.truncf %63 : vector<8x16x128xf32> to vector<8x16x128xbf16>
    %c0_52 = arith.constant 0 : index
    %c0_53 = arith.constant 0 : index
    %c0_54 = arith.constant 0 : index
    %c0_55 = arith.constant 0 : index
    %65 = vector.load %arg7[%c0_52, %c0_53, %c0_54, %c0_55] : memref<1x8x16x128xbf16, #tpu.memory_space<vmem>>, vector<1x8x16x128xbf16>
    %66 = vector.shape_cast %65 : vector<1x8x16x128xbf16> to vector<8x16x128xbf16>
    %67 = vector.shape_cast %64 : vector<8x16x128xbf16> to vector<1x8x16x128xbf16>
    tpu.vector_store %arg7[%c0_52, %c0_53, %c0_54, %c0_55], %67 {strides = array<i32>} : memref<1x8x16x128xbf16, #tpu.memory_space<vmem>>, vector<1x8x16x128xbf16>,
    %cst_56 = arith.constant dense<0.000000e+00> : vector<128xf32>
    %68 = vector.multi_reduction <add>, %63, %cst_56 [0, 1] : vector<8x16x128xf32> to vector<128xf32>
    %69 = vector.shape_cast %68 : vector<128xf32> to vector<1x1x128xf32>
    %70 = vector.shape_cast %69 : vector<1x1x128xf32> to vector<1x1x1x128xf32>
    %c0_57 = arith.constant 0 : index
    %c0_58 = arith.constant 0 : index
    %c0_59 = arith.constant 0 : index
    %c0_60 = arith.constant 0 : index
    %71 = vector.load %arg8[%c0_57, %c0_58, %c0_59, %c0_60] : memref<1x1x1x128xf32, #tpu.memory_space<vmem>>, vector<1x1x1x128xf32>
    tpu.vector_store %arg8[%c0_57, %c0_58, %c0_59, %c0_60], %70 {strides = array<i32>} : memref<1x1x1x128xf32, #tpu.memory_space<vmem>>, vector<1x1x1x128xf32>,
    %72 = arith.mulf %63, %63 : vector<8x16x128xf32>
    %cst_61 = arith.constant dense<0.000000e+00> : vector<128xf32>
    %73 = vector.multi_reduction <add>, %72, %cst_61 [0, 1] : vector<8x16x128xf32> to vector<128xf32>
    %74 = vector.shape_cast %73 : vector<128xf32> to vector<1x1x128xf32>
    %75 = vector.shape_cast %74 : vector<1x1x128xf32> to vector<1x1x1x128xf32>
    %c0_62 = arith.constant 0 : index
    %c0_63 = arith.constant 0 : index
    %c0_64 = arith.constant 0 : index
    %c0_65 = arith.constant 0 : index
    %76 = vector.load %arg9[%c0_62, %c0_63, %c0_64, %c0_65] : memref<1x1x1x128xf32, #tpu.memory_space<vmem>>, vector<1x1x1x128xf32>
    tpu.vector_store %arg9[%c0_62, %c0_63, %c0_64, %c0_65], %75 {strides = array<i32>} : memref<1x1x1x128xf32, #tpu.memory_space<vmem>>, vector<1x1x1x128xf32>,
    return
  }
  func.func @transform_0(%arg0: i32, %arg1: i32, %arg2: i32) -> (i32, i32, i32, i32) {
    %c0_i32 = arith.constant 0 : i32
    %c0_i32_0 = arith.constant 0 : i32
    %c0_i32_1 = arith.constant 0 : i32
    return %arg0, %arg1, %c0_i32, %c0_i32_0 : i32, i32, i32, i32
  }
  func.func @transform_1(%arg0: i32, %arg1: i32, %arg2: i32) -> (i32, i32, i32, i32) {
    %c8_i32 = arith.constant 8 : i32
    %0 = arith.muli %arg1, %c8_i32 : i32
    %c1_i32 = arith.constant 1 : i32
    %1 = arith.subi %0, %c1_i32 : i32
    %c0_i32 = arith.constant 0 : i32
    %2 = arith.maxsi %1, %c0_i32 : i32
    %c0_i32_0 = arith.constant 0 : i32
    %c0_i32_1 = arith.constant 0 : i32
    %c0_i32_2 = arith.constant 0 : i32
    return %arg0, %2, %c0_i32_0, %c0_i32_1 : i32, i32, i32, i32
  }
  func.func @transform_2(%arg0: i32, %arg1: i32, %arg2: i32) -> (i32, i32, i32, i32) {
    %c1_i32 = arith.constant 1 : i32
    %0 = arith.addi %arg1, %c1_i32 : i32
    %c8_i32 = arith.constant 8 : i32
    %1 = arith.muli %0, %c8_i32 : i32
    %c15_i32 = arith.constant 15 : i32
    %2 = arith.minsi %1, %c15_i32 : i32
    %c0_i32 = arith.constant 0 : i32
    %c0_i32_0 = arith.constant 0 : i32
    %c0_i32_1 = arith.constant 0 : i32
    return %arg0, %2, %c0_i32, %c0_i32_0 : i32, i32, i32, i32
  }
  func.func @transform_3(%arg0: i32, %arg1: i32, %arg2: i32) -> (i32, i32, i32, i32) {
    %c0_i32 = arith.constant 0 : i32
    %c0_i32_0 = arith.constant 0 : i32
    %c0_i32_1 = arith.constant 0 : i32
    %c0_i32_2 = arith.constant 0 : i32
    return %c0_i32, %c0_i32_0, %c0_i32_1, %arg2 : i32, i32, i32, i32
  }
  func.func @transform_4(%arg0: i32, %arg1: i32, %arg2: i32) -> (i32, i32, i32, i32) {
    %c0_i32 = arith.constant 0 : i32
    %c0_i32_0 = arith.constant 0 : i32
    return %arg0, %arg1, %c0_i32, %arg2 : i32, i32, i32, i32
  }
  func.func @transform_5(%arg0: i32, %arg1: i32, %arg2: i32) -> (i32, i32, i32, i32) {
    %c0_i32 = arith.constant 0 : i32
    %c0_i32_0 = arith.constant 0 : i32
    return %arg0, %arg1, %c0_i32, %arg2 : i32, i32, i32, i32
  }
  func.func @transform_6(%arg0: i32, %arg1: i32, %arg2: i32) -> (i32, i32, i32, i32) {
    %c0_i32 = arith.constant 0 : i32
    %c0_i32_0 = arith.constant 0 : i32
    return %arg0, %arg1, %c0_i32, %arg2 : i32, i32, i32, i32
  }
}

</mosaic_0001>

<llo_original>
// kernel: tpu_custom_call.1
$region0: #{tpu_custom_call.1}
  #allocation0 [shape = 'u32[]', space=smem, size = 0x4, offset = 0x4, fixed_abs, tag = 'smem constant byte address 0x4 - core index']
  #allocation1 [shape = 'u32[144,128]{1,0:T(1,128)}', space=vmem, size = 0x12000, scoped, tag = 'internal scratch']
  #allocation2 [shape = 'bf16[10,24,128]{2,1,0:T(8,128)(2,1)}', space=vmem, size = 0xf000, scoped, tag = 'scratch operand']
  %s0 = inlined_call_operand.hbm [shape: bf16[2,16,16,128], index: 0, kind: input, shape index: {}]
  %s1 = inlined_call_operand.hbm [shape: bf16[2,16,16,128], index: 1, kind: input, shape index: {}]
  %s2 = inlined_call_operand.hbm [shape: bf16[2,16,16,128], index: 2, kind: input, shape index: {}]
  %s3 = inlined_call_operand.hbm [shape: bf16[3,3,128,128], index: 3, kind: input, shape index: {}]
  %s4 = inlined_call_operand.hbm [shape: bf16[2,16,16,128], index: 4, kind: output, shape index: {0}]
  %s5 = inlined_call_operand.hbm [shape: f32[2,2,1,128], index: 5, kind: output, shape index: {1}]
  %s6 = inlined_call_operand.hbm [shape: f32[2,2,1,128], index: 6, kind: output, shape index: {2}]
  %7 = xla_tuple %s4, %s5, %s6
  %s8 = sld [smem:[#allocation0]]
  $region85: #{tpu_custom_call.1} parent=0
    _
  %s10 = ssub.s32 1, %s8
  %s11 = scalar_select 0, %s10, %s8
  $region1: #{tpu_custom_call.1} parent=0
    #allocation3 [shape = 'u8[65536]{0}', space=vmem, size = 0x10000, scoped, tag = 'input window, operand 0']
    #allocation4 [shape = 's32[2]{0}', space=sflag, size = 0x8, scoped, tag = 'scoped memory for tpu_custom_call.1']
    #allocation5 [shape = 's32[2]{0}', space=sflag, size = 0x8, scoped, tag = 'scoped memory for tpu_custom_call.1']
    #allocation6 [shape = 'u8[8192]{0}', space=vmem, size = 0x2000, scoped, tag = 'input window, operand 1']
    #allocation7 [shape = 's32[2]{0}', space=sflag, size = 0x8, scoped, tag = 'scoped memory for tpu_custom_call.1']
    #allocation8 [shape = 'u8[8192]{0}', space=vmem, size = 0x2000, scoped, tag = 'input window, operand 2']
    #allocation9 [shape = 'u8[294912]{0}', space=vmem, size = 0x48000, scoped, tag = 'input window, operand 3, single buffered']
    #allocation10 [shape = 's32[1]{0}', space=sflag, size = 0x4, scoped, tag = 'scoped memory for tpu_custom_call.1']
    #allocation11 [shape = 'u8[65536]{0}', space=vmem, size = 0x10000, scoped, tag = 'output window, operand 0']
    #allocation12 [shape = 'u8[1024]{0}', space=vmem, size = 0x400, scoped, tag = 'output window, operand 1']
    #allocation13 [shape = 's32[2]{0}', space=sflag, size = 0x8, scoped, tag = 'scoped memory for tpu_custom_call.1']
    #allocation14 [shape = 'u8[1024]{0}', space=vmem, size = 0x400, scoped, tag = 'output window, operand 2']
    %12 = vsyncpa [#allocation4], 0
    %s13 = scalar_lea.sflag [#allocation4], 1
    %14 = vsyncpa %s13, 0
    %15 = vsyncpa [#allocation7], 0
    %s16 = scalar_lea.sflag [#allocation7], 1
    %17 = vsyncpa %s16, 0
    %18 = vsyncpa [#allocation10], 0
    %19 = vsyncpa [#allocation5], 0
    %s20 = scalar_lea.sflag [#allocation5], 1
    %21 = vsyncpa %s20, 0
    %22 = vsyncpa [#allocation13], 0
    %s23 = scalar_lea.sflag [#allocation13], 1
    %24 = vsyncpa %s23, 0
    loop: start=0, step=1, limit=6
    $region2: #{tpu_custom_call.1} parent=1 // loop_pre_header
      _
    $region3: #{tpu_custom_call.1} parent=1 // loop_header
      %s26 = sphi 0, %s30
      %p27 = scmp.ge.s32.totalorder %s26, 6
      %s33 = sphi 0, %s52
      %s34 = sphi 0, %s48
      %s35 = sphi 0, %s44
      %s36 = sphi 0, %s33
      %s37 = sphi 0, %s34
      %s38 = sphi 0, %s35
      %s39 = sphi 0, %s36
      %s40 = sphi 0, %s37
      %s41 = sphi 0, %s38
      %s57 = sphi 0, %s59
      %s60 = sphi 0, %s57
      %s61 = sphi 0, %s60
      %s77 = sphi 0, %s61
      %s93 = sphi 0, %s95
      %s96 = sphi 0, %s93
      %s97 = sphi 0, %s96
      %s113 = sphi 0, %s97
      %s129 = sphi 0, %s131
      %s132 = sphi 0, %s129
      %s133 = sphi 0, %s132
      %s149 = sphi 0, %s133
      %s155 = sphi 0, %s157
      %s158 = sphi 0, %s155
      %s159 = sphi 0, %s158
      %s175 = sphi 0, %s159
      %s185 = sphi 0, %s187
      %s188 = sphi 0, %s185
      %s189 = sphi 0, %s188
      %s205 = sphi 0, %s189
      %s215 = sphi 0, %s217
      %s218 = sphi 0, %s215
      %s219 = sphi 0, %s218
      %s235 = sphi 0, %s219
      %s245 = sphi 0, %s247
      %s248 = sphi 0, %s245
      %s249 = sphi 0, %s248
      %s265 = sphi 0, %s249
    $region4: #{tpu_custom_call.1} parent=1 // loop_header_branch
      %29 = sbr.rel (%p27) target = $region8
    $region5: #{tpu_custom_call.1} parent=1 // loop_body
      %s31 = ssub.s32 %s26, 1
      %s32 = ssub.s32 %s26, 2
      %s42 = sadd.s32 1, %s35
      %p43 = scmp.ge.s32.totalorder %s42, 1
      %s44 = scalar_select %p43, 0, %s42
      %s45 = sadd.s32 1, %s34
      %s46 = scalar_select %p43, %s45, %s34
      %p47 = scmp.ge.s32.totalorder %s46, 2
      %s48 = scalar_select %p47, 0, %s46
      %s49 = sadd.s32 1, %s33
      %s50 = scalar_select %p47, %s49, %s33
      %p51 = scmp.ge.s32.totalorder %s50, 2
      %s52 = scalar_select %p51, 0, %s50
      %s53 = ssub.s32 %s33, %s52
      %s54 = ssub.s32 %s34, %s48
      %s55 = sor.u32 %s53, %s54
      %p56 = scmp.eq.s32.totalorder %s55, 0
      %s58 = sadd.s32 %s57, 1
      %s59 = scalar_select %p56, %s57, %s58
      %p62 = pneg %p56
      %p63 = scmp.eq.s32.totalorder %s26, 3
      %p64 = por %p62, %p63
      %p65 = scmp.ne.s32.totalorder %s57, %s60
      %p66 = scmp.eq.s32.totalorder %s26, 0
      %p67 = por %p65, %p66
      %p68 = scmp.ne.s32.totalorder %s57, %s60
      %p69 = scmp.eq.s32.totalorder %s31, 3
      %p70 = por %p68, %p69
      %p71 = scmp.ne.s32.totalorder %s60, %s61
      %p72 = scmp.eq.s32.totalorder %s31, 0
      %p73 = por %p71, %p72
      %p74 = scmp.ne.s32.totalorder %s60, %s61
      %p75 = scmp.eq.s32.totalorder %s32, 3
      %p76 = por %p74, %p75
      %p78 = scmp.ne.s32.totalorder %s61, %s77
      %p79 = scmp.eq.s32.totalorder %s32, 0
      %p80 = por %p78, %p79
      %s81 = smul.u32 %s34, 8
      %s82 = ssub.s32 %s81, 1
      %p83 = scmp.gt.s32.totalorder %s82, 0
      %s84 = scalar_select %p83, %s82, 0
      %s85 = smul.u32 %s48, 8
      %s86 = ssub.s32 %s85, 1
      %p87 = scmp.gt.s32.totalorder %s86, 0
      %s88 = scalar_select %p87, %s86, 0
      %s89 = ssub.s32 %s33, %s52
      %s90 = ssub.s32 %s84, %s88
      %s91 = sor.u32 %s89, %s90
      %p92 = scmp.eq.s32.totalorder %s91, 0
      %s94 = sadd.s32 %s93, 1
      %s95 = scalar_select %p92, %s93, %s94
      %p98 = pneg %p92
      %p99 = scmp.eq.s32.totalorder %s26, 3
      %p100 = por %p98, %p99
      %p101 = scmp.ne.s32.totalorder %s93, %s96
      %p102 = scmp.eq.s32.totalorder %s26, 0
      %p103 = por %p101, %p102
      %p104 = scmp.ne.s32.totalorder %s93, %s96
      %p105 = scmp.eq.s32.totalorder %s31, 3
      %p106 = por %p104, %p105
      %p107 = scmp.ne.s32.totalorder %s96, %s97
      %p108 = scmp.eq.s32.totalorder %s31, 0
      %p109 = por %p107, %p108
      %p110 = scmp.ne.s32.totalorder %s96, %s97
      %p111 = scmp.eq.s32.totalorder %s32, 3
      %p112 = por %p110, %p111
      %p114 = scmp.ne.s32.totalorder %s97, %s113
      %p115 = scmp.eq.s32.totalorder %s32, 0
      %p116 = por %p114, %p115
      %s117 = sadd.s32 %s34, 1
      %s118 = smul.u32 %s117, 8
      %p119 = scmp.lt.s32.totalorder %s118, 15
      %s120 = scalar_select %p119, %s118, 15
      %s121 = sadd.s32 %s48, 1
      %s122 = smul.u32 %s121, 8
      %p123 = scmp.lt.s32.totalorder %s122, 15
      %s124 = scalar_select %p123, %s122, 15
      %s125 = ssub.s32 %s33, %s52
      %s126 = ssub.s32 %s120, %s124
      %s127 = sor.u32 %s125, %s126
      %p128 = scmp.eq.s32.totalorder %s127, 0
      %s130 = sadd.s32 %s129, 1
      %s131 = scalar_select %p128, %s129, %s130
      %p134 = pneg %p128
      %p135 = scmp.eq.s32.totalorder %s26, 3
      %p136 = por %p134, %p135
      %p137 = scmp.ne.s32.totalorder %s129, %s132
      %p138 = scmp.eq.s32.totalorder %s26, 0
      %p139 = por %p137, %p138
      %p140 = scmp.ne.s32.totalorder %s129, %s132
      %p141 = scmp.eq.s32.totalorder %s31, 3
      %p142 = por %p140, %p141
      %p143 = scmp.ne.s32.totalorder %s132, %s133
      %p144 = scmp.eq.s32.totalorder %s31, 0
      %p145 = por %p143, %p144
      %p146 = scmp.ne.s32.totalorder %s132, %s133
      %p147 = scmp.eq.s32.totalorder %s32, 3
      %p148 = por %p146, %p147
      %p150 = scmp.ne.s32.totalorder %s133, %s149
      %p151 = scmp.eq.s32.totalorder %s32, 0
      %p152 = por %p150, %p151
      %s153 = ssub.s32 %s35, %s44
      %p154 = scmp.eq.s32.totalorder %s153, 0
      %s156 = sadd.s32 %s155, 1
      %s157 = scalar_select %p154, %s155, %s156
      %p160 = pneg %p154
      %p161 = scmp.eq.s32.totalorder %s26, 3
      %p162 = por %p160, %p161
      %p163 = scmp.ne.s32.totalorder %s155, %s158
      %p164 = scmp.eq.s32.totalorder %s26, 0
      %p165 = por %p163, %p164
      %p166 = scmp.ne.s32.totalorder %s155, %s158
      %p167 = scmp.eq.s32.totalorder %s31, 3
      %p168 = por %p166, %p167
      %p169 = scmp.ne.s32.totalorder %s158, %s159
      %p170 = scmp.eq.s32.totalorder %s31, 0
      %p171 = por %p169, %p170
      %p172 = scmp.ne.s32.totalorder %s158, %s159
      %p173 = scmp.eq.s32.totalorder %s32, 3
      %p174 = por %p172, %p173
      %p176 = scmp.ne.s32.totalorder %s159, %s175
      %p177 = scmp.eq.s32.totalorder %s32, 0
      %p178 = por %p176, %p177
      %s179 = ssub.s32 %s33, %s52
      %s180 = ssub.s32 %s34, %s48
      %s181 = sor.u32 %s179, %s180
      %s182 = ssub.s32 %s35, %s44
      %s183 = sor.u32 %s181, %s182
      %p184 = scmp.eq.s32.totalorder %s183, 0
      %s186 = sadd.s32 %s185, 1
      %s187 = scalar_select %p184, %s185, %s186
      %p190 = pneg %p184
      %p191 = scmp.eq.s32.totalorder %s26, 3
      %p192 = por %p190, %p191
      %p193 = scmp.ne.s32.totalorder %s185, %s188
      %p194 = scmp.eq.s32.totalorder %s26, 0
      %p195 = por %p193, %p194
      %p196 = scmp.ne.s32.totalorder %s185, %s188
      %p197 = scmp.eq.s32.totalorder %s31, 3
      %p198 = por %p196, %p197
      %p199 = scmp.ne.s32.totalorder %s188, %s189
      %p200 = scmp.eq.s32.totalorder %s31, 0
      %p201 = por %p199, %p200
      %p202 = scmp.ne.s32.totalorder %s188, %s189
      %p203 = scmp.eq.s32.totalorder %s32, 3
      %p204 = por %p202, %p203
      %p206 = scmp.ne.s32.totalorder %s189, %s205
      %p207 = scmp.eq.s32.totalorder %s32, 0
      %p208 = por %p206, %p207
      %s209 = ssub.s32 %s33, %s52
      %s210 = ssub.s32 %s34, %s48
      %s211 = sor.u32 %s209, %s210
      %s212 = ssub.s32 %s35, %s44
      %s213 = sor.u32 %s211, %s212
      %p214 = scmp.eq.s32.totalorder %s213, 0
      %s216 = sadd.s32 %s215, 1
      %s217 = scalar_select %p214, %s215, %s216
      %p220 = pneg %p214
      %p221 = scmp.eq.s32.totalorder %s26, 3
      %p222 = por %p220, %p221
      %p223 = scmp.ne.s32.totalorder %s215, %s218
      %p224 = scmp.eq.s32.totalorder %s26, 0
      %p225 = por %p223, %p224
      %p226 = scmp.ne.s32.totalorder %s215, %s218
      %p227 = scmp.eq.s32.totalorder %s31, 3
      %p228 = por %p226, %p227
      %p229 = scmp.ne.s32.totalorder %s218, %s219
      %p230 = scmp.eq.s32.totalorder %s31, 0
      %p231 = por %p229, %p230
      %p232 = scmp.ne.s32.totalorder %s218, %s219
      %p233 = scmp.eq.s32.totalorder %s32, 3
      %p234 = por %p232, %p233
      %p236 = scmp.ne.s32.totalorder %s219, %s235
      %p237 = scmp.eq.s32.totalorder %s32, 0
      %p238 = por %p236, %p237
      %s239 = ssub.s32 %s33, %s52
      %s240 = ssub.s32 %s34, %s48
      %s241 = sor.u32 %s239, %s240
      %s242 = ssub.s32 %s35, %s44
      %s243 = sor.u32 %s241, %s242
      %p244 = scmp.eq.s32.totalorder %s243, 0
      %s246 = sadd.s32 %s245, 1
      %s247 = scalar_select %p244, %s245, %s246
      %p250 = pneg %p244
      %p251 = scmp.eq.s32.totalorder %s26, 3
      %p252 = por %p250, %p251
      %p253 = scmp.ne.s32.totalorder %s245, %s248
      %p254 = scmp.eq.s32.totalorder %s26, 0
      %p255 = por %p253, %p254
      %p256 = scmp.ne.s32.totalorder %s245, %s248
      %p257 = scmp.eq.s32.totalorder %s31, 3
      %p258 = por %p256, %p257
      %p259 = scmp.ne.s32.totalorder %s248, %s249
      %p260 = scmp.eq.s32.totalorder %s31, 0
      %p261 = por %p259, %p260
      %p262 = scmp.ne.s32.totalorder %s248, %s249
      %p263 = scmp.eq.s32.totalorder %s32, 3
      %p264 = por %p262, %p263
      %p266 = scmp.ne.s32.totalorder %s249, %s265
      %p267 = scmp.eq.s32.totalorder %s32, 0
      %p268 = por %p266, %p267
      %p269 = scmp.le.s32.totalorder 1, %s26
      %p270 = scmp.lt.s32.totalorder %s26, 5
      %p271 = pnand %p269, %p270
      %p272 = pneg %p271
      // Predicated region
      $region9: #{tpu_custom_call.1} parent=5 // pred_check
        _
      $region10: #{tpu_custom_call.1} parent=5 // pred_check_branch
        %274 = sbr.rel (%p271) target = $region12
      $region11: #{tpu_custom_call.1} parent=5 // pred_region
        %s275 = ssub.s32 %s26, 1
        // Predicated region
        $region13: #{tpu_custom_call.1} parent=11 // pred_check
          %p276 = pneg %p171
        $region14: #{tpu_custom_call.1} parent=11 // pred_check_branch
          %278 = sbr.rel (%p276) target = $region16
        $region15: #{tpu_custom_call.1} parent=11 // pred_region
          %s280 = ssub.s32 9216, 9216
          %281 = vsyncadd [#allocation10], %s280
          %s282 = smul.addr %s38, 64
          %s283 = scalar_lea.hbm %s3, %s282
          %s284 = sshll.u32 [#allocation9], 4
          %s285 = int_to_ptr.vmem [resolvable:$true] %s284
          %290 = dma.hbm_to_vmem [thread:$0]  %s283, 9216, %s285, [#allocation10], 64, 64, 4
        $region16: #{tpu_custom_call.1} parent=11 // pred_fallthru
          _
      $region12: #{tpu_custom_call.1} parent=5 // pred_fallthru
        _
      %p291 = scmp.lt.s32.totalorder %s26, 4
      // Predicated region
      $region17: #{tpu_custom_call.1} parent=5 // pred_check
        %p292 = pneg %p291
      $region18: #{tpu_custom_call.1} parent=5 // pred_check_branch
        %294 = sbr.rel (%p292) target = $region20
      $region19: #{tpu_custom_call.1} parent=5 // pred_region
        // Predicated region
        $region21: #{tpu_custom_call.1} parent=19 // pred_check
          %p295 = pneg %p67
        $region22: #{tpu_custom_call.1} parent=19 // pred_check_branch
          %297 = sbr.rel (%p295) target = $region24
        $region23: #{tpu_custom_call.1} parent=19 // pred_region
          %s298 = sand.u32 %s57, 1
          %s299 = scalar_lea.sflag [#allocation4], %s298
          %s300 = sand.u32 %s57, 1
          %s301 = smul.addr %s300, 64
          %s302 = scalar_lea.vmem [#allocation3], %s301
          %s303 = smul.u32 8, %s34
          %s305 = ssub.s32 1024, 1024
          %306 = vsyncadd %s299, %s305
          %s307 = smul.addr %s303, 2
          %s308 = smul.addr %s33, 32
          %s309 = sadd.s32 %s307, %s308
          %s310 = smul.addr %s309, 64
          %s311 = scalar_lea.hbm %s0, %s310
          %s312 = sshll.u32 %s302, 4
          %s313 = int_to_ptr.vmem [resolvable:$true] %s312
          %318 = dma.hbm_to_vmem [thread:$0]  %s311, 1024, %s313, %s299, 64, 64, 4
        $region24: #{tpu_custom_call.1} parent=19 // pred_fallthru
          _
        // Predicated region
        $region25: #{tpu_custom_call.1} parent=19 // pred_check
          %p319 = pneg %p103
        $region26: #{tpu_custom_call.1} parent=19 // pred_check_branch
          %321 = sbr.rel (%p319) target = $region28
        $region27: #{tpu_custom_call.1} parent=19 // pred_region
          %s322 = sand.u32 %s26, 1
          %s323 = scalar_lea.sflag [#allocation7], %s322
          %s324 = sand.u32 %s93, 1
          %s325 = smul.addr %s324, 8
          %s326 = scalar_lea.vmem [#allocation6], %s325
          %s327 = smul.u32 %s34, 8
          %s328 = ssub.s32 %s327, 1
          %p329 = scmp.gt.s32.totalorder %s328, 0
          %s330 = scalar_select %p329, %s328, 0
          %s332 = ssub.s32 128, 128
          %333 = vsyncadd %s323, %s332
          %s334 = smul.addr %s330, 2
          %s335 = smul.addr %s33, 32
          %s336 = sadd.s32 %s334, %s335
          %s337 = smul.addr %s336, 64
          %s338 = scalar_lea.hbm %s1, %s337
          %s339 = sshll.u32 %s326, 4
          %s340 = int_to_ptr.vmem [resolvable:$true] %s339
          %345 = dma.hbm_to_vmem [thread:$0]  %s338, 128, %s340, %s323, 64, 64, 4
        $region28: #{tpu_custom_call.1} parent=19 // pred_fallthru
          _
        // Predicated region
        $region29: #{tpu_custom_call.1} parent=19 // pred_check
          %p346 = pneg %p139
        $region30: #{tpu_custom_call.1} parent=19 // pred_check_branch
          %348 = sbr.rel (%p346) target = $region32
        $region31: #{tpu_custom_call.1} parent=19 // pred_region
          %s349 = sand.u32 %s26, 1
          %s350 = scalar_lea.sflag [#allocation7], %s349
          %s351 = sand.u32 %s129, 1
          %s352 = smul.addr %s351, 8
          %s353 = scalar_lea.vmem [#allocation8], %s352
          %s354 = sadd.s32 %s34, 1
          %s355 = smul.u32 %s354, 8
          %p356 = scmp.lt.s32.totalorder %s355, 15
          %s357 = scalar_select %p356, %s355, 15
          %s359 = ssub.s32 128, 128
          %360 = vsyncadd %s350, %s359
          %s361 = smul.addr %s357, 2
          %s362 = smul.addr %s33, 32
          %s363 = sadd.s32 %s361, %s362
          %s364 = smul.addr %s363, 64
          %s365 = scalar_lea.hbm %s2, %s364
          %s366 = sshll.u32 %s353, 4
          %s367 = int_to_ptr.vmem [resolvable:$true] %s366
          %372 = dma.hbm_to_vmem [thread:$0]  %s365, 128, %s367, %s350, 64, 64, 4
        $region32: #{tpu_custom_call.1} parent=19 // pred_fallthru
          _
      $region20: #{tpu_custom_call.1} parent=5 // pred_fallthru
        _
      %p373 = scmp.le.s32.totalorder 1, %s26
      %p374 = scmp.lt.s32.totalorder %s26, 5
      %p375 = pnand %p373, %p374
      %p376 = pneg %p375
      // Predicated region
      $region33: #{tpu_custom_call.1} parent=5 // pred_check
        _
      $region34: #{tpu_custom_call.1} parent=5 // pred_check_branch
        %378 = sbr.rel (%p375) target = $region36
      $region35: #{tpu_custom_call.1} parent=5 // pred_region
        %s379 = ssub.s32 %s26, 1
        %s380 = sand.u32 %s60, 1
        %s381 = scalar_lea.sflag [#allocation4], %s380
        %s382 = sand.u32 %s60, 1
        %s383 = smul.addr %s382, 64
        %s384 = scalar_lea.vmem [#allocation3], %s383
        // Predicated region
        $region37: #{tpu_custom_call.1} parent=35 // pred_check
          %p385 = pneg %p73
        $region38: #{tpu_custom_call.1} parent=35 // pred_check_branch
          %387 = sbr.rel (%p385) target = $region40
        $region39: #{tpu_custom_call.1} parent=35 // pred_region
          %388 = dma.done %s381, 1024
        $region40: #{tpu_custom_call.1} parent=35 // pred_fallthru
          _
        %s389 = sand.u32 %s31, 1
        %s390 = scalar_lea.sflag [#allocation7], %s389
        %s391 = sand.u32 %s96, 1
        %s392 = smul.addr %s391, 8
        %s393 = scalar_lea.vmem [#allocation6], %s392
        // Predicated region
        $region41: #{tpu_custom_call.1} parent=35 // pred_check
          %p394 = pneg %p109
        $region42: #{tpu_custom_call.1} parent=35 // pred_check_branch
          %396 = sbr.rel (%p394) target = $region44
        $region43: #{tpu_custom_call.1} parent=35 // pred_region
          %397 = dma.done %s390, 128
        $region44: #{tpu_custom_call.1} parent=35 // pred_fallthru
          _
        %s398 = sand.u32 %s31, 1
        %s399 = scalar_lea.sflag [#allocation7], %s398
        %s400 = sand.u32 %s132, 1
        %s401 = smul.addr %s400, 8
        %s402 = scalar_lea.vmem [#allocation8], %s401
        // Predicated region
        $region45: #{tpu_custom_call.1} parent=35 // pred_check
          %p403 = pneg %p145
        $region46: #{tpu_custom_call.1} parent=35 // pred_check_branch
          %405 = sbr.rel (%p403) target = $region48
        $region47: #{tpu_custom_call.1} parent=35 // pred_region
          %406 = dma.done %s399, 128
        $region48: #{tpu_custom_call.1} parent=35 // pred_fallthru
          _
        // Predicated region
        $region49: #{tpu_custom_call.1} parent=35 // pred_check
          %p407 = pneg %p171
        $region50: #{tpu_custom_call.1} parent=35 // pred_check_branch
          %409 = sbr.rel (%p407) target = $region52
        $region51: #{tpu_custom_call.1} parent=35 // pred_region
          %410 = dma.done [#allocation10], 9216
        $region52: #{tpu_custom_call.1} parent=35 // pred_fallthru
          _
        %s411 = sand.u32 %s60, 1
        %s412 = scalar_lea.sflag [#allocation4], %s411
        %s413 = sand.u32 %s60, 1
        %s414 = smul.addr %s413, 64
        %s415 = scalar_lea.vmem [#allocation3], %s414
        %p416 = pneg %p73
        %p417 = pneg %p70
        %s418 = sand.u32 %s31, 1
        %s419 = scalar_lea.sflag [#allocation7], %s418
        %s420 = sand.u32 %s96, 1
        %s421 = smul.addr %s420, 8
        %s422 = scalar_lea.vmem [#allocation6], %s421
        %p423 = pneg %p109
        %p424 = pneg %p106
        %s425 = sand.u32 %s31, 1
        %s426 = scalar_lea.sflag [#allocation7], %s425
        %s427 = sand.u32 %s132, 1
        %s428 = smul.addr %s427, 8
        %s429 = scalar_lea.vmem [#allocation8], %s428
        %p430 = pneg %p145
        %p431 = pneg %p142
        %p432 = pneg %p171
        %p433 = pneg %p168
        %p434 = pneg %p201
        %p435 = pneg %p198
        %s436 = sand.u32 %s188, 1
        %s437 = scalar_lea.sflag [#allocation5], %s436
        %s438 = sand.u32 %s188, 1
        %s439 = smul.addr %s438, 64
        %s440 = scalar_lea.vmem [#allocation11], %s439
        %p441 = pneg %p231
        %p442 = pneg %p228
        %s443 = sand.u32 %s31, 1
        %s444 = scalar_lea.sflag [#allocation13], %s443
        %s445 = sand.u32 %s218, 1
        %s446 = scalar_lea.vmem [#allocation12], %s445
        %p447 = pneg %p261
        %p448 = pneg %p258
        %s449 = sand.u32 %s31, 1
        %s450 = scalar_lea.sflag [#allocation13], %s449
        %s451 = sand.u32 %s248, 1
        %s452 = scalar_lea.vmem [#allocation14], %s451
        %s453 = smul.u32 8, %s37
        %s454 = smul.u32 %s37, 8
        %s455 = ssub.s32 %s454, 1
        %p456 = scmp.gt.s32.totalorder %s455, 0
        %s457 = scalar_select %p456, %s455, 0
        %s458 = sadd.s32 %s37, 1
        %s459 = smul.u32 %s458, 8
        %p460 = scmp.lt.s32.totalorder %s459, 15
        %s461 = scalar_select %p460, %s459, 15
        %s462 = smul.u32 8, %s37
        %p464 = scmp.eq.s32.totalorder %s38, 0
        // Predicated region
        $region53: #{tpu_custom_call.1} parent=35 // pred_check
          %p465 = pneg %p464
        $region54: #{tpu_custom_call.1} parent=35 // pred_check_branch
          %467 = sbr.rel (%p465) target = $region56
        $region55: #{tpu_custom_call.1} parent=35 // pred_region
          %vm468 = vcmask 1040384
          %vm469 = vsmask.f32 256
          %vm470 = vmand %vm468, %vm469
          %v471 = vld [vmem:[#allocation2] sm:$0x1]
          %v472 = vsel %vm470, 0, %v471
          %473 = vst [vmem:[#allocation2] sm:$0x1] %v472
          %v474 = vld [vmem:[#allocation2 + $0xc] sm:$0x1]
          %v475 = vsel %vm470, 0, %v474
          %476 = vst [vmem:[#allocation2 + $0xc] sm:$0x1] %v475
          %v477 = vld [vmem:[#allocation2 + $0x18] sm:$0x1]
          %v478 = vsel %vm470, 0, %v477
          %479 = vst [vmem:[#allocation2 + $0x18] sm:$0x1] %v478
          %v480 = vld [vmem:[#allocation2 + $0x24] sm:$0x1]
          %v481 = vsel %vm470, 0, %v480
          %482 = vst [vmem:[#allocation2 + $0x24] sm:$0x1] %v481
          %v483 = vld [vmem:[#allocation2 + $0x30] sm:$0x1]
          %v484 = vsel %vm470, 0, %v483
          %485 = vst [vmem:[#allocation2 + $0x30] sm:$0x1] %v484
          %v486 = vld [vmem:[#allocation2 + $0x3c] sm:$0x1]
          %v487 = vsel %vm470, 0, %v486
          %488 = vst [vmem:[#allocation2 + $0x3c] sm:$0x1] %v487
          %v489 = vld [vmem:[#allocation2 + $0x48] sm:$0x1]
          %v490 = vsel %vm470, 0, %v489
          %491 = vst [vmem:[#allocation2 + $0x48] sm:$0x1] %v490
          %v492 = vld [vmem:[#allocation2 + $0x54] sm:$0x1]
          %v493 = vsel %vm470, 0, %v492
          %494 = vst [vmem:[#allocation2 + $0x54] sm:$0x1] %v493
          %v495 = vld [vmem:[#allocation2 + $0x60] sm:$0x1]
          %v496 = vsel %vm470, 0, %v495
          %497 = vst [vmem:[#allocation2 + $0x60] sm:$0x1] %v496
          %v498 = vld [vmem:[#allocation2 + $0x6c] sm:$0x1]
          %v499 = vsel %vm470, 0, %v498
          %500 = vst [vmem:[#allocation2 + $0x6c] sm:$0x1] %v499
          %vm501 = vcmask 1043456
          %vm502 = vsmask.f32 7938
          %vm503 = vmand %vm501, %vm502
          %v504 = vld [vmem:[#allocation2 + $0x8] sm:$0xf]
          %v505 = vsel %vm503, 0, %v504
          %506 = vst [vmem:[#allocation2 + $0x8] sm:$0xf] %v505
          %v507 = vld [vmem:[#allocation2 + $0x14] sm:$0xf]
          %v508 = vsel %vm503, 0, %v507
          %509 = vst [vmem:[#allocation2 + $0x14] sm:$0xf] %v508
          %v510 = vld [vmem:[#allocation2 + $0x20] sm:$0xf]
          %v511 = vsel %vm503, 0, %v510
          %512 = vst [vmem:[#allocation2 + $0x20] sm:$0xf] %v511
          %v513 = vld [vmem:[#allocation2 + $0x2c] sm:$0xf]
          %v514 = vsel %vm503, 0, %v513
          %515 = vst [vmem:[#allocation2 + $0x2c] sm:$0xf] %v514
          %v516 = vld [vmem:[#allocation2 + $0x38] sm:$0xf]
          %v517 = vsel %vm503, 0, %v516
          %518 = vst [vmem:[#allocation2 + $0x38] sm:$0xf] %v517
          %v519 = vld [vmem:[#allocation2 + $0x44] sm:$0xf]
          %v520 = vsel %vm503, 0, %v519
          %521 = vst [vmem:[#allocation2 + $0x44] sm:$0xf] %v520
          %v522 = vld [vmem:[#allocation2 + $0x50] sm:$0xf]
          %v523 = vsel %vm503, 0, %v522
          %524 = vst [vmem:[#allocation2 + $0x50] sm:$0xf] %v523
          %v525 = vld [vmem:[#allocation2 + $0x5c] sm:$0xf]
          %v526 = vsel %vm503, 0, %v525
          %527 = vst [vmem:[#allocation2 + $0x5c] sm:$0xf] %v526
          %v528 = vld [vmem:[#allocation2 + $0x68] sm:$0xf]
          %v529 = vsel %vm503, 0, %v528
          %530 = vst [vmem:[#allocation2 + $0x68] sm:$0xf] %v529
          %v531 = vld [vmem:[#allocation2 + $0x74] sm:$0xf]
          %v532 = vsel %vm503, 0, %v531
          %533 = vst [vmem:[#allocation2 + $0x74] sm:$0xf] %v532
          %v534 = vld [vmem:[%s384] sm:$0xf]
          %v535 = vld [vmem:[%s384 + $0x4] sm:$0xf]
          %v536 = vld [vmem:[%s384 + $0x8] sm:$0xf]
          %v537 = vld [vmem:[%s384 + $0xc] sm:$0xf]
          %v538 = vld [vmem:[%s384 + $0x10] sm:$0xf]
          %v539 = vld [vmem:[%s384 + $0x14] sm:$0xf]
          %v540 = vld [vmem:[%s384 + $0x18] sm:$0xf]
          %v541 = vld [vmem:[%s384 + $0x1c] sm:$0xf]
          %v542 = vld [vmem:[%s384 + $0x20] sm:$0xf]
          %v543 = vld [vmem:[%s384 + $0x24] sm:$0xf]
          %v544 = vld [vmem:[%s384 + $0x28] sm:$0xf]
          %v545 = vld [vmem:[%s384 + $0x2c] sm:$0xf]
          %v546 = vld [vmem:[%s384 + $0x30] sm:$0xf]
          %v547 = vld [vmem:[%s384 + $0x34] sm:$0xf]
          %v548 = vld [vmem:[%s384 + $0x38] sm:$0xf]
          %v549 = vld [vmem:[%s384 + $0x3c] sm:$0xf]
          %vm550 = vsmask.f32 4368
          %vm551 = vmor %vm469, %vm550
          %v553 = vshrl.u32 %v534, 16
          %v555 = vrot.slane %v553, 7
          %v556 = vshll.u32 %v534, 16
          %v558 = vor.u32 %v555, %v556
          %v559 = vrot.slane %v555, 4
          %v561 = vshrl.u32 %v535, 16
          %v563 = vrot.slane %v561, 7
          %v564 = vshll.u32 %v535, 16
          %v566 = vor.u32 %v563, %v564
          %v567 = vsel %vm551, %v559, %v566
          %v568 = vrot.slane %v563, 4
          %v570 = vshrl.u32 %v536, 16
          %v572 = vrot.slane %v570, 7
          %v573 = vshll.u32 %v536, 16
          %v575 = vor.u32 %v572, %v573
          %v576 = vrot.slane %v572, 4
          %v578 = vshrl.u32 %v537, 16
          %v580 = vrot.slane %v578, 7
          %v581 = vshll.u32 %v537, 16
          %v583 = vor.u32 %v580, %v581
          %v584 = vsel %vm551, %v576, %v583
          %v585 = vrot.slane %v580, 4
          %v587 = vshrl.u32 %v538, 16
          %v589 = vrot.slane %v587, 7
          %v590 = vshll.u32 %v538, 16
          %v592 = vor.u32 %v589, %v590
          %v593 = vrot.slane %v589, 4
          %v595 = vshrl.u32 %v539, 16
          %v597 = vrot.slane %v595, 7
          %v598 = vshll.u32 %v539, 16
          %v600 = vor.u32 %v597, %v598
          %v601 = vsel %vm551, %v593, %v600
          %v602 = vrot.slane %v597, 4
          %v604 = vshrl.u32 %v540, 16
          %v606 = vrot.slane %v604, 7
          %v607 = vshll.u32 %v540, 16
          %v609 = vor.u32 %v606, %v607
          %v610 = vrot.slane %v606, 4
          %v612 = vshrl.u32 %v541, 16
          %v614 = vrot.slane %v612, 7
          %v615 = vshll.u32 %v541, 16
          %v617 = vor.u32 %v614, %v615
          %v618 = vsel %vm551, %v610, %v617
          %v619 = vrot.slane %v614, 4
          %v621 = vshrl.u32 %v542, 16
          %v623 = vrot.slane %v621, 7
          %v624 = vshll.u32 %v542, 16
          %v626 = vor.u32 %v623, %v624
          %v627 = vrot.slane %v623, 4
          %v629 = vshrl.u32 %v543, 16
          %v631 = vrot.slane %v629, 7
          %v632 = vshll.u32 %v543, 16
          %v634 = vor.u32 %v631, %v632
          %v635 = vsel %vm551, %v627, %v634
          %v636 = vrot.slane %v631, 4
          %v638 = vshrl.u32 %v544, 16
          %v640 = vrot.slane %v638, 7
          %v641 = vshll.u32 %v544, 16
          %v643 = vor.u32 %v640, %v641
          %v644 = vrot.slane %v640, 4
          %v646 = vshrl.u32 %v545, 16
          %v648 = vrot.slane %v646, 7
          %v649 = vshll.u32 %v545, 16
          %v651 = vor.u32 %v648, %v649
          %v652 = vsel %vm551, %v644, %v651
          %v653 = vrot.slane %v648, 4
          %v655 = vshrl.u32 %v546, 16
          %v657 = vrot.slane %v655, 7
          %v658 = vshll.u32 %v546, 16
          %v660 = vor.u32 %v657, %v658
          %v661 = vrot.slane %v657, 4
          %v663 = vshrl.u32 %v547, 16
          %v665 = vrot.slane %v663, 7
          %v666 = vshll.u32 %v547, 16
          %v668 = vor.u32 %v665, %v666
          %v669 = vsel %vm551, %v661, %v668
          %v670 = vrot.slane %v665, 4
          %v672 = vshrl.u32 %v548, 16
          %v674 = vrot.slane %v672, 7
          %v675 = vshll.u32 %v548, 16
          %v677 = vor.u32 %v674, %v675
          %v678 = vrot.slane %v674, 4
          %v680 = vshrl.u32 %v549, 16
          %v682 = vrot.slane %v680, 7
          %v683 = vshll.u32 %v549, 16
          %v685 = vor.u32 %v682, %v683
          %v686 = vsel %vm551, %v678, %v685
          %v687 = vrot.slane %v682, 4
          %s712 = scalar_lea.vmem [#allocation2], 12
          %v713 = vld [vmem:[%s712] sm:$0xf]
          %v714 = vsel %vm503, %v558, %v713
          %715 = vst [vmem:[%s712] sm:$0xf] %v714
          %716 = vst [vmem:[%s712 + $0x4] sm:$0xf] %v567
          %v717 = vld [vmem:[%s712 + $0x8] sm:$0x1]
          %v718 = vsel %vm470, %v568, %v717
          %719 = vst [vmem:[%s712 + $0x8] sm:$0x1] %v718
          %v720 = vld [vmem:[%s712 + $0xc] sm:$0xf]
          %v721 = vsel %vm503, %v575, %v720
          %722 = vst [vmem:[%s712 + $0xc] sm:$0xf] %v721
          %723 = vst [vmem:[%s712 + $0x10] sm:$0xf] %v584
          %v724 = vld [vmem:[%s712 + $0x14] sm:$0x1]
          %v725 = vsel %vm470, %v585, %v724
          %726 = vst [vmem:[%s712 + $0x14] sm:$0x1] %v725
          %v727 = vld [vmem:[%s712 + $0x18] sm:$0xf]
          %v728 = vsel %vm503, %v592, %v727
          %729 = vst [vmem:[%s712 + $0x18] sm:$0xf] %v728
          %730 = vst [vmem:[%s712 + $0x1c] sm:$0xf] %v601
          %v731 = vld [vmem:[%s712 + $0x20] sm:$0x1]
          %v732 = vsel %vm470, %v602, %v731
          %733 = vst [vmem:[%s712 + $0x20] sm:$0x1] %v732
          %v734 = vld [vmem:[%s712 + $0x24] sm:$0xf]
          %v735 = vsel %vm503, %v609, %v734
          %736 = vst [vmem:[%s712 + $0x24] sm:$0xf] %v735
          %737 = vst [vmem:[%s712 + $0x28] sm:$0xf] %v618
          %v738 = vld [vmem:[%s712 + $0x2c] sm:$0x1]
          %v739 = vsel %vm470, %v619, %v738
          %740 = vst [vmem:[%s712 + $0x2c] sm:$0x1] %v739
          %v741 = vld [vmem:[%s712 + $0x30] sm:$0xf]
          %v742 = vsel %vm503, %v626, %v741
          %743 = vst [vmem:[%s712 + $0x30] sm:$0xf] %v742
          %744 = vst [vmem:[%s712 + $0x34] sm:$0xf] %v635
          %v745 = vld [vmem:[%s712 + $0x38] sm:$0x1]
          %v746 = vsel %vm470, %v636, %v745
          %747 = vst [vmem:[%s712 + $0x38] sm:$0x1] %v746
          %v748 = vld [vmem:[%s712 + $0x3c] sm:$0xf]
          %v749 = vsel %vm503, %v643, %v748
          %750 = vst [vmem:[%s712 + $0x3c] sm:$0xf] %v749
          %751 = vst [vmem:[%s712 + $0x40] sm:$0xf] %v652
          %v752 = vld [vmem:[%s712 + $0x44] sm:$0x1]
          %v753 = vsel %vm470, %v653, %v752
          %754 = vst [vmem:[%s712 + $0x44] sm:$0x1] %v753
          %v755 = vld [vmem:[%s712 + $0x48] sm:$0xf]
          %v756 = vsel %vm503, %v660, %v755
          %757 = vst [vmem:[%s712 + $0x48] sm:$0xf] %v756
          %758 = vst [vmem:[%s712 + $0x4c] sm:$0xf] %v669
          %v759 = vld [vmem:[%s712 + $0x50] sm:$0x1]
          %v760 = vsel %vm470, %v670, %v759
          %761 = vst [vmem:[%s712 + $0x50] sm:$0x1] %v760
          %v762 = vld [vmem:[%s712 + $0x54] sm:$0xf]
          %v763 = vsel %vm503, %v677, %v762
          %764 = vst [vmem:[%s712 + $0x54] sm:$0xf] %v763
          %765 = vst [vmem:[%s712 + $0x58] sm:$0xf] %v686
          %v766 = vld [vmem:[%s712 + $0x5c] sm:$0x1]
          %v767 = vsel %vm470, %v687, %v766
          %768 = vst [vmem:[%s712 + $0x5c] sm:$0x1] %v767
          %v769 = vld [vmem:[%s393] sm:$0xf]
          %v770 = vld [vmem:[%s393 + $0x4] sm:$0xf]
          %p771 = scmp.eq.s32.totalorder %s37, 0
          %s772 = scalar_select %p771, 1, 0
          %v773 = vstv %s772
          %vm774 = vcmp.eq.s32.totalorder %v773, 1
          %v775 = vsel %vm774, 0, %v769
          %v776 = vsel %vm774, 0, %v770
          %v778 = vshrl.u32 %v775, 16
          %v780 = vrot.slane %v778, 7
          %v781 = vshll.u32 %v775, 16
          %v783 = vor.u32 %v780, %v781
          %v784 = vrot.slane %v780, 4
          %v786 = vshrl.u32 %v776, 16
          %v788 = vrot.slane %v786, 7
          %v789 = vshll.u32 %v776, 16
          %v791 = vor.u32 %v788, %v789
          %v792 = vsel %vm551, %v784, %v791
          %v793 = vrot.slane %v788, 4
          %v797 = vld [vmem:[#allocation2] sm:$0xf]
          %v798 = vsel %vm503, %v783, %v797
          %799 = vst [vmem:[#allocation2] sm:$0xf] %v798
          %800 = vst [vmem:[#allocation2 + $0x4] sm:$0xf] %v792
          %v801 = vld [vmem:[#allocation2 + $0x8] sm:$0x1]
          %v802 = vsel %vm470, %v793, %v801
          %803 = vst [vmem:[#allocation2 + $0x8] sm:$0x1] %v802
          %v804 = vld [vmem:[%s402] sm:$0xf]
          %v805 = vld [vmem:[%s402 + $0x4] sm:$0xf]
          %p806 = scmp.eq.s32.totalorder %s37, 1
          %s807 = scalar_select %p806, 1, 0
          %v808 = vstv %s807
          %vm809 = vcmp.eq.s32.totalorder %v808, 1
          %v810 = vsel %vm809, 0, %v804
          %v811 = vsel %vm809, 0, %v805
          %v813 = vshrl.u32 %v810, 16
          %v815 = vrot.slane %v813, 7
          %v816 = vshll.u32 %v810, 16
          %v818 = vor.u32 %v815, %v816
          %v819 = vrot.slane %v815, 4
          %v821 = vshrl.u32 %v811, 16
          %v823 = vrot.slane %v821, 7
          %v824 = vshll.u32 %v811, 16
          %v826 = vor.u32 %v823, %v824
          %v827 = vsel %vm551, %v819, %v826
          %v828 = vrot.slane %v823, 4
          %s832 = scalar_lea.vmem [#allocation2], 108
          %v833 = vld [vmem:[%s832] sm:$0xf]
          %v834 = vsel %vm503, %v818, %v833
          %835 = vst [vmem:[%s832] sm:$0xf] %v834
          %836 = vst [vmem:[%s832 + $0x4] sm:$0xf] %v827
          %v837 = vld [vmem:[%s832 + $0x8] sm:$0x1]
          %v838 = vsel %vm470, %v828, %v837
          %839 = vst [vmem:[%s832 + $0x8] sm:$0x1] %v838
        $region56: #{tpu_custom_call.1} parent=35 // pred_fallthru
          _
        %v840 = vld [vmem:[#allocation2] sm:$0xf]
        %v841 = vld [vmem:[#allocation2 + $0x4] sm:$0xf]
        %v842 = vld [vmem:[#allocation2 + $0x8] sm:$0xf]
        %v843 = vld [vmem:[#allocation2 + $0xc] sm:$0xf]
        %v844 = vld [vmem:[#allocation2 + $0x10] sm:$0xf]
        %v845 = vld [vmem:[#allocation2 + $0x14] sm:$0xf]
        %v846 = vld [vmem:[#allocation2 + $0x18] sm:$0xf]
        %v847 = vld [vmem:[#allocation2 + $0x1c] sm:$0xf]
        %v848 = vld [vmem:[#allocation2 + $0x20] sm:$0xf]
        %v849 = vld [vmem:[#allocation2 + $0x24] sm:$0xf]
        %v850 = vld [vmem:[#allocation2 + $0x28] sm:$0xf]
        %v851 = vld [vmem:[#allocation2 + $0x2c] sm:$0xf]
        %v852 = vld [vmem:[#allocation2 + $0x30] sm:$0xf]
        %v853 = vld [vmem:[#allocation2 + $0x34] sm:$0xf]
        %v854 = vld [vmem:[#allocation2 + $0x38] sm:$0xf]
        %v855 = vld [vmem:[#allocation2 + $0x3c] sm:$0xf]
        %v856 = vld [vmem:[#allocation2 + $0x40] sm:$0xf]
        %v857 = vld [vmem:[#allocation2 + $0x44] sm:$0xf]
        %v858 = vld [vmem:[#allocation2 + $0x48] sm:$0xf]
        %v859 = vld [vmem:[#allocation2 + $0x4c] sm:$0xf]
        %v860 = vld [vmem:[#allocation2 + $0x50] sm:$0xf]
        %v861 = vld [vmem:[#allocation2 + $0x54] sm:$0xf]
        %v862 = vld [vmem:[#allocation2 + $0x58] sm:$0xf]
        %v863 = vld [vmem:[#allocation2 + $0x5c] sm:$0xf]
        %v864 = vld [vmem:[#allocation9] sm:$0xf]
        %v865 = vld [vmem:[#allocation9 + $0x4] sm:$0xf]
        %v866 = vld [vmem:[#allocation9 + $0x8] sm:$0xf]
        %v867 = vld [vmem:[#allocation9 + $0xc] sm:$0xf]
        %v868 = vld [vmem:[#allocation9 + $0x10] sm:$0xf]
        %v869 = vld [vmem:[#allocation9 + $0x14] sm:$0xf]
        %v870 = vld [vmem:[#allocation9 + $0x18] sm:$0xf]
        %v871 = vld [vmem:[#allocation9 + $0x1c] sm:$0xf]
        %v872 = vld [vmem:[#allocation9 + $0x20] sm:$0xf]
        %v873 = vld [vmem:[#allocation9 + $0x24] sm:$0xf]
        %v874 = vld [vmem:[#allocation9 + $0x28] sm:$0xf]
        %v875 = vld [vmem:[#allocation9 + $0x2c] sm:$0xf]
        %v876 = vld [vmem:[#allocation9 + $0x30] sm:$0xf]
        %v877 = vld [vmem:[#allocation9 + $0x34] sm:$0xf]
        %v878 = vld [vmem:[#allocation9 + $0x38] sm:$0xf]
        %v879 = vld [vmem:[#allocation9 + $0x3c] sm:$0xf]
        %v904 = vunpack.c.l.b16 %v840
        %v905 = vunpack.c.l.b16 %v841
        %v906 = vunpack.c.l.b16 %v842
        %v907 = vunpack.c.l.b16 %v843
        %v908 = vunpack.c.l.b16 %v844
        %v909 = vunpack.c.l.b16 %v845
        %v910 = vunpack.c.l.b16 %v846
        %v911 = vunpack.c.l.b16 %v847
        %v912 = vunpack.c.l.b16 %v848
        %v913 = vunpack.c.l.b16 %v849
        %v914 = vunpack.c.l.b16 %v850
        %v915 = vunpack.c.l.b16 %v851
        %v916 = vunpack.c.l.b16 %v852
        %v917 = vunpack.c.l.b16 %v853
        %v918 = vunpack.c.l.b16 %v854
        %v919 = vunpack.c.l.b16 %v855
        %v920 = vunpack.c.l.b16 %v856
        %v921 = vunpack.c.l.b16 %v857
        %v922 = vunpack.c.l.b16 %v858
        %v923 = vunpack.c.l.b16 %v859
        %v924 = vunpack.c.l.b16 %v860
        %v925 = vunpack.c.l.b16 %v861
        %v926 = vunpack.c.l.b16 %v862
        %v927 = vunpack.c.l.b16 %v863
        %v928 = vpack.c.b16 %v905, %v904
        %v929 = vpack.c.b16 %v907, %v906
        %v930 = vpack.c.b16 %v909, %v908
        %v931 = vpack.c.b16 %v911, %v910
        %v932 = vpack.c.b16 %v913, %v912
        %v933 = vpack.c.b16 %v915, %v914
        %v934 = vpack.c.b16 %v917, %v916
        %v935 = vpack.c.b16 %v919, %v918
        %v936 = vpack.c.b16 %v921, %v920
        %v937 = vpack.c.b16 %v923, %v922
        %v938 = vpack.c.b16 %v925, %v924
        %v939 = vpack.c.b16 %v927, %v926
        %v968 = vunpack.c.l.b16 %v864
        %v969 = vunpack.c.l.b16 %v865
        %v970 = vunpack.c.l.b16 %v866
        %v971 = vunpack.c.l.b16 %v867
        %v972 = vunpack.c.l.b16 %v868
        %v973 = vunpack.c.l.b16 %v869
        %v974 = vunpack.c.l.b16 %v870
        %v975 = vunpack.c.l.b16 %v871
        %v976 = vunpack.c.l.b16 %v872
        %v977 = vunpack.c.l.b16 %v873
        %v978 = vunpack.c.l.b16 %v874
        %v979 = vunpack.c.l.b16 %v875
        %v980 = vunpack.c.l.b16 %v876
        %v981 = vunpack.c.l.b16 %v877
        %v982 = vunpack.c.l.b16 %v878
        %v983 = vunpack.c.l.b16 %v879
        %v984 = vpack.c.b16 %v969, %v968
        %v985 = vpack.c.b16 %v971, %v970
        %v986 = vpack.c.b16 %v973, %v972
        %v987 = vpack.c.b16 %v975, %v974
        %v988 = vpack.c.b16 %v977, %v976
        %v989 = vpack.c.b16 %v979, %v978
        %v990 = vpack.c.b16 %v981, %v980
        %v991 = vpack.c.b16 %v983, %v982
        %1000 = vmatprep.subr.bf16.mxu0 0
        %1001 = vmatpush1.bf16.msra.mxu0 %v984
        %1002 = vmatprep.subr.bf16.mxu0 0
        %1003 = vmatpush1.bf16.msra.mxu0 %v985
        %1004 = vmatprep.subr.bf16.mxu0 0
        %1005 = vmatpush1.bf16.msra.mxu0 %v986
        %1006 = vmatprep.subr.bf16.mxu0 0
        %1007 = vmatpush1.bf16.msra.mxu0 %v987
        %1008 = vmatprep.subr.bf16.mxu0 0
        %1009 = vmatpush1.bf16.msra.mxu0 %v988
        %1010 = vmatprep.subr.bf16.mxu0 0
        %1011 = vmatpush1.bf16.msra.mxu0 %v989
        %1012 = vmatprep.subr.bf16.mxu0 0
        %1013 = vmatpush1.bf16.msra.mxu0 %v990
        %1014 = vmatprep.subr.bf16.mxu0 0
        %1015 = vmatpush1.bf16.msra.mxu0 %v991
        %1016 = vmatprep.subr.bf16.mxu0 0
        %1017 = vmatpush1.bf16.msra.mxu0 0
        %1018 = vmatprep.subr.bf16.mxu0 0
        %1019 = vmatpush1.bf16.msra.mxu0 0
        %1020 = vmatprep.subr.bf16.mxu0 0
        %1021 = vmatpush1.bf16.msra.mxu0 0
        %1022 = vmatprep.subr.bf16.mxu0 0
        %1023 = vmatpush1.bf16.msra.mxu0 0
        %1024 = vmatprep.subr.bf16.mxu0 0
        %1025 = vmatpush1.bf16.msra.mxu0 0
        %1026 = vmatprep.subr.bf16.mxu0 0
        %1027 = vmatpush1.bf16.msra.mxu0 0
        %1028 = vmatprep.subr.bf16.mxu0 0
        %1029 = vmatpush1.bf16.msra.mxu0 0
        %1030 = vmatprep.subr.bf16.mxu0 0
        %1031 = vmatpush1.bf16.msra.mxu0 0
        %1032 = vmatprep.mubr.bf16.mxu0 0
        %1033 = vmatmul.mubr.bf16.gmra.mrb[0].mxu0 %v928
        %v1034 = vpop.f32.mrb[0].mxu0
        %v1035 = vadd.f32 0.0, %v1034
        %v1036 = vpop.f32.mrb[0].mxu0
        %v1037 = vpop.f32.mrb[0].mxu0
        %v1038 = vadd.f32 0.0, %v1037
        %v1039 = vpop.f32.mrb[0].mxu0
        %1040 = vmatprep.mubr.bf16.mxu0 0
        %1041 = vmatmul.mubr.bf16.gmra.mrb[0].mxu0 %v929
        %v1042 = vpop.f32.mrb[0].mxu0
        %v1043 = vpop.f32.mrb[0].mxu0
        %v1044 = vpop.f32.mrb[0].mxu0
        %v1045 = vadd.f32 0.0, %v1044
        %v1046 = vpop.f32.mrb[0].mxu0
        %1047 = vmatprep.mubr.bf16.mxu0 0
        %1048 = vmatmul.mubr.bf16.gmra.mrb[0].mxu0 %v930
        %v1049 = vpop.f32.mrb[0].mxu0
        %v1050 = vadd.f32 0.0, %v1049
        %v1051 = vpop.f32.mrb[0].mxu0
        %v1052 = vpop.f32.mrb[0].mxu0
        %v1053 = vpop.f32.mrb[0].mxu0
        %1054 = vmatprep.mubr.bf16.mxu0 0
        %1055 = vmatmul.mubr.bf16.gmra.mrb[0].mxu0 %v931
        %v1056 = vpop.f32.mrb[0].mxu0
        %v1057 = vadd.f32 0.0, %v1056
        %v1058 = vpop.f32.mrb[0].mxu0
        %v1059 = vpop.f32.mrb[0].mxu0
        %v1060 = vadd.f32 0.0, %v1059
        %v1061 = vpop.f32.mrb[0].mxu0
        %1062 = vmatprep.mubr.bf16.mxu0 0
        %1063 = vmatmul.mubr.bf16.gmra.mrb[0].mxu0 %v932
        %v1064 = vpop.f32.mrb[0].mxu0
        %v1065 = vpop.f32.mrb[0].mxu0
        %v1066 = vpop.f32.mrb[0].mxu0
        %v1067 = vadd.f32 0.0, %v1066
        %v1068 = vpop.f32.mrb[0].mxu0
        %1069 = vmatprep.mubr.bf16.mxu0 0
        %1070 = vmatmul.mubr.bf16.gmra.mrb[0].mxu0 %v933
        %v1071 = vpop.f32.mrb[0].mxu0
        %v1072 = vadd.f32 0.0, %v1071
        %v1073 = vpop.f32.mrb[0].mxu0
        %v1074 = vpop.f32.mrb[0].mxu0
        %v1075 = vpop.f32.mrb[0].mxu0
        %1076 = vmatprep.mubr.bf16.mxu0 0
        %1077 = vmatmul.mubr.bf16.gmra.mrb[0].mxu0 %v934
        %v1078 = vpop.f32.mrb[0].mxu0
        %v1079 = vadd.f32 0.0, %v1078
        %v1080 = vpop.f32.mrb[0].mxu0
        %v1081 = vpop.f32.mrb[0].mxu0
        %v1082 = vadd.f32 0.0, %v1081
        %v1083 = vpop.f32.mrb[0].mxu0
        %1084 = vmatprep.mubr.bf16.mxu0 0
        %1085 = vmatmul.mubr.bf16.gmra.mrb[0].mxu0 %v935
        %v1086 = vpop.f32.mrb[0].mxu0
        %v1087 = vpop.f32.mrb[0].mxu0
        %v1088 = vpop.f32.mrb[0].mxu0
        %v1089 = vadd.f32 0.0, %v1088
        %v1090 = vpop.f32.mrb[0].mxu0
        %1091 = vmatprep.mubr.bf16.mxu0 0
        %1092 = vmatmul.mubr.bf16.gmra.mrb[0].mxu0 %v936
        %v1093 = vpop.f32.mrb[0].mxu0
        %v1094 = vadd.f32 0.0, %v1093
        %v1095 = vpop.f32.mrb[0].mxu0
        %v1096 = vpop.f32.mrb[0].mxu0
        %v1097 = vpop.f32.mrb[0].mxu0
        %1098 = vmatprep.mubr.bf16.mxu0 0
        %1099 = vmatmul.mubr.bf16.gmra.mrb[0].mxu0 %v937
        %v1100 = vpop.f32.mrb[0].mxu0
        %v1101 = vadd.f32 0.0, %v1100
        %v1102 = vpop.f32.mrb[0].mxu0
        %v1103 = vpop.f32.mrb[0].mxu0
        %v1104 = vadd.f32 0.0, %v1103
        %v1105 = vpop.f32.mrb[0].mxu0
        %1106 = vmatprep.mubr.bf16.mxu0 0
        %1107 = vmatmul.mubr.bf16.gmra.mrb[0].mxu0 %v938
        %v1108 = vpop.f32.mrb[0].mxu0
        %v1109 = vpop.f32.mrb[0].mxu0
        %v1110 = vpop.f32.mrb[0].mxu0
        %v1111 = vadd.f32 0.0, %v1110
        %v1112 = vpop.f32.mrb[0].mxu0
        %1113 = vmatprep.mubr.bf16.mxu0 0
        %1114 = vmatmul.mubr.bf16.gmra.mrb[0].mxu0 %v939
        %v1115 = vpop.f32.mrb[0].mxu0
        %v1116 = vadd.f32 0.0, %v1115
        %v1117 = vpop.f32.mrb[0].mxu0
        %v1118 = vpop.f32.mrb[0].mxu0
        %v1119 = vpop.f32.mrb[0].mxu0
        %1120 = vdwg.mxu0
        %v1121 = vadd.f32 %v1035, 0.0
        %v1122 = vadd.f32 %v1038, 0.0
        %v1123 = vadd.f32 %v1045, 0.0
        %v1124 = vadd.f32 %v1050, 0.0
        %v1125 = vadd.f32 %v1057, 0.0
        %v1126 = vadd.f32 %v1060, 0.0
        %v1127 = vadd.f32 %v1067, 0.0
        %v1128 = vadd.f32 %v1072, 0.0
        %v1129 = vadd.f32 %v1079, 0.0
        %v1130 = vadd.f32 %v1082, 0.0
        %v1131 = vadd.f32 %v1089, 0.0
        %v1132 = vadd.f32 %v1094, 0.0
        %v1133 = vadd.f32 %v1101, 0.0
        %v1134 = vadd.f32 %v1104, 0.0
        %v1135 = vadd.f32 %v1111, 0.0
        %v1136 = vadd.f32 %v1116, 0.0
        %s1137 = scalar_lea.vmem [#allocation9], 64
        %v1138 = vld [vmem:[%s1137] sm:$0xf]
        %v1139 = vld [vmem:[%s1137 + $0x4] sm:$0xf]
        %v1140 = vld [vmem:[%s1137 + $0x8] sm:$0xf]
        %v1141 = vld [vmem:[%s1137 + $0xc] sm:$0xf]
        %v1142 = vld [vmem:[%s1137 + $0x10] sm:$0xf]
        %v1143 = vld [vmem:[%s1137 + $0x14] sm:$0xf]
        %v1144 = vld [vmem:[%s1137 + $0x18] sm:$0xf]
        %v1145 = vld [vmem:[%s1137 + $0x1c] sm:$0xf]
        %v1146 = vld [vmem:[%s1137 + $0x20] sm:$0xf]
        %v1147 = vld [vmem:[%s1137 + $0x24] sm:$0xf]
        %v1148 = vld [vmem:[%s1137 + $0x28] sm:$0xf]
        %v1149 = vld [vmem:[%s1137 + $0x2c] sm:$0xf]
        %v1150 = vld [vmem:[%s1137 + $0x30] sm:$0xf]
        %v1151 = vld [vmem:[%s1137 + $0x34] sm:$0xf]
        %v1152 = vld [vmem:[%s1137 + $0x38] sm:$0xf]
        %v1153 = vld [vmem:[%s1137 + $0x3c] sm:$0xf]
        %v1170 = vunpack.c.l.b16 %v1138
        %v1171 = vunpack.c.l.b16 %v1139
        %v1172 = vunpack.c.l.b16 %v1140
        %v1173 = vunpack.c.l.b16 %v1141
        %v1174 = vunpack.c.l.b16 %v1142
        %v1175 = vunpack.c.l.b16 %v1143
        %v1176 = vunpack.c.l.b16 %v1144
        %v1177 = vunpack.c.l.b16 %v1145
        %v1178 = vunpack.c.l.b16 %v1146
        %v1179 = vunpack.c.l.b16 %v1147
        %v1180 = vunpack.c.l.b16 %v1148
        %v1181 = vunpack.c.l.b16 %v1149
        %v1182 = vunpack.c.l.b16 %v1150
        %v1183 = vunpack.c.l.b16 %v1151
        %v1184 = vunpack.c.l.b16 %v1152
        %v1185 = vunpack.c.l.b16 %v1153
        %v1186 = vpack.c.b16 %v1171, %v1170
        %v1187 = vpack.c.b16 %v1173, %v1172
        %v1188 = vpack.c.b16 %v1175, %v1174
        %v1189 = vpack.c.b16 %v1177, %v1176
        %v1190 = vpack.c.b16 %v1179, %v1178
        %v1191 = vpack.c.b16 %v1181, %v1180
        %v1192 = vpack.c.b16 %v1183, %v1182
        %v1193 = vpack.c.b16 %v1185, %v1184
        %1202 = vmatprep.subr.bf16.mxu0 0
        %1203 = vmatpush1.bf16.msra.mxu0 %v1186
        %1204 = vmatprep.subr.bf16.mxu0 0
        %1205 = vmatpush1.bf16.msra.mxu0 %v1187
        %1206 = vmatprep.subr.bf16.mxu0 0
        %1207 = vmatpush1.bf16.msra.mxu0 %v1188
        %1208 = vmatprep.subr.bf16.mxu0 0
        %1209 = vmatpush1.bf16.msra.mxu0 %v1189
        %1210 = vmatprep.subr.bf16.mxu0 0
        %1211 = vmatpush1.bf16.msra.mxu0 %v1190
        %1212 = vmatprep.subr.bf16.mxu0 0
        %1213 = vmatpush1.bf16.msra.mxu0 %v1191
        %1214 = vmatprep.subr.bf16.mxu0 0
        %1215 = vmatpush1.bf16.msra.mxu0 %v1192
        %1216 = vmatprep.subr.bf16.mxu0 0
        %1217 = vmatpush1.bf16.msra.mxu0 %v1193
        %1218 = vmatprep.subr.bf16.mxu0 0
        %1219 = vmatpush1.bf16.msra.mxu0 0
        %1220 = vmatprep.subr.bf16.mxu0 0
        %1221 = vmatpush1.bf16.msra.mxu0 0
        %1222 = vmatprep.subr.bf16.mxu0 0
        %1223 = vmatpush1.bf16.msra.mxu0 0
        %1224 = vmatprep.subr.bf16.mxu0 0
        %1225 = vmatpush1.bf16.msra.mxu0 0
        %1226 = vmatprep.subr.bf16.mxu0 0
        %1227 = vmatpush1.bf16.msra.mxu0 0
        %1228 = vmatprep.subr.bf16.mxu0 0
        %1229 = vmatpush1.bf16.msra.mxu0 0
        %1230 = vmatprep.subr.bf16.mxu0 0
        %1231 = vmatpush1.bf16.msra.mxu0 0
        %1232 = vmatprep.subr.bf16.mxu0 0
        %1233 = vmatpush1.bf16.msra.mxu0 0
        %1234 = vmatprep.mubr.bf16.mxu0 0
        %1235 = vmatmul.mubr.bf16.gmra.mrb[0].mxu0 %v928
        %v1236 = vpop.f32.mrb[0].mxu0
        %v1237 = vadd.f32 0.0, %v1236
        %v1238 = vpop.f32.mrb[0].mxu0
        %v1239 = vpop.f32.mrb[0].mxu0
        %v1240 = vadd.f32 0.0, %v1239
        %v1241 = vpop.f32.mrb[0].mxu0
        %1242 = vmatprep.mubr.bf16.mxu0 0
        %1243 = vmatmul.mubr.bf16.gmra.mrb[0].mxu0 %v929
        %v1244 = vpop.f32.mrb[0].mxu0
        %v1245 = vadd.f32 0.0, %v1244
        %v1246 = vpop.f32.mrb[0].mxu0
        %v1247 = vpop.f32.mrb[0].mxu0
        %v1248 = vadd.f32 0.0, %v1247
        %v1249 = vpop.f32.mrb[0].mxu0
        %1250 = vmatprep.mubr.bf16.mxu0 0
        %1251 = vmatmul.mubr.bf16.gmra.mrb[0].mxu0 %v930
        %v1252 = vpop.f32.mrb[0].mxu0
        %v1253 = vadd.f32 0.0, %v1252
        %v1254 = vpop.f32.mrb[0].mxu0
        %v1255 = vpop.f32.mrb[0].mxu0
        %v1256 = vadd.f32 0.0, %v1255
        %v1257 = vpop.f32.mrb[0].mxu0
        %1258 = vmatprep.mubr.bf16.mxu0 0
        %1259 = vmatmul.mubr.bf16.gmra.mrb[0].mxu0 %v931
        %v1260 = vpop.f32.mrb[0].mxu0
        %v1261 = vadd.f32 0.0, %v1260
        %v1262 = vpop.f32.mrb[0].mxu0
        %v1263 = vpop.f32.mrb[0].mxu0
        %v1264 = vadd.f32 0.0, %v1263
        %v1265 = vpop.f32.mrb[0].mxu0
        %1266 = vmatprep.mubr.bf16.mxu0 0
        %1267 = vmatmul.mubr.bf16.gmra.mrb[0].mxu0 %v932
        %v1268 = vpop.f32.mrb[0].mxu0
        %v1269 = vadd.f32 0.0, %v1268
        %v1270 = vpop.f32.mrb[0].mxu0
        %v1271 = vpop.f32.mrb[0].mxu0
        %v1272 = vadd.f32 0.0, %v1271
        %v1273 = vpop.f32.mrb[0].mxu0
        %1274 = vmatprep.mubr.bf16.mxu0 0
        %1275 = vmatmul.mubr.bf16.gmra.mrb[0].mxu0 %v933
        %v1276 = vpop.f32.mrb[0].mxu0
        %v1277 = vadd.f32 0.0, %v1276
        %v1278 = vpop.f32.mrb[0].mxu0
        %v1279 = vpop.f32.mrb[0].mxu0
        %v1280 = vadd.f32 0.0, %v1279
        %v1281 = vpop.f32.mrb[0].mxu0
        %1282 = vmatprep.mubr.bf16.mxu0 0
        %1283 = vmatmul.mubr.bf16.gmra.mrb[0].mxu0 %v934
        %v1284 = vpop.f32.mrb[0].mxu0
        %v1285 = vadd.f32 0.0, %v1284
        %v1286 = vpop.f32.mrb[0].mxu0
        %v1287 = vpop.f32.mrb[0].mxu0
        %v1288 = vadd.f32 0.0, %v1287
        %v1289 = vpop.f32.mrb[0].mxu0
        %1290 = vmatprep.mubr.bf16.mxu0 0
        %1291 = vmatmul.mubr.bf16.gmra.mrb[0].mxu0 %v935
        %v1292 = vpop.f32.mrb[0].mxu0
        %v1293 = vadd.f32 0.0, %v1292
        %v1294 = vpop.f32.mrb[0].mxu0
        %v1295 = vpop.f32.mrb[0].mxu0
        %v1296 = vadd.f32 0.0, %v1295
        %v1297 = vpop.f32.mrb[0].mxu0
        %1298 = vmatprep.mubr.bf16.mxu0 0
        %1299 = vmatmul.mubr.bf16.gmra.mrb[0].mxu0 %v936
        %v1300 = vpop.f32.mrb[0].mxu0
        %v1301 = vadd.f32 0.0, %v1300
        %v1302 = vpop.f32.mrb[0].mxu0
        %v1303 = vpop.f32.mrb[0].mxu0
        %v1304 = vadd.f32 0.0, %v1303
        %v1305 = vpop.f32.mrb[0].mxu0
        %1306 = vmatprep.mubr.bf16.mxu0 0
        %1307 = vmatmul.mubr.bf16.gmra.mrb[0].mxu0 %v937
        %v1308 = vpop.f32.mrb[0].mxu0
        %v1309 = vadd.f32 0.0, %v1308
        %v1310 = vpop.f32.mrb[0].mxu0
        %v1311 = vpop.f32.mrb[0].mxu0
        %v1312 = vadd.f32 0.0, %v1311
        %v1313 = vpop.f32.mrb[0].mxu0
        %1314 = vmatprep.mubr.bf16.mxu0 0
        %1315 = vmatmul.mubr.bf16.gmra.mrb[0].mxu0 %v938
        %v1316 = vpop.f32.mrb[0].mxu0
        %v1317 = vadd.f32 0.0, %v1316
        %v1318 = vpop.f32.mrb[0].mxu0
        %v1319 = vpop.f32.mrb[0].mxu0
        %v1320 = vadd.f32 0.0, %v1319
        %v1321 = vpop.f32.mrb[0].mxu0
        %1322 = vmatprep.mubr.bf16.mxu0 0
        %1323 = vmatmul.mubr.bf16.gmra.mrb[0].mxu0 %v939
        %v1324 = vpop.f32.mrb[0].mxu0
        %v1325 = vadd.f32 0.0, %v1324
        %v1326 = vpop.f32.mrb[0].mxu0
        %v1327 = vpop.f32.mrb[0].mxu0
        %v1328 = vadd.f32 0.0, %v1327
        %v1329 = vpop.f32.mrb[0].mxu0
        %1330 = vdwg.mxu0
        %vm1355 = vcmask 1046528
        %v1356 = vrot.slane %v1237, 1
        %v1357 = vrot.slane %v1240, 1
        %v1358 = vsel %vm1355, %v1356, %v1357
        %v1359 = vrot.slane %v1245, 1
        %v1360 = vsel %vm1355, %v1357, %v1359
        %v1361 = vrot.slane %v1248, 1
        %v1362 = vrot.slane %v1253, 1
        %v1363 = vsel %vm1355, %v1361, %v1362
        %v1364 = vrot.slane %v1256, 1
        %v1365 = vsel %vm1355, %v1362, %v1364
        %v1366 = vrot.slane %v1261, 1
        %v1367 = vrot.slane %v1264, 1
        %v1368 = vsel %vm1355, %v1366, %v1367
        %v1369 = vrot.slane %v1269, 1
        %v1370 = vsel %vm1355, %v1367, %v1369
        %v1371 = vrot.slane %v1272, 1
        %v1372 = vrot.slane %v1277, 1
        %v1373 = vsel %vm1355, %v1371, %v1372
        %v1374 = vrot.slane %v1280, 1
        %v1375 = vsel %vm1355, %v1372, %v1374
        %v1376 = vrot.slane %v1285, 1
        %v1377 = vrot.slane %v1288, 1
        %v1378 = vsel %vm1355, %v1376, %v1377
        %v1379 = vrot.slane %v1293, 1
        %v1380 = vsel %vm1355, %v1377, %v1379
        %v1381 = vrot.slane %v1296, 1
        %v1382 = vrot.slane %v1301, 1
        %v1383 = vsel %vm1355, %v1381, %v1382
        %v1384 = vrot.slane %v1304, 1
        %v1385 = vsel %vm1355, %v1382, %v1384
        %v1386 = vrot.slane %v1309, 1
        %v1387 = vrot.slane %v1312, 1
        %v1388 = vsel %vm1355, %v1386, %v1387
        %v1389 = vrot.slane %v1317, 1
        %v1390 = vsel %vm1355, %v1387, %v1389
        %v1391 = vrot.slane %v1320, 1
        %v1392 = vrot.slane %v1325, 1
        %v1393 = vsel %vm1355, %v1391, %v1392
        %v1394 = vrot.slane %v1328, 1
        %v1395 = vsel %vm1355, %v1392, %v1394
        %v1412 = vadd.f32 %v1121, %v1358
        %v1413 = vadd.f32 %v1122, %v1360
        %v1414 = vadd.f32 %v1123, %v1363
        %v1415 = vadd.f32 %v1124, %v1365
        %v1416 = vadd.f32 %v1125, %v1368
        %v1417 = vadd.f32 %v1126, %v1370
        %v1418 = vadd.f32 %v1127, %v1373
        %v1419 = vadd.f32 %v1128, %v1375
        %v1420 = vadd.f32 %v1129, %v1378
        %v1421 = vadd.f32 %v1130, %v1380
        %v1422 = vadd.f32 %v1131, %v1383
        %v1423 = vadd.f32 %v1132, %v1385
        %v1424 = vadd.f32 %v1133, %v1388
        %v1425 = vadd.f32 %v1134, %v1390
        %v1426 = vadd.f32 %v1135, %v1393
        %v1427 = vadd.f32 %v1136, %v1395
        %s1428 = scalar_lea.vmem [#allocation9], 128
        %v1429 = vld [vmem:[%s1428] sm:$0xf]
        %v1430 = vld [vmem:[%s1428 + $0x4] sm:$0xf]
        %v1431 = vld [vmem:[%s1428 + $0x8] sm:$0xf]
        %v1432 = vld [vmem:[%s1428 + $0xc] sm:$0xf]
        %v1433 = vld [vmem:[%s1428 + $0x10] sm:$0xf]
        %v1434 = vld [vmem:[%s1428 + $0x14] sm:$0xf]
        %v1435 = vld [vmem:[%s1428 + $0x18] sm:$0xf]
        %v1436 = vld [vmem:[%s1428 + $0x1c] sm:$0xf]
        %v1437 = vld [vmem:[%s1428 + $0x20] sm:$0xf]
        %v1438 = vld [vmem:[%s1428 + $0x24] sm:$0xf]
        %v1439 = vld [vmem:[%s1428 + $0x28] sm:$0xf]
        %v1440 = vld [vmem:[%s1428 + $0x2c] sm:$0xf]
        %v1441 = vld [vmem:[%s1428 + $0x30] sm:$0xf]
        %v1442 = vld [vmem:[%s1428 + $0x34] sm:$0xf]
        %v1443 = vld [vmem:[%s1428 + $0x38] sm:$0xf]
        %v1444 = vld [vmem:[%s1428 + $0x3c] sm:$0xf]
        %v1461 = vunpack.c.l.b16 %v1429
        %v1462 = vunpack.c.l.b16 %v1430
        %v1463 = vunpack.c.l.b16 %v1431
        %v1464 = vunpack.c.l.b16 %v1432
        %v1465 = vunpack.c.l.b16 %v1433
        %v1466 = vunpack.c.l.b16 %v1434
        %v1467 = vunpack.c.l.b16 %v1435
        %v1468 = vunpack.c.l.b16 %v1436
        %v1469 = vunpack.c.l.b16 %v1437
        %v1470 = vunpack.c.l.b16 %v1438
        %v1471 = vunpack.c.l.b16 %v1439
        %v1472 = vunpack.c.l.b16 %v1440
        %v1473 = vunpack.c.l.b16 %v1441
        %v1474 = vunpack.c.l.b16 %v1442
        %v1475 = vunpack.c.l.b16 %v1443
        %v1476 = vunpack.c.l.b16 %v1444
        %v1477 = vpack.c.b16 %v1462, %v1461
        %v1478 = vpack.c.b16 %v1464, %v1463
        %v1479 = vpack.c.b16 %v1466, %v1465
        %v1480 = vpack.c.b16 %v1468, %v1467
        %v1481 = vpack.c.b16 %v1470, %v1469
        %v1482 = vpack.c.b16 %v1472, %v1471
        %v1483 = vpack.c.b16 %v1474, %v1473
        %v1484 = vpack.c.b16 %v1476, %v1475
        %1493 = vmatprep.subr.bf16.mxu0 0
        %1494 = vmatpush1.bf16.msra.mxu0 %v1477
        %1495 = vmatprep.subr.bf16.mxu0 0
        %1496 = vmatpush1.bf16.msra.mxu0 %v1478
        %1497 = vmatprep.subr.bf16.mxu0 0
        %1498 = vmatpush1.bf16.msra.mxu0 %v1479
        %1499 = vmatprep.subr.bf16.mxu0 0
        %1500 = vmatpush1.bf16.msra.mxu0 %v1480
        %1501 = vmatprep.subr.bf16.mxu0 0
        %1502 = vmatpush1.bf16.msra.mxu0 %v1481
        %1503 = vmatprep.subr.bf16.mxu0 0
        %1504 = vmatpush1.bf16.msra.mxu0 %v1482
        %1505 = vmatprep.subr.bf16.mxu0 0
        %1506 = vmatpush1.bf16.msra.mxu0 %v1483
        %1507 = vmatprep.subr.bf16.mxu0 0
        %1508 = vmatpush1.bf16.msra.mxu0 %v1484
        %1509 = vmatprep.subr.bf16.mxu0 0
        %1510 = vmatpush1.bf16.msra.mxu0 0
        %1511 = vmatprep.subr.bf16.mxu0 0
        %1512 = vmatpush1.bf16.msra.mxu0 0
        %1513 = vmatprep.subr.bf16.mxu0 0
        %1514 = vmatpush1.bf16.msra.mxu0 0
        %1515 = vmatprep.subr.bf16.mxu0 0
        %1516 = vmatpush1.bf16.msra.mxu0 0
        %1517 = vmatprep.subr.bf16.mxu0 0
        %1518 = vmatpush1.bf16.msra.mxu0 0
        %1519 = vmatprep.subr.bf16.mxu0 0
        %1520 = vmatpush1.bf16.msra.mxu0 0
        %1521 = vmatprep.subr.bf16.mxu0 0
        %1522 = vmatpush1.bf16.msra.mxu0 0
        %1523 = vmatprep.subr.bf16.mxu0 0
        %1524 = vmatpush1.bf16.msra.mxu0 0
        %1525 = vmatprep.mubr.bf16.mxu0 0
        %1526 = vmatmul.mubr.bf16.gmra.mrb[0].mxu0 %v928
        %v1527 = vpop.f32.mrb[0].mxu0
        %v1528 = vadd.f32 0.0, %v1527
        %v1529 = vpop.f32.mrb[0].mxu0
        %v1530 = vpop.f32.mrb[0].mxu0
        %v1531 = vadd.f32 0.0, %v1530
        %v1532 = vpop.f32.mrb[0].mxu0
        %1533 = vmatprep.mubr.bf16.mxu0 0
        %1534 = vmatmul.mubr.bf16.gmra.mrb[0].mxu0 %v929
        %v1535 = vpop.f32.mrb[0].mxu0
        %v1536 = vadd.f32 0.0, %v1535
        %v1537 = vpop.f32.mrb[0].mxu0
        %v1538 = vpop.f32.mrb[0].mxu0
        %v1539 = vadd.f32 0.0, %v1538
        %v1540 = vpop.f32.mrb[0].mxu0
        %1541 = vmatprep.mubr.bf16.mxu0 0
        %1542 = vmatmul.mubr.bf16.gmra.mrb[0].mxu0 %v930
        %v1543 = vpop.f32.mrb[0].mxu0
        %v1544 = vadd.f32 0.0, %v1543
        %v1545 = vpop.f32.mrb[0].mxu0
        %v1546 = vpop.f32.mrb[0].mxu0
        %v1547 = vadd.f32 0.0, %v1546
        %v1548 = vpop.f32.mrb[0].mxu0
        %1549 = vmatprep.mubr.bf16.mxu0 0
        %1550 = vmatmul.mubr.bf16.gmra.mrb[0].mxu0 %v931
        %v1551 = vpop.f32.mrb[0].mxu0
        %v1552 = vadd.f32 0.0, %v1551
        %v1553 = vpop.f32.mrb[0].mxu0
        %v1554 = vpop.f32.mrb[0].mxu0
        %v1555 = vadd.f32 0.0, %v1554
        %v1556 = vpop.f32.mrb[0].mxu0
        %1557 = vmatprep.mubr.bf16.mxu0 0
        %1558 = vmatmul.mubr.bf16.gmra.mrb[0].mxu0 %v932
        %v1559 = vpop.f32.mrb[0].mxu0
        %v1560 = vadd.f32 0.0, %v1559
        %v1561 = vpop.f32.mrb[0].mxu0
        %v1562 = vpop.f32.mrb[0].mxu0
        %v1563 = vadd.f32 0.0, %v1562
        %v1564 = vpop.f32.mrb[0].mxu0
        %1565 = vmatprep.mubr.bf16.mxu0 0
        %1566 = vmatmul.mubr.bf16.gmra.mrb[0].mxu0 %v933
        %v1567 = vpop.f32.mrb[0].mxu0
        %v1568 = vadd.f32 0.0, %v1567
        %v1569 = vpop.f32.mrb[0].mxu0
        %v1570 = vpop.f32.mrb[0].mxu0
        %v1571 = vadd.f32 0.0, %v1570
        %v1572 = vpop.f32.mrb[0].mxu0
        %1573 = vmatprep.mubr.bf16.mxu0 0
        %1574 = vmatmul.mubr.bf16.gmra.mrb[0].mxu0 %v934
        %v1575 = vpop.f32.mrb[0].mxu0
        %v1576 = vadd.f32 0.0, %v1575
        %v1577 = vpop.f32.mrb[0].mxu0
        %v1578 = vpop.f32.mrb[0].mxu0
        %v1579 = vadd.f32 0.0, %v1578
        %v1580 = vpop.f32.mrb[0].mxu0
        %1581 = vmatprep.mubr.bf16.mxu0 0
        %1582 = vmatmul.mubr.bf16.gmra.mrb[0].mxu0 %v935
        %v1583 = vpop.f32.mrb[0].mxu0
        %v1584 = vadd.f32 0.0, %v1583
        %v1585 = vpop.f32.mrb[0].mxu0
        %v1586 = vpop.f32.mrb[0].mxu0
        %v1587 = vadd.f32 0.0, %v1586
        %v1588 = vpop.f32.mrb[0].mxu0
        %1589 = vmatprep.mubr.bf16.mxu0 0
        %1590 = vmatmul.mubr.bf16.gmra.mrb[0].mxu0 %v936
        %v1591 = vpop.f32.mrb[0].mxu0
        %v1592 = vadd.f32 0.0, %v1591
        %v1593 = vpop.f32.mrb[0].mxu0
        %v1594 = vpop.f32.mrb[0].mxu0
        %v1595 = vadd.f32 0.0, %v1594
        %v1596 = vpop.f32.mrb[0].mxu0
        %1597 = vmatprep.mubr.bf16.mxu0 0
        %1598 = vmatmul.mubr.bf16.gmra.mrb[0].mxu0 %v937
        %v1599 = vpop.f32.mrb[0].mxu0
        %v1600 = vadd.f32 0.0, %v1599
        %v1601 = vpop.f32.mrb[0].mxu0
        %v1602 = vpop.f32.mrb[0].mxu0
        %v1603 = vadd.f32 0.0, %v1602
        %v1604 = vpop.f32.mrb[0].mxu0
        %1605 = vmatprep.mubr.bf16.mxu0 0
        %1606 = vmatmul.mubr.bf16.gmra.mrb[0].mxu0 %v938
        %v1607 = vpop.f32.mrb[0].mxu0
        %v1608 = vadd.f32 0.0, %v1607
        %v1609 = vpop.f32.mrb[0].mxu0
        %v1610 = vpop.f32.mrb[0].mxu0
        %v1611 = vadd.f32 0.0, %v1610
        %v1612 = vpop.f32.mrb[0].mxu0
        %1613 = vmatprep.mubr.bf16.mxu0 0
        %1614 = vmatmul.mubr.bf16.gmra.mrb[0].mxu0 %v939
        %v1615 = vpop.f32.mrb[0].mxu0
        %v1616 = vadd.f32 0.0, %v1615
        %v1617 = vpop.f32.mrb[0].mxu0
        %v1618 = vpop.f32.mrb[0].mxu0
        %v1619 = vadd.f32 0.0, %v1618
        %v1620 = vpop.f32.mrb[0].mxu0
        %1621 = vdwg.mxu0
        %vm1646 = vcmask 1045504
        %v1647 = vrot.slane %v1528, 2
        %v1648 = vrot.slane %v1531, 2
        %v1649 = vsel %vm1646, %v1647, %v1648
        %v1650 = vrot.slane %v1536, 2
        %v1651 = vsel %vm1646, %v1648, %v1650
        %v1652 = vrot.slane %v1539, 2
        %v1653 = vrot.slane %v1544, 2
        %v1654 = vsel %vm1646, %v1652, %v1653
        %v1655 = vrot.slane %v1547, 2
        %v1656 = vsel %vm1646, %v1653, %v1655
        %v1657 = vrot.slane %v1552, 2
        %v1658 = vrot.slane %v1555, 2
        %v1659 = vsel %vm1646, %v1657, %v1658
        %v1660 = vrot.slane %v1560, 2
        %v1661 = vsel %vm1646, %v1658, %v1660
        %v1662 = vrot.slane %v1563, 2
        %v1663 = vrot.slane %v1568, 2
        %v1664 = vsel %vm1646, %v1662, %v1663
        %v1665 = vrot.slane %v1571, 2
        %v1666 = vsel %vm1646, %v1663, %v1665
        %v1667 = vrot.slane %v1576, 2
        %v1668 = vrot.slane %v1579, 2
        %v1669 = vsel %vm1646, %v1667, %v1668
        %v1670 = vrot.slane %v1584, 2
        %v1671 = vsel %vm1646, %v1668, %v1670
        %v1672 = vrot.slane %v1587, 2
        %v1673 = vrot.slane %v1592, 2
        %v1674 = vsel %vm1646, %v1672, %v1673
        %v1675 = vrot.slane %v1595, 2
        %v1676 = vsel %vm1646, %v1673, %v1675
        %v1677 = vrot.slane %v1600, 2
        %v1678 = vrot.slane %v1603, 2
        %v1679 = vsel %vm1646, %v1677, %v1678
        %v1680 = vrot.slane %v1608, 2
        %v1681 = vsel %vm1646, %v1678, %v1680
        %v1682 = vrot.slane %v1611, 2
        %v1683 = vrot.slane %v1616, 2
        %v1684 = vsel %vm1646, %v1682, %v1683
        %v1685 = vrot.slane %v1619, 2
        %v1686 = vsel %vm1646, %v1683, %v1685
        %v1703 = vadd.f32 %v1412, %v1649
        %v1704 = vadd.f32 %v1413, %v1651
        %v1705 = vadd.f32 %v1414, %v1654
        %v1706 = vadd.f32 %v1415, %v1656
        %v1707 = vadd.f32 %v1416, %v1659
        %v1708 = vadd.f32 %v1417, %v1661
        %v1709 = vadd.f32 %v1418, %v1664
        %v1710 = vadd.f32 %v1419, %v1666
        %v1711 = vadd.f32 %v1420, %v1669
        %v1712 = vadd.f32 %v1421, %v1671
        %v1713 = vadd.f32 %v1422, %v1674
        %v1714 = vadd.f32 %v1423, %v1676
        %v1715 = vadd.f32 %v1424, %v1679
        %v1716 = vadd.f32 %v1425, %v1681
        %v1717 = vadd.f32 %v1426, %v1684
        %v1718 = vadd.f32 %v1427, %v1686
        %s1719 = scalar_lea.vmem [#allocation2], 12
        %v1720 = vld [vmem:[%s1719] sm:$0xf]
        %v1721 = vld [vmem:[%s1719 + $0x4] sm:$0xf]
        %v1722 = vld [vmem:[%s1719 + $0x8] sm:$0xf]
        %v1723 = vld [vmem:[%s1719 + $0xc] sm:$0xf]
        %v1724 = vld [vmem:[%s1719 + $0x10] sm:$0xf]
        %v1725 = vld [vmem:[%s1719 + $0x14] sm:$0xf]
        %v1726 = vld [vmem:[%s1719 + $0x18] sm:$0xf]
        %v1727 = vld [vmem:[%s1719 + $0x1c] sm:$0xf]
        %v1728 = vld [vmem:[%s1719 + $0x20] sm:$0xf]
        %v1729 = vld [vmem:[%s1719 + $0x24] sm:$0xf]
        %v1730 = vld [vmem:[%s1719 + $0x28] sm:$0xf]
        %v1731 = vld [vmem:[%s1719 + $0x2c] sm:$0xf]
        %v1732 = vld [vmem:[%s1719 + $0x30] sm:$0xf]
        %v1733 = vld [vmem:[%s1719 + $0x34] sm:$0xf]
        %v1734 = vld [vmem:[%s1719 + $0x38] sm:$0xf]
        %v1735 = vld [vmem:[%s1719 + $0x3c] sm:$0xf]
        %v1736 = vld [vmem:[%s1719 + $0x40] sm:$0xf]
        %v1737 = vld [vmem:[%s1719 + $0x44] sm:$0xf]
        %v1738 = vld [vmem:[%s1719 + $0x48] sm:$0xf]
        %v1739 = vld [vmem:[%s1719 + $0x4c] sm:$0xf]
        %v1740 = vld [vmem:[%s1719 + $0x50] sm:$0xf]
        %v1741 = vld [vmem:[%s1719 + $0x54] sm:$0xf]
        %v1742 = vld [vmem:[%s1719 + $0x58] sm:$0xf]
        %v1743 = vld [vmem:[%s1719 + $0x5c] sm:$0xf]
        %s1744 = scalar_lea.vmem [#allocation9], 192
        %v1745 = vld [vmem:[%s1744] sm:$0xf]
        %v1746 = vld [vmem:[%s1744 + $0x4] sm:$0xf]
        %v1747 = vld [vmem:[%s1744 + $0x8] sm:$0xf]
        %v1748 = vld [vmem:[%s1744 + $0xc] sm:$0xf]
        %v1749 = vld [vmem:[%s1744 + $0x10] sm:$0xf]
        %v1750 = vld [vmem:[%s1744 + $0x14] sm:$0xf]
        %v1751 = vld [vmem:[%s1744 + $0x18] sm:$0xf]
        %v1752 = vld [vmem:[%s1744 + $0x1c] sm:$0xf]
        %v1753 = vld [vmem:[%s1744 + $0x20] sm:$0xf]
        %v1754 = vld [vmem:[%s1744 + $0x24] sm:$0xf]
        %v1755 = vld [vmem:[%s1744 + $0x28] sm:$0xf]
        %v1756 = vld [vmem:[%s1744 + $0x2c] sm:$0xf]
        %v1757 = vld [vmem:[%s1744 + $0x30] sm:$0xf]
        %v1758 = vld [vmem:[%s1744 + $0x34] sm:$0xf]
        %v1759 = vld [vmem:[%s1744 + $0x38] sm:$0xf]
        %v1760 = vld [vmem:[%s1744 + $0x3c] sm:$0xf]
        %v1785 = vunpack.c.l.b16 %v1720
        %v1786 = vunpack.c.l.b16 %v1721
        %v1787 = vunpack.c.l.b16 %v1722
        %v1788 = vunpack.c.l.b16 %v1723
        %v1789 = vunpack.c.l.b16 %v1724
        %v1790 = vunpack.c.l.b16 %v1725
        %v1791 = vunpack.c.l.b16 %v1726
        %v1792 = vunpack.c.l.b16 %v1727
        %v1793 = vunpack.c.l.b16 %v1728
        %v1794 = vunpack.c.l.b16 %v1729
        %v1795 = vunpack.c.l.b16 %v1730
        %v1796 = vunpack.c.l.b16 %v1731
        %v1797 = vunpack.c.l.b16 %v1732
        %v1798 = vunpack.c.l.b16 %v1733
        %v1799 = vunpack.c.l.b16 %v1734
        %v1800 = vunpack.c.l.b16 %v1735
        %v1801 = vunpack.c.l.b16 %v1736
        %v1802 = vunpack.c.l.b16 %v1737
        %v1803 = vunpack.c.l.b16 %v1738
        %v1804 = vunpack.c.l.b16 %v1739
        %v1805 = vunpack.c.l.b16 %v1740
        %v1806 = vunpack.c.l.b16 %v1741
        %v1807 = vunpack.c.l.b16 %v1742
        %v1808 = vunpack.c.l.b16 %v1743
        %v1809 = vpack.c.b16 %v1786, %v1785
        %v1810 = vpack.c.b16 %v1788, %v1787
        %v1811 = vpack.c.b16 %v1790, %v1789
        %v1812 = vpack.c.b16 %v1792, %v1791
        %v1813 = vpack.c.b16 %v1794, %v1793
        %v1814 = vpack.c.b16 %v1796, %v1795
        %v1815 = vpack.c.b16 %v1798, %v1797
        %v1816 = vpack.c.b16 %v1800, %v1799
        %v1817 = vpack.c.b16 %v1802, %v1801
        %v1818 = vpack.c.b16 %v1804, %v1803
        %v1819 = vpack.c.b16 %v1806, %v1805
        %v1820 = vpack.c.b16 %v1808, %v1807
        %v1849 = vunpack.c.l.b16 %v1745
        %v1850 = vunpack.c.l.b16 %v1746
        %v1851 = vunpack.c.l.b16 %v1747
        %v1852 = vunpack.c.l.b16 %v1748
        %v1853 = vunpack.c.l.b16 %v1749
        %v1854 = vunpack.c.l.b16 %v1750
        %v1855 = vunpack.c.l.b16 %v1751
        %v1856 = vunpack.c.l.b16 %v1752
        %v1857 = vunpack.c.l.b16 %v1753
        %v1858 = vunpack.c.l.b16 %v1754
        %v1859 = vunpack.c.l.b16 %v1755
        %v1860 = vunpack.c.l.b16 %v1756
        %v1861 = vunpack.c.l.b16 %v1757
        %v1862 = vunpack.c.l.b16 %v1758
        %v1863 = vunpack.c.l.b16 %v1759
        %v1864 = vunpack.c.l.b16 %v1760
        %v1865 = vpack.c.b16 %v1850, %v1849
        %v1866 = vpack.c.b16 %v1852, %v1851
        %v1867 = vpack.c.b16 %v1854, %v1853
        %v1868 = vpack.c.b16 %v1856, %v1855
        %v1869 = vpack.c.b16 %v1858, %v1857
        %v1870 = vpack.c.b16 %v1860, %v1859
        %v1871 = vpack.c.b16 %v1862, %v1861
        %v1872 = vpack.c.b16 %v1864, %v1863
        %1881 = vmatprep.subr.bf16.mxu0 0
        %1882 = vmatpush1.bf16.msra.mxu0 %v1865
        %1883 = vmatprep.subr.bf16.mxu0 0
        %1884 = vmatpush1.bf16.msra.mxu0 %v1866
        %1885 = vmatprep.subr.bf16.mxu0 0
        %1886 = vmatpush1.bf16.msra.mxu0 %v1867
        %1887 = vmatprep.subr.bf16.mxu0 0
        %1888 = vmatpush1.bf16.msra.mxu0 %v1868
        %1889 = vmatprep.subr.bf16.mxu0 0
        %1890 = vmatpush1.bf16.msra.mxu0 %v1869
        %1891 = vmatprep.subr.bf16.mxu0 0
        %1892 = vmatpush1.bf16.msra.mxu0 %v1870
        %1893 = vmatprep.subr.bf16.mxu0 0
        %1894 = vmatpush1.bf16.msra.mxu0 %v1871
        %1895 = vmatprep.subr.bf16.mxu0 0
        %1896 = vmatpush1.bf16.msra.mxu0 %v1872
        %1897 = vmatprep.subr.bf16.mxu0 0
        %1898 = vmatpush1.bf16.msra.mxu0 0
        %1899 = vmatprep.subr.bf16.mxu0 0
        %1900 = vmatpush1.bf16.msra.mxu0 0
        %1901 = vmatprep.subr.bf16.mxu0 0
        %1902 = vmatpush1.bf16.msra.mxu0 0
        %1903 = vmatprep.subr.bf16.mxu0 0
        %1904 = vmatpush1.bf16.msra.mxu0 0
        %1905 = vmatprep.subr.bf16.mxu0 0
        %1906 = vmatpush1.bf16.msra.mxu0 0
        %1907 = vmatprep.subr.bf16.mxu0 0
        %1908 = vmatpush1.bf16.msra.mxu0 0
        %1909 = vmatprep.subr.bf16.mxu0 0
        %1910 = vmatpush1.bf16.msra.mxu0 0
        %1911 = vmatprep.subr.bf16.mxu0 0
        %1912 = vmatpush1.bf16.msra.mxu0 0
        %1913 = vmatprep.mubr.bf16.mxu0 0
        %1914 = vmatmul.mubr.bf16.gmra.mrb[0].mxu0 %v1809
        %v1915 = vpop.f32.mrb[0].mxu0
        %v1916 = vadd.f32 0.0, %v1915
        %v1917 = vpop.f32.mrb[0].mxu0
        %v1918 = vpop.f32.mrb[0].mxu0
        %v1919 = vadd.f32 0.0, %v1918
        %v1920 = vpop.f32.mrb[0].mxu0
        %1921 = vmatprep.mubr.bf16.mxu0 0
        %1922 = vmatmul.mubr.bf16.gmra.mrb[0].mxu0 %v1810
        %v1923 = vpop.f32.mrb[0].mxu0
        %v1924 = vpop.f32.mrb[0].mxu0
        %v1925 = vpop.f32.mrb[0].mxu0
        %v1926 = vadd.f32 0.0, %v1925
        %v1927 = vpop.f32.mrb[0].mxu0
        %1928 = vmatprep.mubr.bf16.mxu0 0
        %1929 = vmatmul.mubr.bf16.gmra.mrb[0].mxu0 %v1811
        %v1930 = vpop.f32.mrb[0].mxu0
        %v1931 = vadd.f32 0.0, %v1930
        %v1932 = vpop.f32.mrb[0].mxu0
        %v1933 = vpop.f32.mrb[0].mxu0
        %v1934 = vpop.f32.mrb[0].mxu0
        %1935 = vmatprep.mubr.bf16.mxu0 0
        %1936 = vmatmul.mubr.bf16.gmra.mrb[0].mxu0 %v1812
        %v1937 = vpop.f32.mrb[0].mxu0
        %v1938 = vadd.f32 0.0, %v1937
        %v1939 = vpop.f32.mrb[0].mxu0
        %v1940 = vpop.f32.mrb[0].mxu0
        %v1941 = vadd.f32 0.0, %v1940
        %v1942 = vpop.f32.mrb[0].mxu0
        %1943 = vmatprep.mubr.bf16.mxu0 0
        %1944 = vmatmul.mubr.bf16.gmra.mrb[0].mxu0 %v1813
        %v1945 = vpop.f32.mrb[0].mxu0
        %v1946 = vpop.f32.mrb[0].mxu0
        %v1947 = vpop.f32.mrb[0].mxu0
        %v1948 = vadd.f32 0.0, %v1947
        %v1949 = vpop.f32.mrb[0].mxu0
        %1950 = vmatprep.mubr.bf16.mxu0 0
        %1951 = vmatmul.mubr.bf16.gmra.mrb[0].mxu0 %v1814
        %v1952 = vpop.f32.mrb[0].mxu0
        %v1953 = vadd.f32 0.0, %v1952
        %v1954 = vpop.f32.mrb[0].mxu0
        %v1955 = vpop.f32.mrb[0].mxu0
        %v1956 = vpop.f32.mrb[0].mxu0
        %1957 = vmatprep.mubr.bf16.mxu0 0
        %1958 = vmatmul.mubr.bf16.gmra.mrb[0].mxu0 %v1815
        %v1959 = vpop.f32.mrb[0].mxu0
        %v1960 = vadd.f32 0.0, %v1959
        %v1961 = vpop.f32.mrb[0].mxu0
        %v1962 = vpop.f32.mrb[0].mxu0
        %v1963 = vadd.f32 0.0, %v1962
        %v1964 = vpop.f32.mrb[0].mxu0
        %1965 = vmatprep.mubr.bf16.mxu0 0
        %1966 = vmatmul.mubr.bf16.gmra.mrb[0].mxu0 %v1816
        %v1967 = vpop.f32.mrb[0].mxu0
        %v1968 = vpop.f32.mrb[0].mxu0
        %v1969 = vpop.f32.mrb[0].mxu0
        %v1970 = vadd.f32 0.0, %v1969
        %v1971 = vpop.f32.mrb[0].mxu0
        %1972 = vmatprep.mubr.bf16.mxu0 0
        %1973 = vmatmul.mubr.bf16.gmra.mrb[0].mxu0 %v1817
        %v1974 = vpop.f32.mrb[0].mxu0
        %v1975 = vadd.f32 0.0, %v1974
        %v1976 = vpop.f32.mrb[0].mxu0
        %v1977 = vpop.f32.mrb[0].mxu0
        %v1978 = vpop.f32.mrb[0].mxu0
        %1979 = vmatprep.mubr.bf16.mxu0 0
        %1980 = vmatmul.mubr.bf16.gmra.mrb[0].mxu0 %v1818
        %v1981 = vpop.f32.mrb[0].mxu0
        %v1982 = vadd.f32 0.0, %v1981
        %v1983 = vpop.f32.mrb[0].mxu0
        %v1984 = vpop.f32.mrb[0].mxu0
        %v1985 = vadd.f32 0.0, %v1984
        %v1986 = vpop.f32.mrb[0].mxu0
        %1987 = vmatprep.mubr.bf16.mxu0 0
        %1988 = vmatmul.mubr.bf16.gmra.mrb[0].mxu0 %v1819
        %v1989 = vpop.f32.mrb[0].mxu0
        %v1990 = vpop.f32.mrb[0].mxu0
        %v1991 = vpop.f32.mrb[0].mxu0
        %v1992 = vadd.f32 0.0, %v1991
        %v1993 = vpop.f32.mrb[0].mxu0
        %1994 = vmatprep.mubr.bf16.mxu0 0
        %1995 = vmatmul.mubr.bf16.gmra.mrb[0].mxu0 %v1820
        %v1996 = vpop.f32.mrb[0].mxu0
        %v1997 = vadd.f32 0.0, %v1996
        %v1998 = vpop.f32.mrb[0].mxu0
        %v1999 = vpop.f32.mrb[0].mxu0
        %v2000 = vpop.f32.mrb[0].mxu0
        %2001 = vdwg.mxu0
        %v2002 = vadd.f32 %v1703, %v1916
        %v2003 = vadd.f32 %v1704, %v1919
        %v2004 = vadd.f32 %v1705, %v1926
        %v2005 = vadd.f32 %v1706, %v1931
        %v2006 = vadd.f32 %v1707, %v1938
        %v2007 = vadd.f32 %v1708, %v1941
        %v2008 = vadd.f32 %v1709, %v1948
        %v2009 = vadd.f32 %v1710, %v1953
        %v2010 = vadd.f32 %v1711, %v1960
        %v2011 = vadd.f32 %v1712, %v1963
        %v2012 = vadd.f32 %v1713, %v1970
        %v2013 = vadd.f32 %v1714, %v1975
        %v2014 = vadd.f32 %v1715, %v1982
        %v2015 = vadd.f32 %v1716, %v1985
        %v2016 = vadd.f32 %v1717, %v1992
        %v2017 = vadd.f32 %v1718, %v1997
        %s2018 = scalar_lea.vmem [#allocation9], 256
        %v2019 = vld [vmem:[%s2018] sm:$0xf]
        %v2020 = vld [vmem:[%s2018 + $0x4] sm:$0xf]
        %v2021 = vld [vmem:[%s2018 + $0x8] sm:$0xf]
        %v2022 = vld [vmem:[%s2018 + $0xc] sm:$0xf]
        %v2023 = vld [vmem:[%s2018 + $0x10] sm:$0xf]
        %v2024 = vld [vmem:[%s2018 + $0x14] sm:$0xf]
        %v2025 = vld [vmem:[%s2018 + $0x18] sm:$0xf]
        %v2026 = vld [vmem:[%s2018 + $0x1c] sm:$0xf]
        %v2027 = vld [vmem:[%s2018 + $0x20] sm:$0xf]
        %v2028 = vld [vmem:[%s2018 + $0x24] sm:$0xf]
        %v2029 = vld [vmem:[%s2018 + $0x28] sm:$0xf]
        %v2030 = vld [vmem:[%s2018 + $0x2c] sm:$0xf]
        %v2031 = vld [vmem:[%s2018 + $0x30] sm:$0xf]
        %v2032 = vld [vmem:[%s2018 + $0x34] sm:$0xf]
        %v2033 = vld [vmem:[%s2018 + $0x38] sm:$0xf]
        %v2034 = vld [vmem:[%s2018 + $0x3c] sm:$0xf]
        %v2051 = vunpack.c.l.b16 %v2019
        %v2052 = vunpack.c.l.b16 %v2020
        %v2053 = vunpack.c.l.b16 %v2021
        %v2054 = vunpack.c.l.b16 %v2022
        %v2055 = vunpack.c.l.b16 %v2023
        %v2056 = vunpack.c.l.b16 %v2024
        %v2057 = vunpack.c.l.b16 %v2025
        %v2058 = vunpack.c.l.b16 %v2026
        %v2059 = vunpack.c.l.b16 %v2027
        %v2060 = vunpack.c.l.b16 %v2028
        %v2061 = vunpack.c.l.b16 %v2029
        %v2062 = vunpack.c.l.b16 %v2030
        %v2063 = vunpack.c.l.b16 %v2031
        %v2064 = vunpack.c.l.b16 %v2032
        %v2065 = vunpack.c.l.b16 %v2033
        %v2066 = vunpack.c.l.b16 %v2034
        %v2067 = vpack.c.b16 %v2052, %v2051
        %v2068 = vpack.c.b16 %v2054, %v2053
        %v2069 = vpack.c.b16 %v2056, %v2055
        %v2070 = vpack.c.b16 %v2058, %v2057
        %v2071 = vpack.c.b16 %v2060, %v2059
        %v2072 = vpack.c.b16 %v2062, %v2061
        %v2073 = vpack.c.b16 %v2064, %v2063
        %v2074 = vpack.c.b16 %v2066, %v2065
        %2083 = vmatprep.subr.bf16.mxu0 0
        %2084 = vmatpush1.bf16.msra.mxu0 %v2067
        %2085 = vmatprep.subr.bf16.mxu0 0
        %2086 = vmatpush1.bf16.msra.mxu0 %v2068
        %2087 = vmatprep.subr.bf16.mxu0 0
        %2088 = vmatpush1.bf16.msra.mxu0 %v2069
        %2089 = vmatprep.subr.bf16.mxu0 0
        %2090 = vmatpush1.bf16.msra.mxu0 %v2070
        %2091 = vmatprep.subr.bf16.mxu0 0
        %2092 = vmatpush1.bf16.msra.mxu0 %v2071
        %2093 = vmatprep.subr.bf16.mxu0 0
        %2094 = vmatpush1.bf16.msra.mxu0 %v2072
        %2095 = vmatprep.subr.bf16.mxu0 0
        %2096 = vmatpush1.bf16.msra.mxu0 %v2073
        %2097 = vmatprep.subr.bf16.mxu0 0
        %2098 = vmatpush1.bf16.msra.mxu0 %v2074
        %2099 = vmatprep.subr.bf16.mxu0 0
        %2100 = vmatpush1.bf16.msra.mxu0 0
        %2101 = vmatprep.subr.bf16.mxu0 0
        %2102 = vmatpush1.bf16.msra.mxu0 0
        %2103 = vmatprep.subr.bf16.mxu0 0
        %2104 = vmatpush1.bf16.msra.mxu0 0
        %2105 = vmatprep.subr.bf16.mxu0 0
        %2106 = vmatpush1.bf16.msra.mxu0 0
        %2107 = vmatprep.subr.bf16.mxu0 0
        %2108 = vmatpush1.bf16.msra.mxu0 0
        %2109 = vmatprep.subr.bf16.mxu0 0
        %2110 = vmatpush1.bf16.msra.mxu0 0
        %2111 = vmatprep.subr.bf16.mxu0 0
        %2112 = vmatpush1.bf16.msra.mxu0 0
        %2113 = vmatprep.subr.bf16.mxu0 0
        %2114 = vmatpush1.bf16.msra.mxu0 0
        %2115 = vmatprep.mubr.bf16.mxu0 0
        %2116 = vmatmul.mubr.bf16.gmra.mrb[0].mxu0 %v1809
        %v2117 = vpop.f32.mrb[0].mxu0
        %v2118 = vadd.f32 0.0, %v2117
        %v2119 = vpop.f32.mrb[0].mxu0
        %v2120 = vpop.f32.mrb[0].mxu0
        %v2121 = vadd.f32 0.0, %v2120
        %v2122 = vpop.f32.mrb[0].mxu0
        %2123 = vmatprep.mubr.bf16.mxu0 0
        %2124 = vmatmul.mubr.bf16.gmra.mrb[0].mxu0 %v1810
        %v2125 = vpop.f32.mrb[0].mxu0
        %v2126 = vadd.f32 0.0, %v2125
        %v2127 = vpop.f32.mrb[0].mxu0
        %v2128 = vpop.f32.mrb[0].mxu0
        %v2129 = vadd.f32 0.0, %v2128
        %v2130 = vpop.f32.mrb[0].mxu0
        %2131 = vmatprep.mubr.bf16.mxu0 0
        %2132 = vmatmul.mubr.bf16.gmra.mrb[0].mxu0 %v1811
        %v2133 = vpop.f32.mrb[0].mxu0
        %v2134 = vadd.f32 0.0, %v2133
        %v2135 = vpop.f32.mrb[0].mxu0
        %v2136 = vpop.f32.mrb[0].mxu0
        %v2137 = vadd.f32 0.0, %v2136
        %v2138 = vpop.f32.mrb[0].mxu0
        %2139 = vmatprep.mubr.bf16.mxu0 0
        %2140 = vmatmul.mubr.bf16.gmra.mrb[0].mxu0 %v1812
        %v2141 = vpop.f32.mrb[0].mxu0
        %v2142 = vadd.f32 0.0, %v2141
        %v2143 = vpop.f32.mrb[0].mxu0
        %v2144 = vpop.f32.mrb[0].mxu0
        %v2145 = vadd.f32 0.0, %v2144
        %v2146 = vpop.f32.mrb[0].mxu0
        %2147 = vmatprep.mubr.bf16.mxu0 0
        %2148 = vmatmul.mubr.bf16.gmra.mrb[0].mxu0 %v1813
        %v2149 = vpop.f32.mrb[0].mxu0
        %v2150 = vadd.f32 0.0, %v2149
        %v2151 = vpop.f32.mrb[0].mxu0
        %v2152 = vpop.f32.mrb[0].mxu0
        %v2153 = vadd.f32 0.0, %v2152
        %v2154 = vpop.f32.mrb[0].mxu0
        %2155 = vmatprep.mubr.bf16.mxu0 0
        %2156 = vmatmul.mubr.bf16.gmra.mrb[0].mxu0 %v1814
        %v2157 = vpop.f32.mrb[0].mxu0
        %v2158 = vadd.f32 0.0, %v2157
        %v2159 = vpop.f32.mrb[0].mxu0
        %v2160 = vpop.f32.mrb[0].mxu0
        %v2161 = vadd.f32 0.0, %v2160
        %v2162 = vpop.f32.mrb[0].mxu0
        %2163 = vmatprep.mubr.bf16.mxu0 0
        %2164 = vmatmul.mubr.bf16.gmra.mrb[0].mxu0 %v1815
        %v2165 = vpop.f32.mrb[0].mxu0
        %v2166 = vadd.f32 0.0, %v2165
        %v2167 = vpop.f32.mrb[0].mxu0
        %v2168 = vpop.f32.mrb[0].mxu0
        %v2169 = vadd.f32 0.0, %v2168
        %v2170 = vpop.f32.mrb[0].mxu0
        %2171 = vmatprep.mubr.bf16.mxu0 0
        %2172 = vmatmul.mubr.bf16.gmra.mrb[0].mxu0 %v1816
        %v2173 = vpop.f32.mrb[0].mxu0
        %v2174 = vadd.f32 0.0, %v2173
        %v2175 = vpop.f32.mrb[0].mxu0
        %v2176 = vpop.f32.mrb[0].mxu0
        %v2177 = vadd.f32 0.0, %v2176
        %v2178 = vpop.f32.mrb[0].mxu0
        %2179 = vmatprep.mubr.bf16.mxu0 0
        %2180 = vmatmul.mubr.bf16.gmra.mrb[0].mxu0 %v1817
        %v2181 = vpop.f32.mrb[0].mxu0
        %v2182 = vadd.f32 0.0, %v2181
        %v2183 = vpop.f32.mrb[0].mxu0
        %v2184 = vpop.f32.mrb[0].mxu0
        %v2185 = vadd.f32 0.0, %v2184
        %v2186 = vpop.f32.mrb[0].mxu0
        %2187 = vmatprep.mubr.bf16.mxu0 0
        %2188 = vmatmul.mubr.bf16.gmra.mrb[0].mxu0 %v1818
        %v2189 = vpop.f32.mrb[0].mxu0
        %v2190 = vadd.f32 0.0, %v2189
        %v2191 = vpop.f32.mrb[0].mxu0
        %v2192 = vpop.f32.mrb[0].mxu0
        %v2193 = vadd.f32 0.0, %v2192
        %v2194 = vpop.f32.mrb[0].mxu0
        %2195 = vmatprep.mubr.bf16.mxu0 0
        %2196 = vmatmul.mubr.bf16.gmra.mrb[0].mxu0 %v1819
        %v2197 = vpop.f32.mrb[0].mxu0
        %v2198 = vadd.f32 0.0, %v2197
        %v2199 = vpop.f32.mrb[0].mxu0
        %v2200 = vpop.f32.mrb[0].mxu0
        %v2201 = vadd.f32 0.0, %v2200
        %v2202 = vpop.f32.mrb[0].mxu0
        %2203 = vmatprep.mubr.bf16.mxu0 0
        %2204 = vmatmul.mubr.bf16.gmra.mrb[0].mxu0 %v1820
        %v2205 = vpop.f32.mrb[0].mxu0
        %v2206 = vadd.f32 0.0, %v2205
        %v2207 = vpop.f32.mrb[0].mxu0
        %v2208 = vpop.f32.mrb[0].mxu0
        %v2209 = vadd.f32 0.0, %v2208
        %v2210 = vpop.f32.mrb[0].mxu0
        %2211 = vdwg.mxu0
        %v2236 = vrot.slane %v2118, 1
        %v2237 = vrot.slane %v2121, 1
        %v2238 = vsel %vm1355, %v2236, %v2237
        %v2239 = vrot.slane %v2126, 1
        %v2240 = vsel %vm1355, %v2237, %v2239
        %v2241 = vrot.slane %v2129, 1
        %v2242 = vrot.slane %v2134, 1
        %v2243 = vsel %vm1355, %v2241, %v2242
        %v2244 = vrot.slane %v2137, 1
        %v2245 = vsel %vm1355, %v2242, %v2244
        %v2246 = vrot.slane %v2142, 1
        %v2247 = vrot.slane %v2145, 1
        %v2248 = vsel %vm1355, %v2246, %v2247
        %v2249 = vrot.slane %v2150, 1
        %v2250 = vsel %vm1355, %v2247, %v2249
        %v2251 = vrot.slane %v2153, 1
        %v2252 = vrot.slane %v2158, 1
        %v2253 = vsel %vm1355, %v2251, %v2252
        %v2254 = vrot.slane %v2161, 1
        %v2255 = vsel %vm1355, %v2252, %v2254
        %v2256 = vrot.slane %v2166, 1
        %v2257 = vrot.slane %v2169, 1
        %v2258 = vsel %vm1355, %v2256, %v2257
        %v2259 = vrot.slane %v2174, 1
        %v2260 = vsel %vm1355, %v2257, %v2259
        %v2261 = vrot.slane %v2177, 1
        %v2262 = vrot.slane %v2182, 1
        %v2263 = vsel %vm1355, %v2261, %v2262
        %v2264 = vrot.slane %v2185, 1
        %v2265 = vsel %vm1355, %v2262, %v2264
        %v2266 = vrot.slane %v2190, 1
        %v2267 = vrot.slane %v2193, 1
        %v2268 = vsel %vm1355, %v2266, %v2267
        %v2269 = vrot.slane %v2198, 1
        %v2270 = vsel %vm1355, %v2267, %v2269
        %v2271 = vrot.slane %v2201, 1
        %v2272 = vrot.slane %v2206, 1
        %v2273 = vsel %vm1355, %v2271, %v2272
        %v2274 = vrot.slane %v2209, 1
        %v2275 = vsel %vm1355, %v2272, %v2274
        %v2292 = vadd.f32 %v2002, %v2238
        %v2293 = vadd.f32 %v2003, %v2240
        %v2294 = vadd.f32 %v2004, %v2243
        %v2295 = vadd.f32 %v2005, %v2245
        %v2296 = vadd.f32 %v2006, %v2248
        %v2297 = vadd.f32 %v2007, %v2250
        %v2298 = vadd.f32 %v2008, %v2253
        %v2299 = vadd.f32 %v2009, %v2255
        %v2300 = vadd.f32 %v2010, %v2258
        %v2301 = vadd.f32 %v2011, %v2260
        %v2302 = vadd.f32 %v2012, %v2263
        %v2303 = vadd.f32 %v2013, %v2265
        %v2304 = vadd.f32 %v2014, %v2268
        %v2305 = vadd.f32 %v2015, %v2270
        %v2306 = vadd.f32 %v2016, %v2273
        %v2307 = vadd.f32 %v2017, %v2275
        %s2308 = scalar_lea.vmem [#allocation9], 320
        %v2309 = vld [vmem:[%s2308] sm:$0xf]
        %v2310 = vld [vmem:[%s2308 + $0x4] sm:$0xf]
        %v2311 = vld [vmem:[%s2308 + $0x8] sm:$0xf]
        %v2312 = vld [vmem:[%s2308 + $0xc] sm:$0xf]
        %v2313 = vld [vmem:[%s2308 + $0x10] sm:$0xf]
        %v2314 = vld [vmem:[%s2308 + $0x14] sm:$0xf]
        %v2315 = vld [vmem:[%s2308 + $0x18] sm:$0xf]
        %v2316 = vld [vmem:[%s2308 + $0x1c] sm:$0xf]
        %v2317 = vld [vmem:[%s2308 + $0x20] sm:$0xf]
        %v2318 = vld [vmem:[%s2308 + $0x24] sm:$0xf]
        %v2319 = vld [vmem:[%s2308 + $0x28] sm:$0xf]
        %v2320 = vld [vmem:[%s2308 + $0x2c] sm:$0xf]
        %v2321 = vld [vmem:[%s2308 + $0x30] sm:$0xf]
        %v2322 = vld [vmem:[%s2308 + $0x34] sm:$0xf]
        %v2323 = vld [vmem:[%s2308 + $0x38] sm:$0xf]
        %v2324 = vld [vmem:[%s2308 + $0x3c] sm:$0xf]
        %v2341 = vunpack.c.l.b16 %v2309
        %v2342 = vunpack.c.l.b16 %v2310
        %v2343 = vunpack.c.l.b16 %v2311
        %v2344 = vunpack.c.l.b16 %v2312
        %v2345 = vunpack.c.l.b16 %v2313
        %v2346 = vunpack.c.l.b16 %v2314
        %v2347 = vunpack.c.l.b16 %v2315
        %v2348 = vunpack.c.l.b16 %v2316
        %v2349 = vunpack.c.l.b16 %v2317
        %v2350 = vunpack.c.l.b16 %v2318
        %v2351 = vunpack.c.l.b16 %v2319
        %v2352 = vunpack.c.l.b16 %v2320
        %v2353 = vunpack.c.l.b16 %v2321
        %v2354 = vunpack.c.l.b16 %v2322
        %v2355 = vunpack.c.l.b16 %v2323
        %v2356 = vunpack.c.l.b16 %v2324
        %v2357 = vpack.c.b16 %v2342, %v2341
        %v2358 = vpack.c.b16 %v2344, %v2343
        %v2359 = vpack.c.b16 %v2346, %v2345
        %v2360 = vpack.c.b16 %v2348, %v2347
        %v2361 = vpack.c.b16 %v2350, %v2349
        %v2362 = vpack.c.b16 %v2352, %v2351
        %v2363 = vpack.c.b16 %v2354, %v2353
        %v2364 = vpack.c.b16 %v2356, %v2355
        %2373 = vmatprep.subr.bf16.mxu0 0
        %2374 = vmatpush1.bf16.msra.mxu0 %v2357
        %2375 = vmatprep.subr.bf16.mxu0 0
        %2376 = vmatpush1.bf16.msra.mxu0 %v2358
        %2377 = vmatprep.subr.bf16.mxu0 0
        %2378 = vmatpush1.bf16.msra.mxu0 %v2359
        %2379 = vmatprep.subr.bf16.mxu0 0
        %2380 = vmatpush1.bf16.msra.mxu0 %v2360
        %2381 = vmatprep.subr.bf16.mxu0 0
        %2382 = vmatpush1.bf16.msra.mxu0 %v2361
        %2383 = vmatprep.subr.bf16.mxu0 0
        %2384 = vmatpush1.bf16.msra.mxu0 %v2362
        %2385 = vmatprep.subr.bf16.mxu0 0
        %2386 = vmatpush1.bf16.msra.mxu0 %v2363
        %2387 = vmatprep.subr.bf16.mxu0 0
        %2388 = vmatpush1.bf16.msra.mxu0 %v2364
        %2389 = vmatprep.subr.bf16.mxu0 0
        %2390 = vmatpush1.bf16.msra.mxu0 0
        %2391 = vmatprep.subr.bf16.mxu0 0
        %2392 = vmatpush1.bf16.msra.mxu0 0
        %2393 = vmatprep.subr.bf16.mxu0 0
        %2394 = vmatpush1.bf16.msra.mxu0 0
        %2395 = vmatprep.subr.bf16.mxu0 0
        %2396 = vmatpush1.bf16.msra.mxu0 0
        %2397 = vmatprep.subr.bf16.mxu0 0
        %2398 = vmatpush1.bf16.msra.mxu0 0
        %2399 = vmatprep.subr.bf16.mxu0 0
        %2400 = vmatpush1.bf16.msra.mxu0 0
        %2401 = vmatprep.subr.bf16.mxu0 0
        %2402 = vmatpush1.bf16.msra.mxu0 0
        %2403 = vmatprep.subr.bf16.mxu0 0
        %2404 = vmatpush1.bf16.msra.mxu0 0
        %2405 = vmatprep.mubr.bf16.mxu0 0
        %2406 = vmatmul.mubr.bf16.gmra.mrb[0].mxu0 %v1809
        %v2407 = vpop.f32.mrb[0].mxu0
        %v2408 = vadd.f32 0.0, %v2407
        %v2409 = vpop.f32.mrb[0].mxu0
        %v2410 = vpop.f32.mrb[0].mxu0
        %v2411 = vadd.f32 0.0, %v2410
        %v2412 = vpop.f32.mrb[0].mxu0
        %2413 = vmatprep.mubr.bf16.mxu0 0
        %2414 = vmatmul.mubr.bf16.gmra.mrb[0].mxu0 %v1810
        %v2415 = vpop.f32.mrb[0].mxu0
        %v2416 = vadd.f32 0.0, %v2415
        %v2417 = vpop.f32.mrb[0].mxu0
        %v2418 = vpop.f32.mrb[0].mxu0
        %v2419 = vadd.f32 0.0, %v2418
        %v2420 = vpop.f32.mrb[0].mxu0
        %2421 = vmatprep.mubr.bf16.mxu0 0
        %2422 = vmatmul.mubr.bf16.gmra.mrb[0].mxu0 %v1811
        %v2423 = vpop.f32.mrb[0].mxu0
        %v2424 = vadd.f32 0.0, %v2423
        %v2425 = vpop.f32.mrb[0].mxu0
        %v2426 = vpop.f32.mrb[0].mxu0
        %v2427 = vadd.f32 0.0, %v2426
        %v2428 = vpop.f32.mrb[0].mxu0
        %2429 = vmatprep.mubr.bf16.mxu0 0
        %2430 = vmatmul.mubr.bf16.gmra.mrb[0].mxu0 %v1812
        %v2431 = vpop.f32.mrb[0].mxu0
        %v2432 = vadd.f32 0.0, %v2431
        %v2433 = vpop.f32.mrb[0].mxu0
        %v2434 = vpop.f32.mrb[0].mxu0
        %v2435 = vadd.f32 0.0, %v2434
        %v2436 = vpop.f32.mrb[0].mxu0
        %2437 = vmatprep.mubr.bf16.mxu0 0
        %2438 = vmatmul.mubr.bf16.gmra.mrb[0].mxu0 %v1813
        %v2439 = vpop.f32.mrb[0].mxu0
        %v2440 = vadd.f32 0.0, %v2439
        %v2441 = vpop.f32.mrb[0].mxu0
        %v2442 = vpop.f32.mrb[0].mxu0
        %v2443 = vadd.f32 0.0, %v2442
        %v2444 = vpop.f32.mrb[0].mxu0
        %2445 = vmatprep.mubr.bf16.mxu0 0
        %2446 = vmatmul.mubr.bf16.gmra.mrb[0].mxu0 %v1814
        %v2447 = vpop.f32.mrb[0].mxu0
        %v2448 = vadd.f32 0.0, %v2447
        %v2449 = vpop.f32.mrb[0].mxu0
        %v2450 = vpop.f32.mrb[0].mxu0
        %v2451 = vadd.f32 0.0, %v2450
        %v2452 = vpop.f32.mrb[0].mxu0
        %2453 = vmatprep.mubr.bf16.mxu0 0
        %2454 = vmatmul.mubr.bf16.gmra.mrb[0].mxu0 %v1815
        %v2455 = vpop.f32.mrb[0].mxu0
        %v2456 = vadd.f32 0.0, %v2455
        %v2457 = vpop.f32.mrb[0].mxu0
        %v2458 = vpop.f32.mrb[0].mxu0
        %v2459 = vadd.f32 0.0, %v2458
        %v2460 = vpop.f32.mrb[0].mxu0
        %2461 = vmatprep.mubr.bf16.mxu0 0
        %2462 = vmatmul.mubr.bf16.gmra.mrb[0].mxu0 %v1816
        %v2463 = vpop.f32.mrb[0].mxu0
        %v2464 = vadd.f32 0.0, %v2463
        %v2465 = vpop.f32.mrb[0].mxu0
        %v2466 = vpop.f32.mrb[0].mxu0
        %v2467 = vadd.f32 0.0, %v2466
        %v2468 = vpop.f32.mrb[0].mxu0
        %2469 = vmatprep.mubr.bf16.mxu0 0
        %2470 = vmatmul.mubr.bf16.gmra.mrb[0].mxu0 %v1817
        %v2471 = vpop.f32.mrb[0].mxu0
        %v2472 = vadd.f32 0.0, %v2471
        %v2473 = vpop.f32.mrb[0].mxu0
        %v2474 = vpop.f32.mrb[0].mxu0
        %v2475 = vadd.f32 0.0, %v2474
        %v2476 = vpop.f32.mrb[0].mxu0
        %2477 = vmatprep.mubr.bf16.mxu0 0
        %2478 = vmatmul.mubr.bf16.gmra.mrb[0].mxu0 %v1818
        %v2479 = vpop.f32.mrb[0].mxu0
        %v2480 = vadd.f32 0.0, %v2479
        %v2481 = vpop.f32.mrb[0].mxu0
        %v2482 = vpop.f32.mrb[0].mxu0
        %v2483 = vadd.f32 0.0, %v2482
        %v2484 = vpop.f32.mrb[0].mxu0
        %2485 = vmatprep.mubr.bf16.mxu0 0
        %2486 = vmatmul.mubr.bf16.gmra.mrb[0].mxu0 %v1819
        %v2487 = vpop.f32.mrb[0].mxu0
        %v2488 = vadd.f32 0.0, %v2487
        %v2489 = vpop.f32.mrb[0].mxu0
        %v2490 = vpop.f32.mrb[0].mxu0
        %v2491 = vadd.f32 0.0, %v2490
        %v2492 = vpop.f32.mrb[0].mxu0
        %2493 = vmatprep.mubr.bf16.mxu0 0
        %2494 = vmatmul.mubr.bf16.gmra.mrb[0].mxu0 %v1820
        %v2495 = vpop.f32.mrb[0].mxu0
        %v2496 = vadd.f32 0.0, %v2495
        %v2497 = vpop.f32.mrb[0].mxu0
        %v2498 = vpop.f32.mrb[0].mxu0
        %v2499 = vadd.f32 0.0, %v2498
        %v2500 = vpop.f32.mrb[0].mxu0
        %2501 = vdwg.mxu0
        %v2526 = vrot.slane %v2408, 2
        %v2527 = vrot.slane %v2411, 2
        %v2528 = vsel %vm1646, %v2526, %v2527
        %v2529 = vrot.slane %v2416, 2
        %v2530 = vsel %vm1646, %v2527, %v2529
        %v2531 = vrot.slane %v2419, 2
        %v2532 = vrot.slane %v2424, 2
        %v2533 = vsel %vm1646, %v2531, %v2532
        %v2534 = vrot.slane %v2427, 2
        %v2535 = vsel %vm1646, %v2532, %v2534
        %v2536 = vrot.slane %v2432, 2
        %v2537 = vrot.slane %v2435, 2
        %v2538 = vsel %vm1646, %v2536, %v2537
        %v2539 = vrot.slane %v2440, 2
        %v2540 = vsel %vm1646, %v2537, %v2539
        %v2541 = vrot.slane %v2443, 2
        %v2542 = vrot.slane %v2448, 2
        %v2543 = vsel %vm1646, %v2541, %v2542
        %v2544 = vrot.slane %v2451, 2
        %v2545 = vsel %vm1646, %v2542, %v2544
        %v2546 = vrot.slane %v2456, 2
        %v2547 = vrot.slane %v2459, 2
        %v2548 = vsel %vm1646, %v2546, %v2547
        %v2549 = vrot.slane %v2464, 2
        %v2550 = vsel %vm1646, %v2547, %v2549
        %v2551 = vrot.slane %v2467, 2
        %v2552 = vrot.slane %v2472, 2
        %v2553 = vsel %vm1646, %v2551, %v2552
        %v2554 = vrot.slane %v2475, 2
        %v2555 = vsel %vm1646, %v2552, %v2554
        %v2556 = vrot.slane %v2480, 2
        %v2557 = vrot.slane %v2483, 2
        %v2558 = vsel %vm1646, %v2556, %v2557
        %v2559 = vrot.slane %v2488, 2
        %v2560 = vsel %vm1646, %v2557, %v2559
        %v2561 = vrot.slane %v2491, 2
        %v2562 = vrot.slane %v2496, 2
        %v2563 = vsel %vm1646, %v2561, %v2562
        %v2564 = vrot.slane %v2499, 2
        %v2565 = vsel %vm1646, %v2562, %v2564
        %v2582 = vadd.f32 %v2292, %v2528
        %v2583 = vadd.f32 %v2293, %v2530
        %v2584 = vadd.f32 %v2294, %v2533
        %v2585 = vadd.f32 %v2295, %v2535
        %v2586 = vadd.f32 %v2296, %v2538
        %v2587 = vadd.f32 %v2297, %v2540
        %v2588 = vadd.f32 %v2298, %v2543
        %v2589 = vadd.f32 %v2299, %v2545
        %v2590 = vadd.f32 %v2300, %v2548
        %v2591 = vadd.f32 %v2301, %v2550
        %v2592 = vadd.f32 %v2302, %v2553
        %v2593 = vadd.f32 %v2303, %v2555
        %v2594 = vadd.f32 %v2304, %v2558
        %v2595 = vadd.f32 %v2305, %v2560
        %v2596 = vadd.f32 %v2306, %v2563
        %v2597 = vadd.f32 %v2307, %v2565
        %s2598 = scalar_lea.vmem [#allocation2], 24
        %v2599 = vld [vmem:[%s2598] sm:$0xf]
        %v2600 = vld [vmem:[%s2598 + $0x4] sm:$0xf]
        %v2601 = vld [vmem:[%s2598 + $0x8] sm:$0xf]
        %v2602 = vld [vmem:[%s2598 + $0xc] sm:$0xf]
        %v2603 = vld [vmem:[%s2598 + $0x10] sm:$0xf]
        %v2604 = vld [vmem:[%s2598 + $0x14] sm:$0xf]
        %v2605 = vld [vmem:[%s2598 + $0x18] sm:$0xf]
        %v2606 = vld [vmem:[%s2598 + $0x1c] sm:$0xf]
        %v2607 = vld [vmem:[%s2598 + $0x20] sm:$0xf]
        %v2608 = vld [vmem:[%s2598 + $0x24] sm:$0xf]
        %v2609 = vld [vmem:[%s2598 + $0x28] sm:$0xf]
        %v2610 = vld [vmem:[%s2598 + $0x2c] sm:$0xf]
        %v2611 = vld [vmem:[%s2598 + $0x30] sm:$0xf]
        %v2612 = vld [vmem:[%s2598 + $0x34] sm:$0xf]
        %v2613 = vld [vmem:[%s2598 + $0x38] sm:$0xf]
        %v2614 = vld [vmem:[%s2598 + $0x3c] sm:$0xf]
        %v2615 = vld [vmem:[%s2598 + $0x40] sm:$0xf]
        %v2616 = vld [vmem:[%s2598 + $0x44] sm:$0xf]
        %v2617 = vld [vmem:[%s2598 + $0x48] sm:$0xf]
        %v2618 = vld [vmem:[%s2598 + $0x4c] sm:$0xf]
        %v2619 = vld [vmem:[%s2598 + $0x50] sm:$0xf]
        %v2620 = vld [vmem:[%s2598 + $0x54] sm:$0xf]
        %v2621 = vld [vmem:[%s2598 + $0x58] sm:$0xf]
        %v2622 = vld [vmem:[%s2598 + $0x5c] sm:$0xf]
        %s2623 = scalar_lea.vmem [#allocation9], 384
        %v2624 = vld [vmem:[%s2623] sm:$0xf]
        %v2625 = vld [vmem:[%s2623 + $0x4] sm:$0xf]
        %v2626 = vld [vmem:[%s2623 + $0x8] sm:$0xf]
        %v2627 = vld [vmem:[%s2623 + $0xc] sm:$0xf]
        %v2628 = vld [vmem:[%s2623 + $0x10] sm:$0xf]
        %v2629 = vld [vmem:[%s2623 + $0x14] sm:$0xf]
        %v2630 = vld [vmem:[%s2623 + $0x18] sm:$0xf]
        %v2631 = vld [vmem:[%s2623 + $0x1c] sm:$0xf]
        %v2632 = vld [vmem:[%s2623 + $0x20] sm:$0xf]
        %v2633 = vld [vmem:[%s2623 + $0x24] sm:$0xf]
        %v2634 = vld [vmem:[%s2623 + $0x28] sm:$0xf]
        %v2635 = vld [vmem:[%s2623 + $0x2c] sm:$0xf]
        %v2636 = vld [vmem:[%s2623 + $0x30] sm:$0xf]
        %v2637 = vld [vmem:[%s2623 + $0x34] sm:$0xf]
        %v2638 = vld [vmem:[%s2623 + $0x38] sm:$0xf]
        %v2639 = vld [vmem:[%s2623 + $0x3c] sm:$0xf]
        %v2664 = vunpack.c.l.b16 %v2599
        %v2665 = vunpack.c.l.b16 %v2600
        %v2666 = vunpack.c.l.b16 %v2601
        %v2667 = vunpack.c.l.b16 %v2602
        %v2668 = vunpack.c.l.b16 %v2603
        %v2669 = vunpack.c.l.b16 %v2604
        %v2670 = vunpack.c.l.b16 %v2605
        %v2671 = vunpack.c.l.b16 %v2606
        %v2672 = vunpack.c.l.b16 %v2607
        %v2673 = vunpack.c.l.b16 %v2608
        %v2674 = vunpack.c.l.b16 %v2609
        %v2675 = vunpack.c.l.b16 %v2610
        %v2676 = vunpack.c.l.b16 %v2611
        %v2677 = vunpack.c.l.b16 %v2612
        %v2678 = vunpack.c.l.b16 %v2613
        %v2679 = vunpack.c.l.b16 %v2614
        %v2680 = vunpack.c.l.b16 %v2615
        %v2681 = vunpack.c.l.b16 %v2616
        %v2682 = vunpack.c.l.b16 %v2617
        %v2683 = vunpack.c.l.b16 %v2618
        %v2684 = vunpack.c.l.b16 %v2619
        %v2685 = vunpack.c.l.b16 %v2620
        %v2686 = vunpack.c.l.b16 %v2621
        %v2687 = vunpack.c.l.b16 %v2622
        %v2688 = vpack.c.b16 %v2665, %v2664
        %v2689 = vpack.c.b16 %v2667, %v2666
        %v2690 = vpack.c.b16 %v2669, %v2668
        %v2691 = vpack.c.b16 %v2671, %v2670
        %v2692 = vpack.c.b16 %v2673, %v2672
        %v2693 = vpack.c.b16 %v2675, %v2674
        %v2694 = vpack.c.b16 %v2677, %v2676
        %v2695 = vpack.c.b16 %v2679, %v2678
        %v2696 = vpack.c.b16 %v2681, %v2680
        %v2697 = vpack.c.b16 %v2683, %v2682
        %v2698 = vpack.c.b16 %v2685, %v2684
        %v2699 = vpack.c.b16 %v2687, %v2686
        %v2728 = vunpack.c.l.b16 %v2624
        %v2729 = vunpack.c.l.b16 %v2625
        %v2730 = vunpack.c.l.b16 %v2626
        %v2731 = vunpack.c.l.b16 %v2627
        %v2732 = vunpack.c.l.b16 %v2628
        %v2733 = vunpack.c.l.b16 %v2629
        %v2734 = vunpack.c.l.b16 %v2630
        %v2735 = vunpack.c.l.b16 %v2631
        %v2736 = vunpack.c.l.b16 %v2632
        %v2737 = vunpack.c.l.b16 %v2633
        %v2738 = vunpack.c.l.b16 %v2634
        %v2739 = vunpack.c.l.b16 %v2635
        %v2740 = vunpack.c.l.b16 %v2636
        %v2741 = vunpack.c.l.b16 %v2637
        %v2742 = vunpack.c.l.b16 %v2638
        %v2743 = vunpack.c.l.b16 %v2639
        %v2744 = vpack.c.b16 %v2729, %v2728
        %v2745 = vpack.c.b16 %v2731, %v2730
        %v2746 = vpack.c.b16 %v2733, %v2732
        %v2747 = vpack.c.b16 %v2735, %v2734
        %v2748 = vpack.c.b16 %v2737, %v2736
        %v2749 = vpack.c.b16 %v2739, %v2738
        %v2750 = vpack.c.b16 %v2741, %v2740
        %v2751 = vpack.c.b16 %v2743, %v2742
        %2760 = vmatprep.subr.bf16.mxu0 0
        %2761 = vmatpush1.bf16.msra.mxu0 %v2744
        %2762 = vmatprep.subr.bf16.mxu0 0
        %2763 = vmatpush1.bf16.msra.mxu0 %v2745
        %2764 = vmatprep.subr.bf16.mxu0 0
        %2765 = vmatpush1.bf16.msra.mxu0 %v2746
        %2766 = vmatprep.subr.bf16.mxu0 0
        %2767 = vmatpush1.bf16.msra.mxu0 %v2747
        %2768 = vmatprep.subr.bf16.mxu0 0
        %2769 = vmatpush1.bf16.msra.mxu0 %v2748
        %2770 = vmatprep.subr.bf16.mxu0 0
        %2771 = vmatpush1.bf16.msra.mxu0 %v2749
        %2772 = vmatprep.subr.bf16.mxu0 0
        %2773 = vmatpush1.bf16.msra.mxu0 %v2750
        %2774 = vmatprep.subr.bf16.mxu0 0
        %2775 = vmatpush1.bf16.msra.mxu0 %v2751
        %2776 = vmatprep.subr.bf16.mxu0 0
        %2777 = vmatpush1.bf16.msra.mxu0 0
        %2778 = vmatprep.subr.bf16.mxu0 0
        %2779 = vmatpush1.bf16.msra.mxu0 0
        %2780 = vmatprep.subr.bf16.mxu0 0
        %2781 = vmatpush1.bf16.msra.mxu0 0
        %2782 = vmatprep.subr.bf16.mxu0 0
        %2783 = vmatpush1.bf16.msra.mxu0 0
        %2784 = vmatprep.subr.bf16.mxu0 0
        %2785 = vmatpush1.bf16.msra.mxu0 0
        %2786 = vmatprep.subr.bf16.mxu0 0
        %2787 = vmatpush1.bf16.msra.mxu0 0
        %2788 = vmatprep.subr.bf16.mxu0 0
        %2789 = vmatpush1.bf16.msra.mxu0 0
        %2790 = vmatprep.subr.bf16.mxu0 0
        %2791 = vmatpush1.bf16.msra.mxu0 0
        %2792 = vmatprep.mubr.bf16.mxu0 0
        %2793 = vmatmul.mubr.bf16.gmra.mrb[0].mxu0 %v2688
        %v2794 = vpop.f32.mrb[0].mxu0
        %v2795 = vadd.f32 0.0, %v2794
        %v2796 = vpop.f32.mrb[0].mxu0
        %v2797 = vpop.f32.mrb[0].mxu0
        %v2798 = vadd.f32 0.0, %v2797
        %v2799 = vpop.f32.mrb[0].mxu0
        %2800 = vmatprep.mubr.bf16.mxu0 0
        %2801 = vmatmul.mubr.bf16.gmra.mrb[0].mxu0 %v2689
        %v2802 = vpop.f32.mrb[0].mxu0
        %v2803 = vpop.f32.mrb[0].mxu0
        %v2804 = vpop.f32.mrb[0].mxu0
        %v2805 = vadd.f32 0.0, %v2804
        %v2806 = vpop.f32.mrb[0].mxu0
        %2807 = vmatprep.mubr.bf16.mxu0 0
        %2808 = vmatmul.mubr.bf16.gmra.mrb[0].mxu0 %v2690
        %v2809 = vpop.f32.mrb[0].mxu0
        %v2810 = vadd.f32 0.0, %v2809
        %v2811 = vpop.f32.mrb[0].mxu0
        %v2812 = vpop.f32.mrb[0].mxu0
        %v2813 = vpop.f32.mrb[0].mxu0
        %2814 = vmatprep.mubr.bf16.mxu0 0
        %2815 = vmatmul.mubr.bf16.gmra.mrb[0].mxu0 %v2691
        %v2816 = vpop.f32.mrb[0].mxu0
        %v2817 = vadd.f32 0.0, %v2816
        %v2818 = vpop.f32.mrb[0].mxu0
        %v2819 = vpop.f32.mrb[0].mxu0
        %v2820 = vadd.f32 0.0, %v2819
        %v2821 = vpop.f32.mrb[0].mxu0
        %2822 = vmatprep.mubr.bf16.mxu0 0
        %2823 = vmatmul.mubr.bf16.gmra.mrb[0].mxu0 %v2692
        %v2824 = vpop.f32.mrb[0].mxu0
        %v2825 = vpop.f32.mrb[0].mxu0
        %v2826 = vpop.f32.mrb[0].mxu0
        %v2827 = vadd.f32 0.0, %v2826
        %v2828 = vpop.f32.mrb[0].mxu0
        %2829 = vmatprep.mubr.bf16.mxu0 0
        %2830 = vmatmul.mubr.bf16.gmra.mrb[0].mxu0 %v2693
        %v2831 = vpop.f32.mrb[0].mxu0
        %v2832 = vadd.f32 0.0, %v2831
        %v2833 = vpop.f32.mrb[0].mxu0
        %v2834 = vpop.f32.mrb[0].mxu0
        %v2835 = vpop.f32.mrb[0].mxu0
        %2836 = vmatprep.mubr.bf16.mxu0 0
        %2837 = vmatmul.mubr.bf16.gmra.mrb[0].mxu0 %v2694
        %v2838 = vpop.f32.mrb[0].mxu0
        %v2839 = vadd.f32 0.0, %v2838
        %v2840 = vpop.f32.mrb[0].mxu0
        %v2841 = vpop.f32.mrb[0].mxu0
        %v2842 = vadd.f32 0.0, %v2841
        %v2843 = vpop.f32.mrb[0].mxu0
        %2844 = vmatprep.mubr.bf16.mxu0 0
        %2845 = vmatmul.mubr.bf16.gmra.mrb[0].mxu0 %v2695
        %v2846 = vpop.f32.mrb[0].mxu0
        %v2847 = vpop.f32.mrb[0].mxu0
        %v2848 = vpop.f32.mrb[0].mxu0
        %v2849 = vadd.f32 0.0, %v2848
        %v2850 = vpop.f32.mrb[0].mxu0
        %2851 = vmatprep.mubr.bf16.mxu0 0
        %2852 = vmatmul.mubr.bf16.gmra.mrb[0].mxu0 %v2696
        %v2853 = vpop.f32.mrb[0].mxu0
        %v2854 = vadd.f32 0.0, %v2853
        %v2855 = vpop.f32.mrb[0].mxu0
        %v2856 = vpop.f32.mrb[0].mxu0
        %v2857 = vpop.f32.mrb[0].mxu0
        %2858 = vmatprep.mubr.bf16.mxu0 0
        %2859 = vmatmul.mubr.bf16.gmra.mrb[0].mxu0 %v2697
        %v2860 = vpop.f32.mrb[0].mxu0
        %v2861 = vadd.f32 0.0, %v2860
        %v2862 = vpop.f32.mrb[0].mxu0
        %v2863 = vpop.f32.mrb[0].mxu0
        %v2864 = vadd.f32 0.0, %v2863
        %v2865 = vpop.f32.mrb[0].mxu0
        %2866 = vmatprep.mubr.bf16.mxu0 0
        %2867 = vmatmul.mubr.bf16.gmra.mrb[0].mxu0 %v2698
        %v2868 = vpop.f32.mrb[0].mxu0
        %v2869 = vpop.f32.mrb[0].mxu0
        %v2870 = vpop.f32.mrb[0].mxu0
        %v2871 = vadd.f32 0.0, %v2870
        %v2872 = vpop.f32.mrb[0].mxu0
        %2873 = vmatprep.mubr.bf16.mxu0 0
        %2874 = vmatmul.mubr.bf16.gmra.mrb[0].mxu0 %v2699
        %v2875 = vpop.f32.mrb[0].mxu0
        %v2876 = vadd.f32 0.0, %v2875
        %v2877 = vpop.f32.mrb[0].mxu0
        %v2878 = vpop.f32.mrb[0].mxu0
        %v2879 = vpop.f32.mrb[0].mxu0
        %2880 = vdwg.mxu0
        %v2881 = vadd.f32 %v2582, %v2795
        %v2882 = vadd.f32 %v2583, %v2798
        %v2883 = vadd.f32 %v2584, %v2805
        %v2884 = vadd.f32 %v2585, %v2810
        %v2885 = vadd.f32 %v2586, %v2817
        %v2886 = vadd.f32 %v2587, %v2820
        %v2887 = vadd.f32 %v2588, %v2827
        %v2888 = vadd.f32 %v2589, %v2832
        %v2889 = vadd.f32 %v2590, %v2839
        %v2890 = vadd.f32 %v2591, %v2842
        %v2891 = vadd.f32 %v2592, %v2849
        %v2892 = vadd.f32 %v2593, %v2854
        %v2893 = vadd.f32 %v2594, %v2861
        %v2894 = vadd.f32 %v2595, %v2864
        %v2895 = vadd.f32 %v2596, %v2871
        %v2896 = vadd.f32 %v2597, %v2876
        %s2897 = scalar_lea.vmem [#allocation9], 448
        %v2898 = vld [vmem:[%s2897] sm:$0xf]
        %v2899 = vld [vmem:[%s2897 + $0x4] sm:$0xf]
        %v2900 = vld [vmem:[%s2897 + $0x8] sm:$0xf]
        %v2901 = vld [vmem:[%s2897 + $0xc] sm:$0xf]
        %v2902 = vld [vmem:[%s2897 + $0x10] sm:$0xf]
        %v2903 = vld [vmem:[%s2897 + $0x14] sm:$0xf]
        %v2904 = vld [vmem:[%s2897 + $0x18] sm:$0xf]
        %v2905 = vld [vmem:[%s2897 + $0x1c] sm:$0xf]
        %v2906 = vld [vmem:[%s2897 + $0x20] sm:$0xf]
        %v2907 = vld [vmem:[%s2897 + $0x24] sm:$0xf]
        %v2908 = vld [vmem:[%s2897 + $0x28] sm:$0xf]
        %v2909 = vld [vmem:[%s2897 + $0x2c] sm:$0xf]
        %v2910 = vld [vmem:[%s2897 + $0x30] sm:$0xf]
        %v2911 = vld [vmem:[%s2897 + $0x34] sm:$0xf]
        %v2912 = vld [vmem:[%s2897 + $0x38] sm:$0xf]
        %v2913 = vld [vmem:[%s2897 + $0x3c] sm:$0xf]
        %v2930 = vunpack.c.l.b16 %v2898
        %v2931 = vunpack.c.l.b16 %v2899
        %v2932 = vunpack.c.l.b16 %v2900
        %v2933 = vunpack.c.l.b16 %v2901
        %v2934 = vunpack.c.l.b16 %v2902
        %v2935 = vunpack.c.l.b16 %v2903
        %v2936 = vunpack.c.l.b16 %v2904
        %v2937 = vunpack.c.l.b16 %v2905
        %v2938 = vunpack.c.l.b16 %v2906
        %v2939 = vunpack.c.l.b16 %v2907
        %v2940 = vunpack.c.l.b16 %v2908
        %v2941 = vunpack.c.l.b16 %v2909
        %v2942 = vunpack.c.l.b16 %v2910
        %v2943 = vunpack.c.l.b16 %v2911
        %v2944 = vunpack.c.l.b16 %v2912
        %v2945 = vunpack.c.l.b16 %v2913
        %v2946 = vpack.c.b16 %v2931, %v2930
        %v2947 = vpack.c.b16 %v2933, %v2932
        %v2948 = vpack.c.b16 %v2935, %v2934
        %v2949 = vpack.c.b16 %v2937, %v2936
        %v2950 = vpack.c.b16 %v2939, %v2938
        %v2951 = vpack.c.b16 %v2941, %v2940
        %v2952 = vpack.c.b16 %v2943, %v2942
        %v2953 = vpack.c.b16 %v2945, %v2944
        %2962 = vmatprep.subr.bf16.mxu0 0
        %2963 = vmatpush1.bf16.msra.mxu0 %v2946
        %2964 = vmatprep.subr.bf16.mxu0 0
        %2965 = vmatpush1.bf16.msra.mxu0 %v2947
        %2966 = vmatprep.subr.bf16.mxu0 0
        %2967 = vmatpush1.bf16.msra.mxu0 %v2948
        %2968 = vmatprep.subr.bf16.mxu0 0
        %2969 = vmatpush1.bf16.msra.mxu0 %v2949
        %2970 = vmatprep.subr.bf16.mxu0 0
        %2971 = vmatpush1.bf16.msra.mxu0 %v2950
        %2972 = vmatprep.subr.bf16.mxu0 0
        %2973 = vmatpush1.bf16.msra.mxu0 %v2951
        %2974 = vmatprep.subr.bf16.mxu0 0
        %2975 = vmatpush1.bf16.msra.mxu0 %v2952
        %2976 = vmatprep.subr.bf16.mxu0 0
        %2977 = vmatpush1.bf16.msra.mxu0 %v2953
        %2978 = vmatprep.subr.bf16.mxu0 0
        %2979 = vmatpush1.bf16.msra.mxu0 0
        %2980 = vmatprep.subr.bf16.mxu0 0
        %2981 = vmatpush1.bf16.msra.mxu0 0
        %2982 = vmatprep.subr.bf16.mxu0 0
        %2983 = vmatpush1.bf16.msra.mxu0 0
        %2984 = vmatprep.subr.bf16.mxu0 0
        %2985 = vmatpush1.bf16.msra.mxu0 0
        %2986 = vmatprep.subr.bf16.mxu0 0
        %2987 = vmatpush1.bf16.msra.mxu0 0
        %2988 = vmatprep.subr.bf16.mxu0 0
        %2989 = vmatpush1.bf16.msra.mxu0 0
        %2990 = vmatprep.subr.bf16.mxu0 0
        %2991 = vmatpush1.bf16.msra.mxu0 0
        %2992 = vmatprep.subr.bf16.mxu0 0
        %2993 = vmatpush1.bf16.msra.mxu0 0
        %2994 = vmatprep.mubr.bf16.mxu0 0
        %2995 = vmatmul.mubr.bf16.gmra.mrb[0].mxu0 %v2688
        %v2996 = vpop.f32.mrb[0].mxu0
        %v2997 = vadd.f32 0.0, %v2996
        %v2998 = vpop.f32.mrb[0].mxu0
        %v2999 = vpop.f32.mrb[0].mxu0
        %v3000 = vadd.f32 0.0, %v2999
        %v3001 = vpop.f32.mrb[0].mxu0
        %3002 = vmatprep.mubr.bf16.mxu0 0
        %3003 = vmatmul.mubr.bf16.gmra.mrb[0].mxu0 %v2689
        %v3004 = vpop.f32.mrb[0].mxu0
        %v3005 = vadd.f32 0.0, %v3004
        %v3006 = vpop.f32.mrb[0].mxu0
        %v3007 = vpop.f32.mrb[0].mxu0
        %v3008 = vadd.f32 0.0, %v3007
        %v3009 = vpop.f32.mrb[0].mxu0
        %3010 = vmatprep.mubr.bf16.mxu0 0
        %3011 = vmatmul.mubr.bf16.gmra.mrb[0].mxu0 %v2690
        %v3012 = vpop.f32.mrb[0].mxu0
        %v3013 = vadd.f32 0.0, %v3012
        %v3014 = vpop.f32.mrb[0].mxu0
        %v3015 = vpop.f32.mrb[0].mxu0
        %v3016 = vadd.f32 0.0, %v3015
        %v3017 = vpop.f32.mrb[0].mxu0
        %3018 = vmatprep.mubr.bf16.mxu0 0
        %3019 = vmatmul.mubr.bf16.gmra.mrb[0].mxu0 %v2691
        %v3020 = vpop.f32.mrb[0].mxu0
        %v3021 = vadd.f32 0.0, %v3020
        %v3022 = vpop.f32.mrb[0].mxu0
        %v3023 = vpop.f32.mrb[0].mxu0
        %v3024 = vadd.f32 0.0, %v3023
        %v3025 = vpop.f32.mrb[0].mxu0
        %3026 = vmatprep.mubr.bf16.mxu0 0
        %3027 = vmatmul.mubr.bf16.gmra.mrb[0].mxu0 %v2692
        %v3028 = vpop.f32.mrb[0].mxu0
        %v3029 = vadd.f32 0.0, %v3028
        %v3030 = vpop.f32.mrb[0].mxu0
        %v3031 = vpop.f32.mrb[0].mxu0
        %v3032 = vadd.f32 0.0, %v3031
        %v3033 = vpop.f32.mrb[0].mxu0
        %3034 = vmatprep.mubr.bf16.mxu0 0
        %3035 = vmatmul.mubr.bf16.gmra.mrb[0].mxu0 %v2693
        %v3036 = vpop.f32.mrb[0].mxu0
        %v3037 = vadd.f32 0.0, %v3036
        %v3038 = vpop.f32.mrb[0].mxu0
        %v3039 = vpop.f32.mrb[0].mxu0
        %v3040 = vadd.f32 0.0, %v3039
        %v3041 = vpop.f32.mrb[0].mxu0
        %3042 = vmatprep.mubr.bf16.mxu0 0
        %3043 = vmatmul.mubr.bf16.gmra.mrb[0].mxu0 %v2694
        %v3044 = vpop.f32.mrb[0].mxu0
        %v3045 = vadd.f32 0.0, %v3044
        %v3046 = vpop.f32.mrb[0].mxu0
        %v3047 = vpop.f32.mrb[0].mxu0
        %v3048 = vadd.f32 0.0, %v3047
        %v3049 = vpop.f32.mrb[0].mxu0
        %3050 = vmatprep.mubr.bf16.mxu0 0
        %3051 = vmatmul.mubr.bf16.gmra.mrb[0].mxu0 %v2695
        %v3052 = vpop.f32.mrb[0].mxu0
        %v3053 = vadd.f32 0.0, %v3052
        %v3054 = vpop.f32.mrb[0].mxu0
        %v3055 = vpop.f32.mrb[0].mxu0
        %v3056 = vadd.f32 0.0, %v3055
        %v3057 = vpop.f32.mrb[0].mxu0
        %3058 = vmatprep.mubr.bf16.mxu0 0
        %3059 = vmatmul.mubr.bf16.gmra.mrb[0].mxu0 %v2696
        %v3060 = vpop.f32.mrb[0].mxu0
        %v3061 = vadd.f32 0.0, %v3060
        %v3062 = vpop.f32.mrb[0].mxu0
        %v3063 = vpop.f32.mrb[0].mxu0
        %v3064 = vadd.f32 0.0, %v3063
        %v3065 = vpop.f32.mrb[0].mxu0
        %3066 = vmatprep.mubr.bf16.mxu0 0
        %3067 = vmatmul.mubr.bf16.gmra.mrb[0].mxu0 %v2697
        %v3068 = vpop.f32.mrb[0].mxu0
        %v3069 = vadd.f32 0.0, %v3068
        %v3070 = vpop.f32.mrb[0].mxu0
        %v3071 = vpop.f32.mrb[0].mxu0
        %v3072 = vadd.f32 0.0, %v3071
        %v3073 = vpop.f32.mrb[0].mxu0
        %3074 = vmatprep.mubr.bf16.mxu0 0
        %3075 = vmatmul.mubr.bf16.gmra.mrb[0].mxu0 %v2698
        %v3076 = vpop.f32.mrb[0].mxu0
        %v3077 = vadd.f32 0.0, %v3076
        %v3078 = vpop.f32.mrb[0].mxu0
        %v3079 = vpop.f32.mrb[0].mxu0
        %v3080 = vadd.f32 0.0, %v3079
        %v3081 = vpop.f32.mrb[0].mxu0
        %3082 = vmatprep.mubr.bf16.mxu0 0
        %3083 = vmatmul.mubr.bf16.gmra.mrb[0].mxu0 %v2699
        %v3084 = vpop.f32.mrb[0].mxu0
        %v3085 = vadd.f32 0.0, %v3084
        %v3086 = vpop.f32.mrb[0].mxu0
        %v3087 = vpop.f32.mrb[0].mxu0
        %v3088 = vadd.f32 0.0, %v3087
        %v3089 = vpop.f32.mrb[0].mxu0
        %3090 = vdwg.mxu0
        %v3115 = vrot.slane %v2997, 1
        %v3116 = vrot.slane %v3000, 1
        %v3117 = vsel %vm1355, %v3115, %v3116
        %v3118 = vrot.slane %v3005, 1
        %v3119 = vsel %vm1355, %v3116, %v3118
        %v3120 = vrot.slane %v3008, 1
        %v3121 = vrot.slane %v3013, 1
        %v3122 = vsel %vm1355, %v3120, %v3121
        %v3123 = vrot.slane %v3016, 1
        %v3124 = vsel %vm1355, %v3121, %v3123
        %v3125 = vrot.slane %v3021, 1
        %v3126 = vrot.slane %v3024, 1
        %v3127 = vsel %vm1355, %v3125, %v3126
        %v3128 = vrot.slane %v3029, 1
        %v3129 = vsel %vm1355, %v3126, %v3128
        %v3130 = vrot.slane %v3032, 1
        %v3131 = vrot.slane %v3037, 1
        %v3132 = vsel %vm1355, %v3130, %v3131
        %v3133 = vrot.slane %v3040, 1
        %v3134 = vsel %vm1355, %v3131, %v3133
        %v3135 = vrot.slane %v3045, 1
        %v3136 = vrot.slane %v3048, 1
        %v3137 = vsel %vm1355, %v3135, %v3136
        %v3138 = vrot.slane %v3053, 1
        %v3139 = vsel %vm1355, %v3136, %v3138
        %v3140 = vrot.slane %v3056, 1
        %v3141 = vrot.slane %v3061, 1
        %v3142 = vsel %vm1355, %v3140, %v3141
        %v3143 = vrot.slane %v3064, 1
        %v3144 = vsel %vm1355, %v3141, %v3143
        %v3145 = vrot.slane %v3069, 1
        %v3146 = vrot.slane %v3072, 1
        %v3147 = vsel %vm1355, %v3145, %v3146
        %v3148 = vrot.slane %v3077, 1
        %v3149 = vsel %vm1355, %v3146, %v3148
        %v3150 = vrot.slane %v3080, 1
        %v3151 = vrot.slane %v3085, 1
        %v3152 = vsel %vm1355, %v3150, %v3151
        %v3153 = vrot.slane %v3088, 1
        %v3154 = vsel %vm1355, %v3151, %v3153
        %v3171 = vadd.f32 %v2881, %v3117
        %v3172 = vadd.f32 %v2882, %v3119
        %v3173 = vadd.f32 %v2883, %v3122
        %v3174 = vadd.f32 %v2884, %v3124
        %v3175 = vadd.f32 %v2885, %v3127
        %v3176 = vadd.f32 %v2886, %v3129
        %v3177 = vadd.f32 %v2887, %v3132
        %v3178 = vadd.f32 %v2888, %v3134
        %v3179 = vadd.f32 %v2889, %v3137
        %v3180 = vadd.f32 %v2890, %v3139
        %v3181 = vadd.f32 %v2891, %v3142
        %v3182 = vadd.f32 %v2892, %v3144
        %v3183 = vadd.f32 %v2893, %v3147
        %v3184 = vadd.f32 %v2894, %v3149
        %v3185 = vadd.f32 %v2895, %v3152
        %v3186 = vadd.f32 %v2896, %v3154
        %s3187 = scalar_lea.vmem [#allocation9], 512
        %v3188 = vld [vmem:[%s3187] sm:$0xf]
        %v3189 = vld [vmem:[%s3187 + $0x4] sm:$0xf]
        %v3190 = vld [vmem:[%s3187 + $0x8] sm:$0xf]
        %v3191 = vld [vmem:[%s3187 + $0xc] sm:$0xf]
        %v3192 = vld [vmem:[%s3187 + $0x10] sm:$0xf]
        %v3193 = vld [vmem:[%s3187 + $0x14] sm:$0xf]
        %v3194 = vld [vmem:[%s3187 + $0x18] sm:$0xf]
        %v3195 = vld [vmem:[%s3187 + $0x1c] sm:$0xf]
        %v3196 = vld [vmem:[%s3187 + $0x20] sm:$0xf]
        %v3197 = vld [vmem:[%s3187 + $0x24] sm:$0xf]
        %v3198 = vld [vmem:[%s3187 + $0x28] sm:$0xf]
        %v3199 = vld [vmem:[%s3187 + $0x2c] sm:$0xf]
        %v3200 = vld [vmem:[%s3187 + $0x30] sm:$0xf]
        %v3201 = vld [vmem:[%s3187 + $0x34] sm:$0xf]
        %v3202 = vld [vmem:[%s3187 + $0x38] sm:$0xf]
        %v3203 = vld [vmem:[%s3187 + $0x3c] sm:$0xf]
        %v3220 = vunpack.c.l.b16 %v3188
        %v3221 = vunpack.c.l.b16 %v3189
        %v3222 = vunpack.c.l.b16 %v3190
        %v3223 = vunpack.c.l.b16 %v3191
        %v3224 = vunpack.c.l.b16 %v3192
        %v3225 = vunpack.c.l.b16 %v3193
        %v3226 = vunpack.c.l.b16 %v3194
        %v3227 = vunpack.c.l.b16 %v3195
        %v3228 = vunpack.c.l.b16 %v3196
        %v3229 = vunpack.c.l.b16 %v3197
        %v3230 = vunpack.c.l.b16 %v3198
        %v3231 = vunpack.c.l.b16 %v3199
        %v3232 = vunpack.c.l.b16 %v3200
        %v3233 = vunpack.c.l.b16 %v3201
        %v3234 = vunpack.c.l.b16 %v3202
        %v3235 = vunpack.c.l.b16 %v3203
        %v3236 = vpack.c.b16 %v3221, %v3220
        %v3237 = vpack.c.b16 %v3223, %v3222
        %v3238 = vpack.c.b16 %v3225, %v3224
        %v3239 = vpack.c.b16 %v3227, %v3226
        %v3240 = vpack.c.b16 %v3229, %v3228
        %v3241 = vpack.c.b16 %v3231, %v3230
        %v3242 = vpack.c.b16 %v3233, %v3232
        %v3243 = vpack.c.b16 %v3235, %v3234
        %3252 = vmatprep.subr.bf16.mxu0 0
        %3253 = vmatpush1.bf16.msra.mxu0 %v3236
        %3254 = vmatprep.subr.bf16.mxu0 0
        %3255 = vmatpush1.bf16.msra.mxu0 %v3237
        %3256 = vmatprep.subr.bf16.mxu0 0
        %3257 = vmatpush1.bf16.msra.mxu0 %v3238
        %3258 = vmatprep.subr.bf16.mxu0 0
        %3259 = vmatpush1.bf16.msra.mxu0 %v3239
        %3260 = vmatprep.subr.bf16.mxu0 0
        %3261 = vmatpush1.bf16.msra.mxu0 %v3240
        %3262 = vmatprep.subr.bf16.mxu0 0
        %3263 = vmatpush1.bf16.msra.mxu0 %v3241
        %3264 = vmatprep.subr.bf16.mxu0 0
        %3265 = vmatpush1.bf16.msra.mxu0 %v3242
        %3266 = vmatprep.subr.bf16.mxu0 0
        %3267 = vmatpush1.bf16.msra.mxu0 %v3243
        %3268 = vmatprep.subr.bf16.mxu0 0
        %3269 = vmatpush1.bf16.msra.mxu0 0
        %3270 = vmatprep.subr.bf16.mxu0 0
        %3271 = vmatpush1.bf16.msra.mxu0 0
        %3272 = vmatprep.subr.bf16.mxu0 0
        %3273 = vmatpush1.bf16.msra.mxu0 0
        %3274 = vmatprep.subr.bf16.mxu0 0
        %3275 = vmatpush1.bf16.msra.mxu0 0
        %3276 = vmatprep.subr.bf16.mxu0 0
        %3277 = vmatpush1.bf16.msra.mxu0 0
        %3278 = vmatprep.subr.bf16.mxu0 0
        %3279 = vmatpush1.bf16.msra.mxu0 0
        %3280 = vmatprep.subr.bf16.mxu0 0
        %3281 = vmatpush1.bf16.msra.mxu0 0
        %3282 = vmatprep.subr.bf16.mxu0 0
        %3283 = vmatpush1.bf16.msra.mxu0 0
        %3284 = vmatprep.mubr.bf16.mxu0 0
        %3285 = vmatmul.mubr.bf16.gmra.mrb[0].mxu0 %v2688
        %v3286 = vpop.f32.mrb[0].mxu0
        %v3287 = vadd.f32 0.0, %v3286
        %v3288 = vpop.f32.mrb[0].mxu0
        %v3289 = vpop.f32.mrb[0].mxu0
        %v3290 = vadd.f32 0.0, %v3289
        %v3291 = vpop.f32.mrb[0].mxu0
        %3292 = vmatprep.mubr.bf16.mxu0 0
        %3293 = vmatmul.mubr.bf16.gmra.mrb[0].mxu0 %v2689
        %v3294 = vpop.f32.mrb[0].mxu0
        %v3295 = vadd.f32 0.0, %v3294
        %v3296 = vpop.f32.mrb[0].mxu0
        %v3297 = vpop.f32.mrb[0].mxu0
        %v3298 = vadd.f32 0.0, %v3297
        %v3299 = vpop.f32.mrb[0].mxu0
        %3300 = vmatprep.mubr.bf16.mxu0 0
        %3301 = vmatmul.mubr.bf16.gmra.mrb[0].mxu0 %v2690
        %v3302 = vpop.f32.mrb[0].mxu0
        %v3303 = vadd.f32 0.0, %v3302
        %v3304 = vpop.f32.mrb[0].mxu0
        %v3305 = vpop.f32.mrb[0].mxu0
        %v3306 = vadd.f32 0.0, %v3305
        %v3307 = vpop.f32.mrb[0].mxu0
        %3308 = vmatprep.mubr.bf16.mxu0 0
        %3309 = vmatmul.mubr.bf16.gmra.mrb[0].mxu0 %v2691
        %v3310 = vpop.f32.mrb[0].mxu0
        %v3311 = vadd.f32 0.0, %v3310
        %v3312 = vpop.f32.mrb[0].mxu0
        %v3313 = vpop.f32.mrb[0].mxu0
        %v3314 = vadd.f32 0.0, %v3313
        %v3315 = vpop.f32.mrb[0].mxu0
        %3316 = vmatprep.mubr.bf16.mxu0 0
        %3317 = vmatmul.mubr.bf16.gmra.mrb[0].mxu0 %v2692
        %v3318 = vpop.f32.mrb[0].mxu0
        %v3319 = vadd.f32 0.0, %v3318
        %v3320 = vpop.f32.mrb[0].mxu0
        %v3321 = vpop.f32.mrb[0].mxu0
        %v3322 = vadd.f32 0.0, %v3321
        %v3323 = vpop.f32.mrb[0].mxu0
        %3324 = vmatprep.mubr.bf16.mxu0 0
        %3325 = vmatmul.mubr.bf16.gmra.mrb[0].mxu0 %v2693
        %v3326 = vpop.f32.mrb[0].mxu0
        %v3327 = vadd.f32 0.0, %v3326
        %v3328 = vpop.f32.mrb[0].mxu0
        %v3329 = vpop.f32.mrb[0].mxu0
        %v3330 = vadd.f32 0.0, %v3329
        %v3331 = vpop.f32.mrb[0].mxu0
        %3332 = vmatprep.mubr.bf16.mxu0 0
        %3333 = vmatmul.mubr.bf16.gmra.mrb[0].mxu0 %v2694
        %v3334 = vpop.f32.mrb[0].mxu0
        %v3335 = vadd.f32 0.0, %v3334
        %v3336 = vpop.f32.mrb[0].mxu0
        %v3337 = vpop.f32.mrb[0].mxu0
        %v3338 = vadd.f32 0.0, %v3337
        %v3339 = vpop.f32.mrb[0].mxu0
        %3340 = vmatprep.mubr.bf16.mxu0 0
        %3341 = vmatmul.mubr.bf16.gmra.mrb[0].mxu0 %v2695
        %v3342 = vpop.f32.mrb[0].mxu0
        %v3343 = vadd.f32 0.0, %v3342
        %v3344 = vpop.f32.mrb[0].mxu0
        %v3345 = vpop.f32.mrb[0].mxu0
        %v3346 = vadd.f32 0.0, %v3345
        %v3347 = vpop.f32.mrb[0].mxu0
        %3348 = vmatprep.mubr.bf16.mxu0 0
        %3349 = vmatmul.mubr.bf16.gmra.mrb[0].mxu0 %v2696
        %v3350 = vpop.f32.mrb[0].mxu0
        %v3351 = vadd.f32 0.0, %v3350
        %v3352 = vpop.f32.mrb[0].mxu0
        %v3353 = vpop.f32.mrb[0].mxu0
        %v3354 = vadd.f32 0.0, %v3353
        %v3355 = vpop.f32.mrb[0].mxu0
        %3356 = vmatprep.mubr.bf16.mxu0 0
        %3357 = vmatmul.mubr.bf16.gmra.mrb[0].mxu0 %v2697
        %v3358 = vpop.f32.mrb[0].mxu0
        %v3359 = vadd.f32 0.0, %v3358
        %v3360 = vpop.f32.mrb[0].mxu0
        %v3361 = vpop.f32.mrb[0].mxu0
        %v3362 = vadd.f32 0.0, %v3361
        %v3363 = vpop.f32.mrb[0].mxu0
        %3364 = vmatprep.mubr.bf16.mxu0 0
        %3365 = vmatmul.mubr.bf16.gmra.mrb[0].mxu0 %v2698
        %v3366 = vpop.f32.mrb[0].mxu0
        %v3367 = vadd.f32 0.0, %v3366
        %v3368 = vpop.f32.mrb[0].mxu0
        %v3369 = vpop.f32.mrb[0].mxu0
        %v3370 = vadd.f32 0.0, %v3369
        %v3371 = vpop.f32.mrb[0].mxu0
        %3372 = vmatprep.mubr.bf16.mxu0 0
        %3373 = vmatmul.mubr.bf16.gmra.mrb[0].mxu0 %v2699
        %v3374 = vpop.f32.mrb[0].mxu0
        %v3375 = vadd.f32 0.0, %v3374
        %v3376 = vpop.f32.mrb[0].mxu0
        %v3377 = vpop.f32.mrb[0].mxu0
        %v3378 = vadd.f32 0.0, %v3377
        %v3379 = vpop.f32.mrb[0].mxu0
        %3380 = vdwg.mxu0
        %v3405 = vrot.slane %v3287, 2
        %v3406 = vrot.slane %v3290, 2
        %v3407 = vsel %vm1646, %v3405, %v3406
        %v3408 = vrot.slane %v3295, 2
        %v3409 = vsel %vm1646, %v3406, %v3408
        %v3410 = vrot.slane %v3298, 2
        %v3411 = vrot.slane %v3303, 2
        %v3412 = vsel %vm1646, %v3410, %v3411
        %v3413 = vrot.slane %v3306, 2
        %v3414 = vsel %vm1646, %v3411, %v3413
        %v3415 = vrot.slane %v3311, 2
        %v3416 = vrot.slane %v3314, 2
        %v3417 = vsel %vm1646, %v3415, %v3416
        %v3418 = vrot.slane %v3319, 2
        %v3419 = vsel %vm1646, %v3416, %v3418
        %v3420 = vrot.slane %v3322, 2
        %v3421 = vrot.slane %v3327, 2
        %v3422 = vsel %vm1646, %v3420, %v3421
        %v3423 = vrot.slane %v3330, 2
        %v3424 = vsel %vm1646, %v3421, %v3423
        %v3425 = vrot.slane %v3335, 2
        %v3426 = vrot.slane %v3338, 2
        %v3427 = vsel %vm1646, %v3425, %v3426
        %v3428 = vrot.slane %v3343, 2
        %v3429 = vsel %vm1646, %v3426, %v3428
        %v3430 = vrot.slane %v3346, 2
        %v3431 = vrot.slane %v3351, 2
        %v3432 = vsel %vm1646, %v3430, %v3431
        %v3433 = vrot.slane %v3354, 2
        %v3434 = vsel %vm1646, %v3431, %v3433
        %v3435 = vrot.slane %v3359, 2
        %v3436 = vrot.slane %v3362, 2
        %v3437 = vsel %vm1646, %v3435, %v3436
        %v3438 = vrot.slane %v3367, 2
        %v3439 = vsel %vm1646, %v3436, %v3438
        %v3440 = vrot.slane %v3370, 2
        %v3441 = vrot.slane %v3375, 2
        %v3442 = vsel %vm1646, %v3440, %v3441
        %v3443 = vrot.slane %v3378, 2
        %v3444 = vsel %vm1646, %v3441, %v3443
        %v3461 = vadd.f32 %v3171, %v3407
        %v3462 = vadd.f32 %v3172, %v3409
        %v3463 = vadd.f32 %v3173, %v3412
        %v3464 = vadd.f32 %v3174, %v3414
        %v3465 = vadd.f32 %v3175, %v3417
        %v3466 = vadd.f32 %v3176, %v3419
        %v3467 = vadd.f32 %v3177, %v3422
        %v3468 = vadd.f32 %v3178, %v3424
        %v3469 = vadd.f32 %v3179, %v3427
        %v3470 = vadd.f32 %v3180, %v3429
        %v3471 = vadd.f32 %v3181, %v3432
        %v3472 = vadd.f32 %v3182, %v3434
        %v3473 = vadd.f32 %v3183, %v3437
        %v3474 = vadd.f32 %v3184, %v3439
        %v3475 = vadd.f32 %v3185, %v3442
        %v3476 = vadd.f32 %v3186, %v3444
        %v3477 = vpack.c.bf16 %v3462, %v3461
        %v3478 = vpack.c.bf16 %v3464, %v3463
        %v3479 = vpack.c.bf16 %v3466, %v3465
        %v3480 = vpack.c.bf16 %v3468, %v3467
        %v3481 = vpack.c.bf16 %v3470, %v3469
        %v3482 = vpack.c.bf16 %v3472, %v3471
        %v3483 = vpack.c.bf16 %v3474, %v3473
        %v3484 = vpack.c.bf16 %v3476, %v3475
        %v3493 = vunpack.c.l.b16 %v3477
        %v3494 = vunpack.c.h.b16 %v3477
        %v3495 = vunpack.c.l.b16 %v3478
        %v3496 = vunpack.c.h.b16 %v3478
        %v3497 = vunpack.c.l.b16 %v3479
        %v3498 = vunpack.c.h.b16 %v3479
        %v3499 = vunpack.c.l.b16 %v3480
        %v3500 = vunpack.c.h.b16 %v3480
        %v3501 = vunpack.c.l.b16 %v3481
        %v3502 = vunpack.c.h.b16 %v3481
        %v3503 = vunpack.c.l.b16 %v3482
        %v3504 = vunpack.c.h.b16 %v3482
        %v3505 = vunpack.c.l.b16 %v3483
        %v3506 = vunpack.c.h.b16 %v3483
        %v3507 = vunpack.c.l.b16 %v3484
        %v3508 = vunpack.c.h.b16 %v3484
        %v3509 = vpack.c.b16 %v3493, %v3493
        %v3510 = vpack.c.b16 %v3494, %v3494
        %v3511 = vpack.c.b16 %v3495, %v3495
        %v3512 = vpack.c.b16 %v3496, %v3496
        %v3513 = vpack.c.b16 %v3497, %v3497
        %v3514 = vpack.c.b16 %v3498, %v3498
        %v3515 = vpack.c.b16 %v3499, %v3499
        %v3516 = vpack.c.b16 %v3500, %v3500
        %v3517 = vpack.c.b16 %v3501, %v3501
        %v3518 = vpack.c.b16 %v3502, %v3502
        %v3519 = vpack.c.b16 %v3503, %v3503
        %v3520 = vpack.c.b16 %v3504, %v3504
        %v3521 = vpack.c.b16 %v3505, %v3505
        %v3522 = vpack.c.b16 %v3506, %v3506
        %v3523 = vpack.c.b16 %v3507, %v3507
        %v3524 = vpack.c.b16 %v3508, %v3508
        %3541 = vst [vmem:[%s440] sm:$0xf] %v3509
        %3542 = vst [vmem:[%s440 + $0x4] sm:$0xf] %v3510
        %3543 = vst [vmem:[%s440 + $0x8] sm:$0xf] %v3511
        %3544 = vst [vmem:[%s440 + $0xc] sm:$0xf] %v3512
        %3545 = vst [vmem:[%s440 + $0x10] sm:$0xf] %v3513
        %3546 = vst [vmem:[%s440 + $0x14] sm:$0xf] %v3514
        %3547 = vst [vmem:[%s440 + $0x18] sm:$0xf] %v3515
        %3548 = vst [vmem:[%s440 + $0x1c] sm:$0xf] %v3516
        %3549 = vst [vmem:[%s440 + $0x20] sm:$0xf] %v3517
        %3550 = vst [vmem:[%s440 + $0x24] sm:$0xf] %v3518
        %3551 = vst [vmem:[%s440 + $0x28] sm:$0xf] %v3519
        %3552 = vst [vmem:[%s440 + $0x2c] sm:$0xf] %v3520
        %3553 = vst [vmem:[%s440 + $0x30] sm:$0xf] %v3521
        %3554 = vst [vmem:[%s440 + $0x34] sm:$0xf] %v3522
        %3555 = vst [vmem:[%s440 + $0x38] sm:$0xf] %v3523
        %3556 = vst [vmem:[%s440 + $0x3c] sm:$0xf] %v3524
        %v3557 = vadd.f32 %v3461, %v3462
        %v3558 = vadd.f32 %v3557, %v3463
        %v3559 = vadd.f32 %v3558, %v3464
        %v3560 = vadd.f32 %v3559, %v3465
        %v3561 = vadd.f32 %v3560, %v3466
        %v3562 = vadd.f32 %v3561, %v3467
        %v3563 = vadd.f32 %v3562, %v3468
        %v3564 = vadd.f32 %v3563, %v3469
        %v3565 = vadd.f32 %v3564, %v3470
        %v3566 = vadd.f32 %v3565, %v3471
        %v3567 = vadd.f32 %v3566, %v3472
        %v3568 = vadd.f32 %v3567, %v3473
        %v3569 = vadd.f32 %v3568, %v3474
        %v3570 = vadd.f32 %v3569, %v3475
        %v3571 = vadd.f32 %v3570, %v3476
        %v3572 = vrot.slane %v3571, 4
        %v3573 = vadd.f32 %v3571, %v3572
        %v3574 = vrot.slane %v3573, 2
        %v3575 = vadd.f32 %v3573, %v3574
        %v3576 = vrot.slane %v3575, 1
        %v3577 = vadd.f32 %v3575, %v3576
        %3578 = vst [vmem:[%s446] sm:$0x1] %v3577
        %v3579 = vmul.f32 %v3461, %v3461
        %v3580 = vmul.f32 %v3462, %v3462
        %v3581 = vmul.f32 %v3463, %v3463
        %v3582 = vmul.f32 %v3464, %v3464
        %v3583 = vmul.f32 %v3465, %v3465
        %v3584 = vmul.f32 %v3466, %v3466
        %v3585 = vmul.f32 %v3467, %v3467
        %v3586 = vmul.f32 %v3468, %v3468
        %v3587 = vmul.f32 %v3469, %v3469
        %v3588 = vmul.f32 %v3470, %v3470
        %v3589 = vmul.f32 %v3471, %v3471
        %v3590 = vmul.f32 %v3472, %v3472
        %v3591 = vmul.f32 %v3473, %v3473
        %v3592 = vmul.f32 %v3474, %v3474
        %v3593 = vmul.f32 %v3475, %v3475
        %v3594 = vmul.f32 %v3476, %v3476
        %v3595 = vadd.f32 %v3579, %v3580
        %v3596 = vadd.f32 %v3595, %v3581
        %v3597 = vadd.f32 %v3596, %v3582
        %v3598 = vadd.f32 %v3597, %v3583
        %v3599 = vadd.f32 %v3598, %v3584
        %v3600 = vadd.f32 %v3599, %v3585
        %v3601 = vadd.f32 %v3600, %v3586
        %v3602 = vadd.f32 %v3601, %v3587
        %v3603 = vadd.f32 %v3602, %v3588
        %v3604 = vadd.f32 %v3603, %v3589
        %v3605 = vadd.f32 %v3604, %v3590
        %v3606 = vadd.f32 %v3605, %v3591
        %v3607 = vadd.f32 %v3606, %v3592
        %v3608 = vadd.f32 %v3607, %v3593
        %v3609 = vadd.f32 %v3608, %v3594
        %v3610 = vrot.slane %v3609, 4
        %v3611 = vadd.f32 %v3609, %v3610
        %v3612 = vrot.slane %v3611, 2
        %v3613 = vadd.f32 %v3611, %v3612
        %v3614 = vrot.slane %v3613, 1
        %v3615 = vadd.f32 %v3613, %v3614
        %3616 = vst [vmem:[%s452] sm:$0x1] %v3615
        %s3617 = sand.u32 %s188, 1
        %s3618 = scalar_lea.sflag [#allocation5], %s3617
        %s3619 = sand.u32 %s188, 1
        %s3620 = smul.addr %s3619, 64
        %s3621 = scalar_lea.vmem [#allocation11], %s3620
        %s3622 = sand.u32 %s31, 1
        %s3623 = scalar_lea.sflag [#allocation13], %s3622
        %s3624 = sand.u32 %s218, 1
        %s3625 = scalar_lea.vmem [#allocation12], %s3624
        %s3626 = sand.u32 %s31, 1
        %s3627 = scalar_lea.sflag [#allocation13], %s3626
        %s3628 = sand.u32 %s248, 1
        %s3629 = scalar_lea.vmem [#allocation14], %s3628
        // Predicated region
        $region57: #{tpu_custom_call.1} parent=35 // pred_check
          %p3630 = pneg %p198
        $region58: #{tpu_custom_call.1} parent=35 // pred_check_branch
          %3632 = sbr.rel (%p3630) target = $region60
        $region59: #{tpu_custom_call.1} parent=35 // pred_region
          %s3633 = smul.u32 8, %s37
          %s3635 = ssub.s32 1024, 1024
          %3636 = vsyncadd %s3618, %s3635
          %s3637 = smul.addr %s3633, 2
          %s3638 = sadd.s32 %s38, %s3637
          %s3639 = smul.addr %s36, 32
          %s3640 = sadd.s32 %s3638, %s3639
          %s3641 = smul.addr %s3640, 64
          %s3642 = scalar_lea.hbm %s4, %s3641
          %s3643 = sshll.u32 %s3621, 4
          %s3644 = int_to_ptr.vmem [resolvable:$true] %s3643
          %3649 = dma.vmem_to_hbm [thread:$0]  %s3644, 1024, %s3642, %s3618, 64, 64, 4
        $region60: #{tpu_custom_call.1} parent=35 // pred_fallthru
          _
        // Predicated region
        $region61: #{tpu_custom_call.1} parent=35 // pred_check
          %p3650 = pneg %p228
        $region62: #{tpu_custom_call.1} parent=35 // pred_check_branch
          %3652 = sbr.rel (%p3650) target = $region64
        $region63: #{tpu_custom_call.1} parent=35 // pred_region
          %s3654 = ssub.s32 16, 16
          %3655 = vsyncadd %s3623, %s3654
          %s3656 = sadd.s32 %s38, %s37
          %s3657 = smul.addr %s36, 2
          %s3658 = sadd.s32 %s3656, %s3657
          %s3659 = smul.addr %s3658, 16
          %s3660 = scalar_lea.hbm %s5, %s3659
          %s3662 = sshll.u32 %s3625, 4
          %s3663 = int_to_ptr.vmem [resolvable:$true] %s3662
          %3665 = dma.vmem_to_hbm [thread:$0]  %s3663, 16, %s3660, %s3623
        $region64: #{tpu_custom_call.1} parent=35 // pred_fallthru
          _
        // Predicated region
        $region65: #{tpu_custom_call.1} parent=35 // pred_check
          %p3666 = pneg %p258
        $region66: #{tpu_custom_call.1} parent=35 // pred_check_branch
          %3668 = sbr.rel (%p3666) target = $region68
        $region67: #{tpu_custom_call.1} parent=35 // pred_region
          %s3670 = ssub.s32 16, 16
          %3671 = vsyncadd %s3627, %s3670
          %s3672 = sadd.s32 %s38, %s37
          %s3673 = smul.addr %s36, 2
          %s3674 = sadd.s32 %s3672, %s3673
          %s3675 = smul.addr %s3674, 16
          %s3676 = scalar_lea.hbm %s6, %s3675
          %s3678 = sshll.u32 %s3629, 4
          %s3679 = int_to_ptr.vmem [resolvable:$true] %s3678
          %3681 = dma.vmem_to_hbm [thread:$0]  %s3679, 16, %s3676, %s3627
        $region68: #{tpu_custom_call.1} parent=35 // pred_fallthru
          _
      $region36: #{tpu_custom_call.1} parent=5 // pred_fallthru
        _
      %p3682 = scmp.le.s32.totalorder 2, %s26
      // Predicated region
      $region69: #{tpu_custom_call.1} parent=5 // pred_check
        %p3683 = pneg %p3682
      $region70: #{tpu_custom_call.1} parent=5 // pred_check_branch
        %3685 = sbr.rel (%p3683) target = $region72
      $region71: #{tpu_custom_call.1} parent=5 // pred_region
        %s3686 = ssub.s32 %s26, 2
        // Predicated region
        $region73: #{tpu_custom_call.1} parent=71 // pred_check
          %p3687 = pneg %p204
        $region74: #{tpu_custom_call.1} parent=71 // pred_check_branch
          %3689 = sbr.rel (%p3687) target = $region76
        $region75: #{tpu_custom_call.1} parent=71 // pred_region
          %s3690 = sand.u32 %s189, 1
          %s3691 = scalar_lea.sflag [#allocation5], %s3690
          %s3692 = sand.u32 %s189, 1
          %s3693 = smul.addr %s3692, 64
          %s3694 = scalar_lea.vmem [#allocation11], %s3693
          %3695 = dma.done %s3691, 1024
        $region76: #{tpu_custom_call.1} parent=71 // pred_fallthru
          _
        // Predicated region
        $region77: #{tpu_custom_call.1} parent=71 // pred_check
          %p3696 = pneg %p234
        $region78: #{tpu_custom_call.1} parent=71 // pred_check_branch
          %3698 = sbr.rel (%p3696) target = $region80
        $region79: #{tpu_custom_call.1} parent=71 // pred_region
          %s3699 = sand.u32 %s32, 1
          %s3700 = scalar_lea.sflag [#allocation13], %s3699
          %s3701 = sand.u32 %s219, 1
          %s3702 = scalar_lea.vmem [#allocation12], %s3701
          %3703 = dma.done %s3700, 16
        $region80: #{tpu_custom_call.1} parent=71 // pred_fallthru
          _
        // Predicated region
        $region81: #{tpu_custom_call.1} parent=71 // pred_check
          %p3704 = pneg %p264
        $region82: #{tpu_custom_call.1} parent=71 // pred_check_branch
          %3706 = sbr.rel (%p3704) target = $region84
        $region83: #{tpu_custom_call.1} parent=71 // pred_region
          %s3707 = sand.u32 %s32, 1
          %s3708 = scalar_lea.sflag [#allocation13], %s3707
          %s3709 = sand.u32 %s249, 1
          %s3710 = scalar_lea.vmem [#allocation14], %s3709
          %3711 = dma.done %s3708, 16
        $region84: #{tpu_custom_call.1} parent=71 // pred_fallthru
          _
      $region72: #{tpu_custom_call.1} parent=5 // pred_fallthru
        _
    $region6: #{tpu_custom_call.1} parent=1 // loop_footer
      %s30 = sadd.s32 1, %s26
    $region7: #{tpu_custom_call.1} parent=1 // loop_footer_branch
      %25 = sbr.rel target = $region3
    $region8: #{tpu_custom_call.1} parent=1 // loop_exit
      _
    %3712 = vsyncpa [#allocation4], 1
    %s3713 = scalar_lea.sflag [#allocation4], 1
    %3714 = vsyncpa %s3713, 1
    %3715 = vsyncpa [#allocation7], 1
    %s3716 = scalar_lea.sflag [#allocation7], 1
    %3717 = vsyncpa %s3716, 1
    %3718 = vsyncpa [#allocation10], 1
    %3719 = vsyncpa [#allocation5], 1
    %s3720 = scalar_lea.sflag [#allocation5], 1
    %3721 = vsyncpa %s3720, 1
    %3722 = vsyncpa [#allocation13], 1
    %s3723 = scalar_lea.sflag [#allocation13], 1
    %3724 = vsyncpa %s3723, 1

</llo_original>
